<compile_context>
chip_gen: v5e
topology: v5e:2x2
jax: 0.10.0
libtpu: 0.0.40
codegen_flags: <defaults>
</compile_context>

<pallas_src>
import math
from functools import partial

import jax
import jax.numpy as jnp
import numpy as np
from jax.experimental import pallas as pl
from jax.experimental.pallas import tpu as pltpu


def _round_up(x, m):
    return ((x + m - 1) // m) * m


# ----------------------------- fused kernel --------------------------------
def _make_fused_kernel(k1, H1, W1, k2, H2, W2, p2):
    """Builds the fused two-layer conv kernel for one batch image."""
    half1 = W1 // 2  # layer-1 output columns per parity group

    def kernel(xp0, xp1, xp2, xp3, w1_ref, b1_ref, w2_ref, b2_ref,
               out_ref, mid_e, mid_o):
        # xp{q}  : (Hp1, ceil((Wp1-q)/4), cpad) bf16  -- padded input cols q::4
        # w1_ref : (k1*k1*cpad, c1) bf16 ; b1_ref: (1, c1) f32
        # w2_ref : (k2*k2*c1,  c2) bf16 ; b2_ref: (1, c2) f32
        # out_ref: (H2, W2, c2) f32
        # mid_e / mid_o: (Hp2, *, c1) f32 -- zero-padded layer-1 output,
        #                even / odd padded columns (column-parity split).
        xph = (xp0, xp1, xp2, xp3)
        w1 = w1_ref[...]
        b1 = b1_ref[...]
        w2 = w2_ref[...]
        b2 = b2_ref[...]

        # Zero the padded intermediate once; the borders stay zero.
        mid_e[...] = jnp.zeros_like(mid_e)
        mid_o[...] = jnp.zeros_like(mid_o)

        # ------------------------- layer 1 -------------------------
        # Output columns are produced in two parity groups so each group lands
        # as one contiguous block of one column-parity scratch buffer.
        for oh in range(H1):
            for par in (0, 1):                       # output-column parity
                pieces = []
                for kh in range(k1):
                    r = 2 * oh + kh                  # padded input row
                    for kw in range(k1):
                        q = (kw + 2 * par) % 4       # input column phase
                        j0 = (kw + 2 * par) // 4     # offset inside the phase
                        pieces.append(xph[q][r, j0:j0 + half1, :])
                patch = jnp.concatenate(pieces, axis=-1)          # (half1, K1) bf16
                acc = jnp.dot(patch, w1, preferred_element_type=jnp.float32)
                y = jnp.maximum(acc + b1, 0.0)                     # (half1, c1) f32
                # y1 column c = 2*j + par sits at padded column c + p2.
                dst = mid_e if (par + p2) % 2 == 0 else mid_o
                c0 = (par + p2) // 2
                dst[p2 + oh, c0:c0 + half1, :] = y

        # ------------------------- layer 2 -------------------------
        for oh2 in range(H2):
            pieces = []
            for kh in range(k2):
                r2 = 2 * oh2 + kh                    # padded intermediate row
                for kw in range(k2):
                    src = mid_e if kw % 2 == 0 else mid_o
                    j0 = kw // 2
                    pieces.append(src[r2, j0:j0 + W2, :])
            patch = jnp.concatenate(pieces, axis=-1).astype(jnp.bfloat16)
            acc = jnp.dot(patch, w2, preferred_element_type=jnp.float32)
            out_ref[oh2] = jnp.maximum(acc + b2, 0.0)              # (W2, c2) f32

    return kernel


# --------------------------- wrapper (NHWC) ---------------------------------
def _fused_two_layer_conv(x_nhwc, paras, params):
    (ci1, c1, k1, s1, p1), (ci2, c2, k2, s2, p2) = paras
    assert s1 == 2 and s2 == 2, "fused kernel is specialised to stride-2 convs"
    assert ci2 == c1
    assert isinstance(p1, int) and isinstance(p2, int)

    N, H, W, _ = x_nhwc.shape
    Hp1, Wp1 = H + 2 * p1, W + 2 * p1
    H1, W1 = (Hp1 - k1) // 2 + 1, (Wp1 - k1) // 2 + 1
    Hp2, Wp2 = H1 + 2 * p2, W1 + 2 * p2
    H2, W2 = (Hp2 - k2) // 2 + 1, (Wp2 - k2) // 2 + 1
    assert W1 % 2 == 0, "layer-1 output width must be even for the parity split"

    cpad = _round_up(ci1, 8)  # pad input channels so lane pieces are 8-wide

    # Pad (spatial + channel) and cast to bf16 BEFORE any expansion, then split
    # into 4 column phases (no data expansion, just 4 cheap strided slices).
    xp = jnp.pad(x_nhwc, ((0, 0), (p1, p1), (p1, p1), (0, cpad - ci1)))
    xp = xp.astype(jnp.bfloat16)
    phases = [xp[:, :, q::4, :] for q in range(4)]

    (w1, b1), (w2, b2) = params
    # OIHW -> (kh, kw, c_in, c_out); pad c_in; flatten K in (kh, kw, c) order
    # to match the in-kernel concat ordering.
    w1m = jnp.transpose(w1, (2, 3, 1, 0))
    w1m = jnp.pad(w1m, ((0, 0), (0, 0), (0, cpad - ci1), (0, 0)))
    w1m = w1m.reshape(k1 * k1 * cpad, c1).astype(jnp.bfloat16)
    w2m = jnp.transpose(w2, (2, 3, 1, 0)).reshape(k2 * k2 * c1, c2).astype(jnp.bfloat16)
    b1m = b1.reshape(1, c1).astype(jnp.float32)
    b2m = b2.reshape(1, c2).astype(jnp.float32)

    kernel = _make_fused_kernel(k1, H1, W1, k2, H2, W2, p2)

    batch_map = lambda n: (n, 0, 0, 0)
    const_map = lambda n: (0, 0)

    in_specs = [pl.BlockSpec((None,) + tuple(ph.shape[1:]), batch_map)
                for ph in phases]
    in_specs += [
        pl.BlockSpec(tuple(w1m.shape), const_map),
        pl.BlockSpec(tuple(b1m.shape), const_map),
        pl.BlockSpec(tuple(w2m.shape), const_map),
        pl.BlockSpec(tuple(b2m.shape), const_map),
    ]

    out = pl.pallas_call(
        kernel,
        out_shape=jax.ShapeDtypeStruct((N, H2, W2, c2), jnp.float32),
        grid_spec=pltpu.PrefetchScalarGridSpec(
            num_scalar_prefetch=0,
            grid=(N,),
            in_specs=in_specs,
            out_specs=pl.BlockSpec((None, H2, W2, c2), batch_map),
            scratch_shapes=[
                pltpu.VMEM((Hp2, (Wp2 + 1) // 2, c1), jnp.float32),  # even cols
                pltpu.VMEM((Hp2, Wp2 // 2, c1), jnp.float32),        # odd cols
            ],
        ),
        compiler_params=pltpu.CompilerParams(
            dimension_semantics=("parallel",),  # batch across v7x TensorCores
        ),
    )(*phases, w1m, b1m, w2m, b2m)
    return out


# ------------------------- SequentialConv2dBlock ---------------------------
def sequential_conv2d_block(x_nchw, params, paras):
    x = jnp.transpose(x_nchw, (0, 2, 3, 1))          # NCHW -> NHWC once
    y = _fused_two_layer_conv(x, paras, params)      # (N, H2, W2, C2) f32
    return jnp.transpose(y, (0, 3, 1, 2))            # back to NCHW


def init_params(paras, key):
    """PyTorch-like Conv2d init (uniform +/- 1/sqrt(fan_in)), deterministic."""
    params = []
    for (c_in, c_out, k, _s, _p) in paras:
        key, kw_, kb_ = jax.random.split(key, 3)
        fan_in = c_in * k * k
        bound = 1.0 / math.sqrt(fan_in)
        w = jax.random.uniform(kw_, (c_out, c_in, k, k), jnp.float32, -bound, bound)
        b = jax.random.uniform(kb_, (c_out,), jnp.float32, -bound, bound)
        params.append((w, b))
    return params


# ------------------------ reference (pure JAX, f32) -------------------------
def _reference(x, paras, params):
    for (_, _, _k, stride, padding), (w, b) in zip(paras, params):
        xp = jnp.pad(x, ((0, 0), (0, 0), (padding, padding), (padding, padding)))
        y = jax.lax.conv_general_dilated(
            xp, w, window_strides=(stride, stride), padding="VALID",
            dimension_numbers=("NCHW", "OIHW", "NCHW"))
        x = jnp.maximum(y + b.reshape(1, -1, 1, 1), 0.0)
    return x


if __name__ == "__main__":
    # paras: (in_channels, out_channels, kernel_size, stride, padding)
    paras = [(3, 8, 4, 2, 1), (8, 16, 4, 2, 1)]

    key = jax.random.PRNGKey(0)
    k_x, k_p = jax.random.split(key)
    x = jax.random.normal(k_x, (2, 3, 16, 16), jnp.float32)
    params = init_params(paras, k_p)

    fwd = jax.jit(lambda xx, pp: sequential_conv2d_block(xx, pp, paras))
    out = jax.block_until_ready(fwd(x, params))

    ref = _reference(x, paras, params)
    # bf16 operands with f32 accumulation -> looser tolerance than pure f32.
    np.testing.assert_allclose(np.asarray(out), np.asarray(ref), rtol=2e-2, atol=2e-2)

    assert out.shape == (2, 16, 4, 4), out.shape
    print("KERNEL_OK")
</pallas_src>

<mosaic_0001>
module attributes {stable_mosaic.version = 11 : i64} {
  func.func @kernel(%arg0: i32, %arg1: memref<1x18x5x8xbf16, #tpu.memory_space<vmem>>, %arg2: memref<1x18x5x8xbf16, #tpu.memory_space<vmem>>, %arg3: memref<1x18x4x8xbf16, #tpu.memory_space<vmem>>, %arg4: memref<1x18x4x8xbf16, #tpu.memory_space<vmem>>, %arg5: memref<128x8xbf16, #tpu.memory_space<vmem>>, %arg6: memref<1x8xf32, #tpu.memory_space<vmem>>, %arg7: memref<128x16xbf16, #tpu.memory_space<vmem>>, %arg8: memref<1x16xf32, #tpu.memory_space<vmem>>, %arg9: memref<1x4x4x16xf32, #tpu.memory_space<vmem>>, %arg10: memref<10x5x8xf32, #tpu.memory_space<vmem>>, %arg11: memref<10x5x8xf32, #tpu.memory_space<vmem>>) attributes {dimension_semantics = [#tpu.dimension_semantics<parallel>], iteration_bounds = array<i64: 2>, scalar_prefetch = 0 : i64, scratch_operands = 2 : i64, tpu.core_type = #tpu.core_type<tc>, window_params = [{transform_indices = @transform_0, window_bounds = array<i64: 1, 18, 5, 8>}, {transform_indices = @transform_1, window_bounds = array<i64: 1, 18, 5, 8>}, {transform_indices = @transform_2, window_bounds = array<i64: 1, 18, 4, 8>}, {transform_indices = @transform_3, window_bounds = array<i64: 1, 18, 4, 8>}, {pipeline_mode = #tpu.pipeline_mode<synchronous>, transform_indices = @transform_4, window_bounds = array<i64: 128, 8>}, {pipeline_mode = #tpu.pipeline_mode<synchronous>, transform_indices = @transform_5, window_bounds = array<i64: 1, 8>}, {pipeline_mode = #tpu.pipeline_mode<synchronous>, transform_indices = @transform_6, window_bounds = array<i64: 128, 16>}, {pipeline_mode = #tpu.pipeline_mode<synchronous>, transform_indices = @transform_7, window_bounds = array<i64: 1, 16>}, {transform_indices = @transform_8, window_bounds = array<i64: 1, 4, 4, 16>}]} {
    %c0 = arith.constant 0 : index
    %c0_0 = arith.constant 0 : index
    %0 = vector.load %arg5[%c0, %c0_0] : memref<128x8xbf16, #tpu.memory_space<vmem>>, vector<128x8xbf16>
    %c0_1 = arith.constant 0 : index
    %c0_2 = arith.constant 0 : index
    %1 = vector.load %arg6[%c0_1, %c0_2] : memref<1x8xf32, #tpu.memory_space<vmem>>, vector<1x8xf32>
    %c0_3 = arith.constant 0 : index
    %c0_4 = arith.constant 0 : index
    %2 = vector.load %arg7[%c0_3, %c0_4] : memref<128x16xbf16, #tpu.memory_space<vmem>>, vector<128x16xbf16>
    %c0_5 = arith.constant 0 : index
    %c0_6 = arith.constant 0 : index
    %3 = vector.load %arg8[%c0_5, %c0_6] : memref<1x16xf32, #tpu.memory_space<vmem>>, vector<1x16xf32>
    %cst = arith.constant 0.000000e+00 : f32
    %4 = vector.broadcast %cst : f32 to vector<10x5x8xf32>
    %c0_7 = arith.constant 0 : index
    %c0_8 = arith.constant 0 : index
    %c0_9 = arith.constant 0 : index
    %5 = vector.load %arg10[%c0_7, %c0_8, %c0_9] : memref<10x5x8xf32, #tpu.memory_space<vmem>>, vector<10x5x8xf32>
    tpu.vector_store %arg10[%c0_7, %c0_8, %c0_9], %4 {strides = array<i32>} : memref<10x5x8xf32, #tpu.memory_space<vmem>>, vector<10x5x8xf32>,
    %cst_10 = arith.constant 0.000000e+00 : f32
    %6 = vector.broadcast %cst_10 : f32 to vector<10x5x8xf32>
    %c0_11 = arith.constant 0 : index
    %c0_12 = arith.constant 0 : index
    %c0_13 = arith.constant 0 : index
    %7 = vector.load %arg11[%c0_11, %c0_12, %c0_13] : memref<10x5x8xf32, #tpu.memory_space<vmem>>, vector<10x5x8xf32>
    tpu.vector_store %arg11[%c0_11, %c0_12, %c0_13], %6 {strides = array<i32>} : memref<10x5x8xf32, #tpu.memory_space<vmem>>, vector<10x5x8xf32>,
    %c0_14 = arith.constant 0 : index
    %c0_15 = arith.constant 0 : index
    %c0_16 = arith.constant 0 : index
    %c0_17 = arith.constant 0 : index
    %8 = vector.load %arg1[%c0_14, %c0_15, %c0_16, %c0_17] : memref<1x18x5x8xbf16, #tpu.memory_space<vmem>>, vector<1x1x4x8xbf16>
    %9 = vector.shape_cast %8 : vector<1x1x4x8xbf16> to vector<4x8xbf16>
    %c0_18 = arith.constant 0 : index
    %c0_19 = arith.constant 0 : index
    %c0_20 = arith.constant 0 : index
    %c0_21 = arith.constant 0 : index
    %10 = vector.load %arg2[%c0_18, %c0_19, %c0_20, %c0_21] : memref<1x18x5x8xbf16, #tpu.memory_space<vmem>>, vector<1x1x4x8xbf16>
    %11 = vector.shape_cast %10 : vector<1x1x4x8xbf16> to vector<4x8xbf16>
    %c0_22 = arith.constant 0 : index
    %c0_23 = arith.constant 0 : index
    %c0_24 = arith.constant 0 : index
    %c0_25 = arith.constant 0 : index
    %12 = vector.load %arg3[%c0_22, %c0_23, %c0_24, %c0_25] : memref<1x18x4x8xbf16, #tpu.memory_space<vmem>>, vector<1x1x4x8xbf16>
    %13 = vector.shape_cast %12 : vector<1x1x4x8xbf16> to vector<4x8xbf16>
    %c0_26 = arith.constant 0 : index
    %c0_27 = arith.constant 0 : index
    %c0_28 = arith.constant 0 : index
    %c0_29 = arith.constant 0 : index
    %14 = vector.load %arg4[%c0_26, %c0_27, %c0_28, %c0_29] : memref<1x18x4x8xbf16, #tpu.memory_space<vmem>>, vector<1x1x4x8xbf16>
    %15 = vector.shape_cast %14 : vector<1x1x4x8xbf16> to vector<4x8xbf16>
    %c0_30 = arith.constant 0 : index
    %c1 = arith.constant 1 : index
    %c0_31 = arith.constant 0 : index
    %c0_32 = arith.constant 0 : index
    %16 = vector.load %arg1[%c0_30, %c1, %c0_31, %c0_32] : memref<1x18x5x8xbf16, #tpu.memory_space<vmem>>, vector<1x1x4x8xbf16>
    %17 = vector.shape_cast %16 : vector<1x1x4x8xbf16> to vector<4x8xbf16>
    %c0_33 = arith.constant 0 : index
    %c1_34 = arith.constant 1 : index
    %c0_35 = arith.constant 0 : index
    %c0_36 = arith.constant 0 : index
    %18 = vector.load %arg2[%c0_33, %c1_34, %c0_35, %c0_36] : memref<1x18x5x8xbf16, #tpu.memory_space<vmem>>, vector<1x1x4x8xbf16>
    %19 = vector.shape_cast %18 : vector<1x1x4x8xbf16> to vector<4x8xbf16>
    %c0_37 = arith.constant 0 : index
    %c1_38 = arith.constant 1 : index
    %c0_39 = arith.constant 0 : index
    %c0_40 = arith.constant 0 : index
    %20 = vector.load %arg3[%c0_37, %c1_38, %c0_39, %c0_40] : memref<1x18x4x8xbf16, #tpu.memory_space<vmem>>, vector<1x1x4x8xbf16>
    %21 = vector.shape_cast %20 : vector<1x1x4x8xbf16> to vector<4x8xbf16>
    %c0_41 = arith.constant 0 : index
    %c1_42 = arith.constant 1 : index
    %c0_43 = arith.constant 0 : index
    %c0_44 = arith.constant 0 : index
    %22 = vector.load %arg4[%c0_41, %c1_42, %c0_43, %c0_44] : memref<1x18x4x8xbf16, #tpu.memory_space<vmem>>, vector<1x1x4x8xbf16>
    %23 = vector.shape_cast %22 : vector<1x1x4x8xbf16> to vector<4x8xbf16>
    %c0_45 = arith.constant 0 : index
    %c2 = arith.constant 2 : index
    %c0_46 = arith.constant 0 : index
    %c0_47 = arith.constant 0 : index
    %24 = vector.load %arg1[%c0_45, %c2, %c0_46, %c0_47] : memref<1x18x5x8xbf16, #tpu.memory_space<vmem>>, vector<1x1x4x8xbf16>
    %25 = vector.shape_cast %24 : vector<1x1x4x8xbf16> to vector<4x8xbf16>
    %c0_48 = arith.constant 0 : index
    %c2_49 = arith.constant 2 : index
    %c0_50 = arith.constant 0 : index
    %c0_51 = arith.constant 0 : index
    %26 = vector.load %arg2[%c0_48, %c2_49, %c0_50, %c0_51] : memref<1x18x5x8xbf16, #tpu.memory_space<vmem>>, vector<1x1x4x8xbf16>
    %27 = vector.shape_cast %26 : vector<1x1x4x8xbf16> to vector<4x8xbf16>
    %c0_52 = arith.constant 0 : index
    %c2_53 = arith.constant 2 : index
    %c0_54 = arith.constant 0 : index
    %c0_55 = arith.constant 0 : index
    %28 = vector.load %arg3[%c0_52, %c2_53, %c0_54, %c0_55] : memref<1x18x4x8xbf16, #tpu.memory_space<vmem>>, vector<1x1x4x8xbf16>
    %29 = vector.shape_cast %28 : vector<1x1x4x8xbf16> to vector<4x8xbf16>
    %c0_56 = arith.constant 0 : index
    %c2_57 = arith.constant 2 : index
    %c0_58 = arith.constant 0 : index
    %c0_59 = arith.constant 0 : index
    %30 = vector.load %arg4[%c0_56, %c2_57, %c0_58, %c0_59] : memref<1x18x4x8xbf16, #tpu.memory_space<vmem>>, vector<1x1x4x8xbf16>
    %31 = vector.shape_cast %30 : vector<1x1x4x8xbf16> to vector<4x8xbf16>
    %c0_60 = arith.constant 0 : index
    %c3 = arith.constant 3 : index
    %c0_61 = arith.constant 0 : index
    %c0_62 = arith.constant 0 : index
    %32 = vector.load %arg1[%c0_60, %c3, %c0_61, %c0_62] : memref<1x18x5x8xbf16, #tpu.memory_space<vmem>>, vector<1x1x4x8xbf16>
    %33 = vector.shape_cast %32 : vector<1x1x4x8xbf16> to vector<4x8xbf16>
    %c0_63 = arith.constant 0 : index
    %c3_64 = arith.constant 3 : index
    %c0_65 = arith.constant 0 : index
    %c0_66 = arith.constant 0 : index
    %34 = vector.load %arg2[%c0_63, %c3_64, %c0_65, %c0_66] : memref<1x18x5x8xbf16, #tpu.memory_space<vmem>>, vector<1x1x4x8xbf16>
    %35 = vector.shape_cast %34 : vector<1x1x4x8xbf16> to vector<4x8xbf16>
    %c0_67 = arith.constant 0 : index
    %c3_68 = arith.constant 3 : index
    %c0_69 = arith.constant 0 : index
    %c0_70 = arith.constant 0 : index
    %36 = vector.load %arg3[%c0_67, %c3_68, %c0_69, %c0_70] : memref<1x18x4x8xbf16, #tpu.memory_space<vmem>>, vector<1x1x4x8xbf16>
    %37 = vector.shape_cast %36 : vector<1x1x4x8xbf16> to vector<4x8xbf16>
    %c0_71 = arith.constant 0 : index
    %c3_72 = arith.constant 3 : index
    %c0_73 = arith.constant 0 : index
    %c0_74 = arith.constant 0 : index
    %38 = vector.load %arg4[%c0_71, %c3_72, %c0_73, %c0_74] : memref<1x18x4x8xbf16, #tpu.memory_space<vmem>>, vector<1x1x4x8xbf16>
    %39 = vector.shape_cast %38 : vector<1x1x4x8xbf16> to vector<4x8xbf16>
    %40 = tpu.concatenate %9, %11, %13, %15, %17, %19, %21, %23, %25, %27, %29, %31, %33, %35, %37, %39 in 1 : vector<4x8xbf16>, vector<4x8xbf16>, vector<4x8xbf16>, vector<4x8xbf16>, vector<4x8xbf16>, vector<4x8xbf16>, vector<4x8xbf16>, vector<4x8xbf16>, vector<4x8xbf16>, vector<4x8xbf16>, vector<4x8xbf16>, vector<4x8xbf16>, vector<4x8xbf16>, vector<4x8xbf16>, vector<4x8xbf16>, vector<4x8xbf16> -> vector<4x128xbf16>
    %cst_75 = arith.constant dense<0.000000e+00> : vector<4x8xf32>
    %41 = tpu.matmul %40, %0, %cst_75 {dimension_numbers = #tpu.dot_dimension_numbers<[1], [0], [0], [1], [0, 0, 1, 1], [], []>} : vector<4x128xbf16>, vector<128x8xbf16>, vector<4x8xf32> -> vector<4x8xf32>
    %42 = vector.broadcast %1 : vector<1x8xf32> to vector<4x8xf32>
    %43 = arith.addf %41, %42 : vector<4x8xf32>
    %cst_76 = arith.constant 0.000000e+00 : f32
    %44 = vector.broadcast %cst_76 : f32 to vector<4x8xf32>
    %45 = arith.maximumf %43, %44 : vector<4x8xf32>
    %c1_77 = arith.constant 1 : index
    %c0_78 = arith.constant 0 : index
    %c0_79 = arith.constant 0 : index
    %46 = vector.load %arg11[%c1_77, %c0_78, %c0_79] : memref<10x5x8xf32, #tpu.memory_space<vmem>>, vector<1x4x8xf32>
    %47 = vector.shape_cast %46 : vector<1x4x8xf32> to vector<4x8xf32>
    %48 = vector.shape_cast %45 : vector<4x8xf32> to vector<1x4x8xf32>
    tpu.vector_store %arg11[%c1_77, %c0_78, %c0_79], %48 {strides = array<i32>} : memref<10x5x8xf32, #tpu.memory_space<vmem>>, vector<1x4x8xf32>,
    %c0_80 = arith.constant 0 : index
    %c0_81 = arith.constant 0 : index
    %c0_82 = arith.constant 0 : index
    %c0_83 = arith.constant 0 : index
    %49 = vector.load %arg3[%c0_80, %c0_81, %c0_82, %c0_83] : memref<1x18x4x8xbf16, #tpu.memory_space<vmem>>, vector<1x1x4x8xbf16>
    %50 = vector.shape_cast %49 : vector<1x1x4x8xbf16> to vector<4x8xbf16>
    %c0_84 = arith.constant 0 : index
    %c0_85 = arith.constant 0 : index
    %c0_86 = arith.constant 0 : index
    %c0_87 = arith.constant 0 : index
    %51 = vector.load %arg4[%c0_84, %c0_85, %c0_86, %c0_87] : memref<1x18x4x8xbf16, #tpu.memory_space<vmem>>, vector<1x1x4x8xbf16>
    %52 = vector.shape_cast %51 : vector<1x1x4x8xbf16> to vector<4x8xbf16>
    %c0_88 = arith.constant 0 : index
    %c0_89 = arith.constant 0 : index
    %c1_90 = arith.constant 1 : index
    %c0_91 = arith.constant 0 : index
    %53 = vector.load %arg1[%c0_88, %c0_89, %c1_90, %c0_91] : memref<1x18x5x8xbf16, #tpu.memory_space<vmem>>, vector<1x1x4x8xbf16>
    %54 = vector.shape_cast %53 : vector<1x1x4x8xbf16> to vector<4x8xbf16>
    %c0_92 = arith.constant 0 : index
    %c0_93 = arith.constant 0 : index
    %c1_94 = arith.constant 1 : index
    %c0_95 = arith.constant 0 : index
    %55 = vector.load %arg2[%c0_92, %c0_93, %c1_94, %c0_95] : memref<1x18x5x8xbf16, #tpu.memory_space<vmem>>, vector<1x1x4x8xbf16>
    %56 = vector.shape_cast %55 : vector<1x1x4x8xbf16> to vector<4x8xbf16>
    %c0_96 = arith.constant 0 : index
    %c1_97 = arith.constant 1 : index
    %c0_98 = arith.constant 0 : index
    %c0_99 = arith.constant 0 : index
    %57 = vector.load %arg3[%c0_96, %c1_97, %c0_98, %c0_99] : memref<1x18x4x8xbf16, #tpu.memory_space<vmem>>, vector<1x1x4x8xbf16>
    %58 = vector.shape_cast %57 : vector<1x1x4x8xbf16> to vector<4x8xbf16>
    %c0_100 = arith.constant 0 : index
    %c1_101 = arith.constant 1 : index
    %c0_102 = arith.constant 0 : index
    %c0_103 = arith.constant 0 : index
    %59 = vector.load %arg4[%c0_100, %c1_101, %c0_102, %c0_103] : memref<1x18x4x8xbf16, #tpu.memory_space<vmem>>, vector<1x1x4x8xbf16>
    %60 = vector.shape_cast %59 : vector<1x1x4x8xbf16> to vector<4x8xbf16>
    %c0_104 = arith.constant 0 : index
    %c1_105 = arith.constant 1 : index
    %c1_106 = arith.constant 1 : index
    %c0_107 = arith.constant 0 : index
    %61 = vector.load %arg1[%c0_104, %c1_105, %c1_106, %c0_107] : memref<1x18x5x8xbf16, #tpu.memory_space<vmem>>, vector<1x1x4x8xbf16>
    %62 = vector.shape_cast %61 : vector<1x1x4x8xbf16> to vector<4x8xbf16>
    %c0_108 = arith.constant 0 : index
    %c1_109 = arith.constant 1 : index
    %c1_110 = arith.constant 1 : index
    %c0_111 = arith.constant 0 : index
    %63 = vector.load %arg2[%c0_108, %c1_109, %c1_110, %c0_111] : memref<1x18x5x8xbf16, #tpu.memory_space<vmem>>, vector<1x1x4x8xbf16>
    %64 = vector.shape_cast %63 : vector<1x1x4x8xbf16> to vector<4x8xbf16>
    %c0_112 = arith.constant 0 : index
    %c2_113 = arith.constant 2 : index
    %c0_114 = arith.constant 0 : index
    %c0_115 = arith.constant 0 : index
    %65 = vector.load %arg3[%c0_112, %c2_113, %c0_114, %c0_115] : memref<1x18x4x8xbf16, #tpu.memory_space<vmem>>, vector<1x1x4x8xbf16>
    %66 = vector.shape_cast %65 : vector<1x1x4x8xbf16> to vector<4x8xbf16>
    %c0_116 = arith.constant 0 : index
    %c2_117 = arith.constant 2 : index
    %c0_118 = arith.constant 0 : index
    %c0_119 = arith.constant 0 : index
    %67 = vector.load %arg4[%c0_116, %c2_117, %c0_118, %c0_119] : memref<1x18x4x8xbf16, #tpu.memory_space<vmem>>, vector<1x1x4x8xbf16>
    %68 = vector.shape_cast %67 : vector<1x1x4x8xbf16> to vector<4x8xbf16>
    %c0_120 = arith.constant 0 : index
    %c2_121 = arith.constant 2 : index
    %c1_122 = arith.constant 1 : index
    %c0_123 = arith.constant 0 : index
    %69 = vector.load %arg1[%c0_120, %c2_121, %c1_122, %c0_123] : memref<1x18x5x8xbf16, #tpu.memory_space<vmem>>, vector<1x1x4x8xbf16>
    %70 = vector.shape_cast %69 : vector<1x1x4x8xbf16> to vector<4x8xbf16>
    %c0_124 = arith.constant 0 : index
    %c2_125 = arith.constant 2 : index
    %c1_126 = arith.constant 1 : index
    %c0_127 = arith.constant 0 : index
    %71 = vector.load %arg2[%c0_124, %c2_125, %c1_126, %c0_127] : memref<1x18x5x8xbf16, #tpu.memory_space<vmem>>, vector<1x1x4x8xbf16>
    %72 = vector.shape_cast %71 : vector<1x1x4x8xbf16> to vector<4x8xbf16>
    %c0_128 = arith.constant 0 : index
    %c3_129 = arith.constant 3 : index
    %c0_130 = arith.constant 0 : index
    %c0_131 = arith.constant 0 : index
    %73 = vector.load %arg3[%c0_128, %c3_129, %c0_130, %c0_131] : memref<1x18x4x8xbf16, #tpu.memory_space<vmem>>, vector<1x1x4x8xbf16>
    %74 = vector.shape_cast %73 : vector<1x1x4x8xbf16> to vector<4x8xbf16>
    %c0_132 = arith.constant 0 : index
    %c3_133 = arith.constant 3 : index
    %c0_134 = arith.constant 0 : index
    %c0_135 = arith.constant 0 : index
    %75 = vector.load %arg4[%c0_132, %c3_133, %c0_134, %c0_135] : memref<1x18x4x8xbf16, #tpu.memory_space<vmem>>, vector<1x1x4x8xbf16>
    %76 = vector.shape_cast %75 : vector<1x1x4x8xbf16> to vector<4x8xbf16>
    %c0_136 = arith.constant 0 : index
    %c3_137 = arith.constant 3 : index
    %c1_138 = arith.constant 1 : index
    %c0_139 = arith.constant 0 : index
    %77 = vector.load %arg1[%c0_136, %c3_137, %c1_138, %c0_139] : memref<1x18x5x8xbf16, #tpu.memory_space<vmem>>, vector<1x1x4x8xbf16>
    %78 = vector.shape_cast %77 : vector<1x1x4x8xbf16> to vector<4x8xbf16>
    %c0_140 = arith.constant 0 : index
    %c3_141 = arith.constant 3 : index
    %c1_142 = arith.constant 1 : index
    %c0_143 = arith.constant 0 : index
    %79 = vector.load %arg2[%c0_140, %c3_141, %c1_142, %c0_143] : memref<1x18x5x8xbf16, #tpu.memory_space<vmem>>, vector<1x1x4x8xbf16>
    %80 = vector.shape_cast %79 : vector<1x1x4x8xbf16> to vector<4x8xbf16>
    %81 = tpu.concatenate %50, %52, %54, %56, %58, %60, %62, %64, %66, %68, %70, %72, %74, %76, %78, %80 in 1 : vector<4x8xbf16>, vector<4x8xbf16>, vector<4x8xbf16>, vector<4x8xbf16>, vector<4x8xbf16>, vector<4x8xbf16>, vector<4x8xbf16>, vector<4x8xbf16>, vector<4x8xbf16>, vector<4x8xbf16>, vector<4x8xbf16>, vector<4x8xbf16>, vector<4x8xbf16>, vector<4x8xbf16>, vector<4x8xbf16>, vector<4x8xbf16> -> vector<4x128xbf16>
    %cst_144 = arith.constant dense<0.000000e+00> : vector<4x8xf32>
    %82 = tpu.matmul %81, %0, %cst_144 {dimension_numbers = #tpu.dot_dimension_numbers<[1], [0], [0], [1], [0, 0, 1, 1], [], []>} : vector<4x128xbf16>, vector<128x8xbf16>, vector<4x8xf32> -> vector<4x8xf32>
    %83 = vector.broadcast %1 : vector<1x8xf32> to vector<4x8xf32>
    %84 = arith.addf %82, %83 : vector<4x8xf32>
    %cst_145 = arith.constant 0.000000e+00 : f32
    %85 = vector.broadcast %cst_145 : f32 to vector<4x8xf32>
    %86 = arith.maximumf %84, %85 : vector<4x8xf32>
    %c1_146 = arith.constant 1 : index
    %c1_147 = arith.constant 1 : index
    %c0_148 = arith.constant 0 : index
    %87 = vector.load %arg10[%c1_146, %c1_147, %c0_148] : memref<10x5x8xf32, #tpu.memory_space<vmem>>, vector<1x4x8xf32>
    %88 = vector.shape_cast %87 : vector<1x4x8xf32> to vector<4x8xf32>
    %89 = vector.shape_cast %86 : vector<4x8xf32> to vector<1x4x8xf32>
    tpu.vector_store %arg10[%c1_146, %c1_147, %c0_148], %89 {strides = array<i32>} : memref<10x5x8xf32, #tpu.memory_space<vmem>>, vector<1x4x8xf32>,
    %c0_149 = arith.constant 0 : index
    %c2_150 = arith.constant 2 : index
    %c0_151 = arith.constant 0 : index
    %c0_152 = arith.constant 0 : index
    %90 = vector.load %arg1[%c0_149, %c2_150, %c0_151, %c0_152] : memref<1x18x5x8xbf16, #tpu.memory_space<vmem>>, vector<1x1x4x8xbf16>
    %91 = vector.shape_cast %90 : vector<1x1x4x8xbf16> to vector<4x8xbf16>
    %c0_153 = arith.constant 0 : index
    %c2_154 = arith.constant 2 : index
    %c0_155 = arith.constant 0 : index
    %c0_156 = arith.constant 0 : index
    %92 = vector.load %arg2[%c0_153, %c2_154, %c0_155, %c0_156] : memref<1x18x5x8xbf16, #tpu.memory_space<vmem>>, vector<1x1x4x8xbf16>
    %93 = vector.shape_cast %92 : vector<1x1x4x8xbf16> to vector<4x8xbf16>
    %c0_157 = arith.constant 0 : index
    %c2_158 = arith.constant 2 : index
    %c0_159 = arith.constant 0 : index
    %c0_160 = arith.constant 0 : index
    %94 = vector.load %arg3[%c0_157, %c2_158, %c0_159, %c0_160] : memref<1x18x4x8xbf16, #tpu.memory_space<vmem>>, vector<1x1x4x8xbf16>
    %95 = vector.shape_cast %94 : vector<1x1x4x8xbf16> to vector<4x8xbf16>
    %c0_161 = arith.constant 0 : index
    %c2_162 = arith.constant 2 : index
    %c0_163 = arith.constant 0 : index
    %c0_164 = arith.constant 0 : index
    %96 = vector.load %arg4[%c0_161, %c2_162, %c0_163, %c0_164] : memref<1x18x4x8xbf16, #tpu.memory_space<vmem>>, vector<1x1x4x8xbf16>
    %97 = vector.shape_cast %96 : vector<1x1x4x8xbf16> to vector<4x8xbf16>
    %c0_165 = arith.constant 0 : index
    %c3_166 = arith.constant 3 : index
    %c0_167 = arith.constant 0 : index
    %c0_168 = arith.constant 0 : index
    %98 = vector.load %arg1[%c0_165, %c3_166, %c0_167, %c0_168] : memref<1x18x5x8xbf16, #tpu.memory_space<vmem>>, vector<1x1x4x8xbf16>
    %99 = vector.shape_cast %98 : vector<1x1x4x8xbf16> to vector<4x8xbf16>
    %c0_169 = arith.constant 0 : index
    %c3_170 = arith.constant 3 : index
    %c0_171 = arith.constant 0 : index
    %c0_172 = arith.constant 0 : index
    %100 = vector.load %arg2[%c0_169, %c3_170, %c0_171, %c0_172] : memref<1x18x5x8xbf16, #tpu.memory_space<vmem>>, vector<1x1x4x8xbf16>
    %101 = vector.shape_cast %100 : vector<1x1x4x8xbf16> to vector<4x8xbf16>
    %c0_173 = arith.constant 0 : index
    %c3_174 = arith.constant 3 : index
    %c0_175 = arith.constant 0 : index
    %c0_176 = arith.constant 0 : index
    %102 = vector.load %arg3[%c0_173, %c3_174, %c0_175, %c0_176] : memref<1x18x4x8xbf16, #tpu.memory_space<vmem>>, vector<1x1x4x8xbf16>
    %103 = vector.shape_cast %102 : vector<1x1x4x8xbf16> to vector<4x8xbf16>
    %c0_177 = arith.constant 0 : index
    %c3_178 = arith.constant 3 : index
    %c0_179 = arith.constant 0 : index
    %c0_180 = arith.constant 0 : index
    %104 = vector.load %arg4[%c0_177, %c3_178, %c0_179, %c0_180] : memref<1x18x4x8xbf16, #tpu.memory_space<vmem>>, vector<1x1x4x8xbf16>
    %105 = vector.shape_cast %104 : vector<1x1x4x8xbf16> to vector<4x8xbf16>
    %c0_181 = arith.constant 0 : index
    %c4 = arith.constant 4 : index
    %c0_182 = arith.constant 0 : index
    %c0_183 = arith.constant 0 : index
    %106 = vector.load %arg1[%c0_181, %c4, %c0_182, %c0_183] : memref<1x18x5x8xbf16, #tpu.memory_space<vmem>>, vector<1x1x4x8xbf16>
    %107 = vector.shape_cast %106 : vector<1x1x4x8xbf16> to vector<4x8xbf16>
    %c0_184 = arith.constant 0 : index
    %c4_185 = arith.constant 4 : index
    %c0_186 = arith.constant 0 : index
    %c0_187 = arith.constant 0 : index
    %108 = vector.load %arg2[%c0_184, %c4_185, %c0_186, %c0_187] : memref<1x18x5x8xbf16, #tpu.memory_space<vmem>>, vector<1x1x4x8xbf16>
    %109 = vector.shape_cast %108 : vector<1x1x4x8xbf16> to vector<4x8xbf16>
    %c0_188 = arith.constant 0 : index
    %c4_189 = arith.constant 4 : index
    %c0_190 = arith.constant 0 : index
    %c0_191 = arith.constant 0 : index
    %110 = vector.load %arg3[%c0_188, %c4_189, %c0_190, %c0_191] : memref<1x18x4x8xbf16, #tpu.memory_space<vmem>>, vector<1x1x4x8xbf16>
    %111 = vector.shape_cast %110 : vector<1x1x4x8xbf16> to vector<4x8xbf16>
    %c0_192 = arith.constant 0 : index
    %c4_193 = arith.constant 4 : index
    %c0_194 = arith.constant 0 : index
    %c0_195 = arith.constant 0 : index
    %112 = vector.load %arg4[%c0_192, %c4_193, %c0_194, %c0_195] : memref<1x18x4x8xbf16, #tpu.memory_space<vmem>>, vector<1x1x4x8xbf16>
    %113 = vector.shape_cast %112 : vector<1x1x4x8xbf16> to vector<4x8xbf16>
    %c0_196 = arith.constant 0 : index
    %c5 = arith.constant 5 : index
    %c0_197 = arith.constant 0 : index
    %c0_198 = arith.constant 0 : index
    %114 = vector.load %arg1[%c0_196, %c5, %c0_197, %c0_198] : memref<1x18x5x8xbf16, #tpu.memory_space<vmem>>, vector<1x1x4x8xbf16>
    %115 = vector.shape_cast %114 : vector<1x1x4x8xbf16> to vector<4x8xbf16>
    %c0_199 = arith.constant 0 : index
    %c5_200 = arith.constant 5 : index
    %c0_201 = arith.constant 0 : index
    %c0_202 = arith.constant 0 : index
    %116 = vector.load %arg2[%c0_199, %c5_200, %c0_201, %c0_202] : memref<1x18x5x8xbf16, #tpu.memory_space<vmem>>, vector<1x1x4x8xbf16>
    %117 = vector.shape_cast %116 : vector<1x1x4x8xbf16> to vector<4x8xbf16>
    %c0_203 = arith.constant 0 : index
    %c5_204 = arith.constant 5 : index
    %c0_205 = arith.constant 0 : index
    %c0_206 = arith.constant 0 : index
    %118 = vector.load %arg3[%c0_203, %c5_204, %c0_205, %c0_206] : memref<1x18x4x8xbf16, #tpu.memory_space<vmem>>, vector<1x1x4x8xbf16>
    %119 = vector.shape_cast %118 : vector<1x1x4x8xbf16> to vector<4x8xbf16>
    %c0_207 = arith.constant 0 : index
    %c5_208 = arith.constant 5 : index
    %c0_209 = arith.constant 0 : index
    %c0_210 = arith.constant 0 : index
    %120 = vector.load %arg4[%c0_207, %c5_208, %c0_209, %c0_210] : memref<1x18x4x8xbf16, #tpu.memory_space<vmem>>, vector<1x1x4x8xbf16>
    %121 = vector.shape_cast %120 : vector<1x1x4x8xbf16> to vector<4x8xbf16>
    %122 = tpu.concatenate %91, %93, %95, %97, %99, %101, %103, %105, %107, %109, %111, %113, %115, %117, %119, %121 in 1 : vector<4x8xbf16>, vector<4x8xbf16>, vector<4x8xbf16>, vector<4x8xbf16>, vector<4x8xbf16>, vector<4x8xbf16>, vector<4x8xbf16>, vector<4x8xbf16>, vector<4x8xbf16>, vector<4x8xbf16>, vector<4x8xbf16>, vector<4x8xbf16>, vector<4x8xbf16>, vector<4x8xbf16>, vector<4x8xbf16>, vector<4x8xbf16> -> vector<4x128xbf16>
    %cst_211 = arith.constant dense<0.000000e+00> : vector<4x8xf32>
    %123 = tpu.matmul %122, %0, %cst_211 {dimension_numbers = #tpu.dot_dimension_numbers<[1], [0], [0], [1], [0, 0, 1, 1], [], []>} : vector<4x128xbf16>, vector<128x8xbf16>, vector<4x8xf32> -> vector<4x8xf32>
    %124 = vector.broadcast %1 : vector<1x8xf32> to vector<4x8xf32>
    %125 = arith.addf %123, %124 : vector<4x8xf32>
    %cst_212 = arith.constant 0.000000e+00 : f32
    %126 = vector.broadcast %cst_212 : f32 to vector<4x8xf32>
    %127 = arith.maximumf %125, %126 : vector<4x8xf32>
    %c2_213 = arith.constant 2 : index
    %c0_214 = arith.constant 0 : index
    %c0_215 = arith.constant 0 : index
    %128 = vector.load %arg11[%c2_213, %c0_214, %c0_215] : memref<10x5x8xf32, #tpu.memory_space<vmem>>, vector<1x4x8xf32>
    %129 = vector.shape_cast %128 : vector<1x4x8xf32> to vector<4x8xf32>
    %130 = vector.shape_cast %127 : vector<4x8xf32> to vector<1x4x8xf32>
    tpu.vector_store %arg11[%c2_213, %c0_214, %c0_215], %130 {strides = array<i32>} : memref<10x5x8xf32, #tpu.memory_space<vmem>>, vector<1x4x8xf32>,
    %c0_216 = arith.constant 0 : index
    %c2_217 = arith.constant 2 : index
    %c0_218 = arith.constant 0 : index
    %c0_219 = arith.constant 0 : index
    %131 = vector.load %arg3[%c0_216, %c2_217, %c0_218, %c0_219] : memref<1x18x4x8xbf16, #tpu.memory_space<vmem>>, vector<1x1x4x8xbf16>
    %132 = vector.shape_cast %131 : vector<1x1x4x8xbf16> to vector<4x8xbf16>
    %c0_220 = arith.constant 0 : index
    %c2_221 = arith.constant 2 : index
    %c0_222 = arith.constant 0 : index
    %c0_223 = arith.constant 0 : index
    %133 = vector.load %arg4[%c0_220, %c2_221, %c0_222, %c0_223] : memref<1x18x4x8xbf16, #tpu.memory_space<vmem>>, vector<1x1x4x8xbf16>
    %134 = vector.shape_cast %133 : vector<1x1x4x8xbf16> to vector<4x8xbf16>
    %c0_224 = arith.constant 0 : index
    %c2_225 = arith.constant 2 : index
    %c1_226 = arith.constant 1 : index
    %c0_227 = arith.constant 0 : index
    %135 = vector.load %arg1[%c0_224, %c2_225, %c1_226, %c0_227] : memref<1x18x5x8xbf16, #tpu.memory_space<vmem>>, vector<1x1x4x8xbf16>
    %136 = vector.shape_cast %135 : vector<1x1x4x8xbf16> to vector<4x8xbf16>
    %c0_228 = arith.constant 0 : index
    %c2_229 = arith.constant 2 : index
    %c1_230 = arith.constant 1 : index
    %c0_231 = arith.constant 0 : index
    %137 = vector.load %arg2[%c0_228, %c2_229, %c1_230, %c0_231] : memref<1x18x5x8xbf16, #tpu.memory_space<vmem>>, vector<1x1x4x8xbf16>
    %138 = vector.shape_cast %137 : vector<1x1x4x8xbf16> to vector<4x8xbf16>
    %c0_232 = arith.constant 0 : index
    %c3_233 = arith.constant 3 : index
    %c0_234 = arith.constant 0 : index
    %c0_235 = arith.constant 0 : index
    %139 = vector.load %arg3[%c0_232, %c3_233, %c0_234, %c0_235] : memref<1x18x4x8xbf16, #tpu.memory_space<vmem>>, vector<1x1x4x8xbf16>
    %140 = vector.shape_cast %139 : vector<1x1x4x8xbf16> to vector<4x8xbf16>
    %c0_236 = arith.constant 0 : index
    %c3_237 = arith.constant 3 : index
    %c0_238 = arith.constant 0 : index
    %c0_239 = arith.constant 0 : index
    %141 = vector.load %arg4[%c0_236, %c3_237, %c0_238, %c0_239] : memref<1x18x4x8xbf16, #tpu.memory_space<vmem>>, vector<1x1x4x8xbf16>
    %142 = vector.shape_cast %141 : vector<1x1x4x8xbf16> to vector<4x8xbf16>
    %c0_240 = arith.constant 0 : index
    %c3_241 = arith.constant 3 : index
    %c1_242 = arith.constant 1 : index
    %c0_243 = arith.constant 0 : index
    %143 = vector.load %arg1[%c0_240, %c3_241, %c1_242, %c0_243] : memref<1x18x5x8xbf16, #tpu.memory_space<vmem>>, vector<1x1x4x8xbf16>
    %144 = vector.shape_cast %143 : vector<1x1x4x8xbf16> to vector<4x8xbf16>
    %c0_244 = arith.constant 0 : index
    %c3_245 = arith.constant 3 : index
    %c1_246 = arith.constant 1 : index
    %c0_247 = arith.constant 0 : index
    %145 = vector.load %arg2[%c0_244, %c3_245, %c1_246, %c0_247] : memref<1x18x5x8xbf16, #tpu.memory_space<vmem>>, vector<1x1x4x8xbf16>
    %146 = vector.shape_cast %145 : vector<1x1x4x8xbf16> to vector<4x8xbf16>
    %c0_248 = arith.constant 0 : index
    %c4_249 = arith.constant 4 : index
    %c0_250 = arith.constant 0 : index
    %c0_251 = arith.constant 0 : index
    %147 = vector.load %arg3[%c0_248, %c4_249, %c0_250, %c0_251] : memref<1x18x4x8xbf16, #tpu.memory_space<vmem>>, vector<1x1x4x8xbf16>
    %148 = vector.shape_cast %147 : vector<1x1x4x8xbf16> to vector<4x8xbf16>
    %c0_252 = arith.constant 0 : index
    %c4_253 = arith.constant 4 : index
    %c0_254 = arith.constant 0 : index
    %c0_255 = arith.constant 0 : index
    %149 = vector.load %arg4[%c0_252, %c4_253, %c0_254, %c0_255] : memref<1x18x4x8xbf16, #tpu.memory_space<vmem>>, vector<1x1x4x8xbf16>
    %150 = vector.shape_cast %149 : vector<1x1x4x8xbf16> to vector<4x8xbf16>
    %c0_256 = arith.constant 0 : index
    %c4_257 = arith.constant 4 : index
    %c1_258 = arith.constant 1 : index
    %c0_259 = arith.constant 0 : index
    %151 = vector.load %arg1[%c0_256, %c4_257, %c1_258, %c0_259] : memref<1x18x5x8xbf16, #tpu.memory_space<vmem>>, vector<1x1x4x8xbf16>
    %152 = vector.shape_cast %151 : vector<1x1x4x8xbf16> to vector<4x8xbf16>
    %c0_260 = arith.constant 0 : index
    %c4_261 = arith.constant 4 : index
    %c1_262 = arith.constant 1 : index
    %c0_263 = arith.constant 0 : index
    %153 = vector.load %arg2[%c0_260, %c4_261, %c1_262, %c0_263] : memref<1x18x5x8xbf16, #tpu.memory_space<vmem>>, vector<1x1x4x8xbf16>
    %154 = vector.shape_cast %153 : vector<1x1x4x8xbf16> to vector<4x8xbf16>
    %c0_264 = arith.constant 0 : index
    %c5_265 = arith.constant 5 : index
    %c0_266 = arith.constant 0 : index
    %c0_267 = arith.constant 0 : index
    %155 = vector.load %arg3[%c0_264, %c5_265, %c0_266, %c0_267] : memref<1x18x4x8xbf16, #tpu.memory_space<vmem>>, vector<1x1x4x8xbf16>
    %156 = vector.shape_cast %155 : vector<1x1x4x8xbf16> to vector<4x8xbf16>
    %c0_268 = arith.constant 0 : index
    %c5_269 = arith.constant 5 : index
    %c0_270 = arith.constant 0 : index
    %c0_271 = arith.constant 0 : index
    %157 = vector.load %arg4[%c0_268, %c5_269, %c0_270, %c0_271] : memref<1x18x4x8xbf16, #tpu.memory_space<vmem>>, vector<1x1x4x8xbf16>
    %158 = vector.shape_cast %157 : vector<1x1x4x8xbf16> to vector<4x8xbf16>
    %c0_272 = arith.constant 0 : index
    %c5_273 = arith.constant 5 : index
    %c1_274 = arith.constant 1 : index
    %c0_275 = arith.constant 0 : index
    %159 = vector.load %arg1[%c0_272, %c5_273, %c1_274, %c0_275] : memref<1x18x5x8xbf16, #tpu.memory_space<vmem>>, vector<1x1x4x8xbf16>
    %160 = vector.shape_cast %159 : vector<1x1x4x8xbf16> to vector<4x8xbf16>
    %c0_276 = arith.constant 0 : index
    %c5_277 = arith.constant 5 : index
    %c1_278 = arith.constant 1 : index
    %c0_279 = arith.constant 0 : index
    %161 = vector.load %arg2[%c0_276, %c5_277, %c1_278, %c0_279] : memref<1x18x5x8xbf16, #tpu.memory_space<vmem>>, vector<1x1x4x8xbf16>
    %162 = vector.shape_cast %161 : vector<1x1x4x8xbf16> to vector<4x8xbf16>
    %163 = tpu.concatenate %132, %134, %136, %138, %140, %142, %144, %146, %148, %150, %152, %154, %156, %158, %160, %162 in 1 : vector<4x8xbf16>, vector<4x8xbf16>, vector<4x8xbf16>, vector<4x8xbf16>, vector<4x8xbf16>, vector<4x8xbf16>, vector<4x8xbf16>, vector<4x8xbf16>, vector<4x8xbf16>, vector<4x8xbf16>, vector<4x8xbf16>, vector<4x8xbf16>, vector<4x8xbf16>, vector<4x8xbf16>, vector<4x8xbf16>, vector<4x8xbf16> -> vector<4x128xbf16>
    %cst_280 = arith.constant dense<0.000000e+00> : vector<4x8xf32>
    %164 = tpu.matmul %163, %0, %cst_280 {dimension_numbers = #tpu.dot_dimension_numbers<[1], [0], [0], [1], [0, 0, 1, 1], [], []>} : vector<4x128xbf16>, vector<128x8xbf16>, vector<4x8xf32> -> vector<4x8xf32>
    %165 = vector.broadcast %1 : vector<1x8xf32> to vector<4x8xf32>
    %166 = arith.addf %164, %165 : vector<4x8xf32>
    %cst_281 = arith.constant 0.000000e+00 : f32
    %167 = vector.broadcast %cst_281 : f32 to vector<4x8xf32>
    %168 = arith.maximumf %166, %167 : vector<4x8xf32>
    %c2_282 = arith.constant 2 : index
    %c1_283 = arith.constant 1 : index
    %c0_284 = arith.constant 0 : index
    %169 = vector.load %arg10[%c2_282, %c1_283, %c0_284] : memref<10x5x8xf32, #tpu.memory_space<vmem>>, vector<1x4x8xf32>
    %170 = vector.shape_cast %169 : vector<1x4x8xf32> to vector<4x8xf32>
    %171 = vector.shape_cast %168 : vector<4x8xf32> to vector<1x4x8xf32>
    tpu.vector_store %arg10[%c2_282, %c1_283, %c0_284], %171 {strides = array<i32>} : memref<10x5x8xf32, #tpu.memory_space<vmem>>, vector<1x4x8xf32>,
    %c0_285 = arith.constant 0 : index
    %c4_286 = arith.constant 4 : index
    %c0_287 = arith.constant 0 : index
    %c0_288 = arith.constant 0 : index
    %172 = vector.load %arg1[%c0_285, %c4_286, %c0_287, %c0_288] : memref<1x18x5x8xbf16, #tpu.memory_space<vmem>>, vector<1x1x4x8xbf16>
    %173 = vector.shape_cast %172 : vector<1x1x4x8xbf16> to vector<4x8xbf16>
    %c0_289 = arith.constant 0 : index
    %c4_290 = arith.constant 4 : index
    %c0_291 = arith.constant 0 : index
    %c0_292 = arith.constant 0 : index
    %174 = vector.load %arg2[%c0_289, %c4_290, %c0_291, %c0_292] : memref<1x18x5x8xbf16, #tpu.memory_space<vmem>>, vector<1x1x4x8xbf16>
    %175 = vector.shape_cast %174 : vector<1x1x4x8xbf16> to vector<4x8xbf16>
    %c0_293 = arith.constant 0 : index
    %c4_294 = arith.constant 4 : index
    %c0_295 = arith.constant 0 : index
    %c0_296 = arith.constant 0 : index
    %176 = vector.load %arg3[%c0_293, %c4_294, %c0_295, %c0_296] : memref<1x18x4x8xbf16, #tpu.memory_space<vmem>>, vector<1x1x4x8xbf16>
    %177 = vector.shape_cast %176 : vector<1x1x4x8xbf16> to vector<4x8xbf16>
    %c0_297 = arith.constant 0 : index
    %c4_298 = arith.constant 4 : index
    %c0_299 = arith.constant 0 : index
    %c0_300 = arith.constant 0 : index
    %178 = vector.load %arg4[%c0_297, %c4_298, %c0_299, %c0_300] : memref<1x18x4x8xbf16, #tpu.memory_space<vmem>>, vector<1x1x4x8xbf16>
    %179 = vector.shape_cast %178 : vector<1x1x4x8xbf16> to vector<4x8xbf16>
    %c0_301 = arith.constant 0 : index
    %c5_302 = arith.constant 5 : index
    %c0_303 = arith.constant 0 : index
    %c0_304 = arith.constant 0 : index
    %180 = vector.load %arg1[%c0_301, %c5_302, %c0_303, %c0_304] : memref<1x18x5x8xbf16, #tpu.memory_space<vmem>>, vector<1x1x4x8xbf16>
    %181 = vector.shape_cast %180 : vector<1x1x4x8xbf16> to vector<4x8xbf16>
    %c0_305 = arith.constant 0 : index
    %c5_306 = arith.constant 5 : index
    %c0_307 = arith.constant 0 : index
    %c0_308 = arith.constant 0 : index
    %182 = vector.load %arg2[%c0_305, %c5_306, %c0_307, %c0_308] : memref<1x18x5x8xbf16, #tpu.memory_space<vmem>>, vector<1x1x4x8xbf16>
    %183 = vector.shape_cast %182 : vector<1x1x4x8xbf16> to vector<4x8xbf16>
    %c0_309 = arith.constant 0 : index
    %c5_310 = arith.constant 5 : index
    %c0_311 = arith.constant 0 : index
    %c0_312 = arith.constant 0 : index
    %184 = vector.load %arg3[%c0_309, %c5_310, %c0_311, %c0_312] : memref<1x18x4x8xbf16, #tpu.memory_space<vmem>>, vector<1x1x4x8xbf16>
    %185 = vector.shape_cast %184 : vector<1x1x4x8xbf16> to vector<4x8xbf16>
    %c0_313 = arith.constant 0 : index
    %c5_314 = arith.constant 5 : index
    %c0_315 = arith.constant 0 : index
    %c0_316 = arith.constant 0 : index
    %186 = vector.load %arg4[%c0_313, %c5_314, %c0_315, %c0_316] : memref<1x18x4x8xbf16, #tpu.memory_space<vmem>>, vector<1x1x4x8xbf16>
    %187 = vector.shape_cast %186 : vector<1x1x4x8xbf16> to vector<4x8xbf16>
    %c0_317 = arith.constant 0 : index
    %c6 = arith.constant 6 : index
    %c0_318 = arith.constant 0 : index
    %c0_319 = arith.constant 0 : index
    %188 = vector.load %arg1[%c0_317, %c6, %c0_318, %c0_319] : memref<1x18x5x8xbf16, #tpu.memory_space<vmem>>, vector<1x1x4x8xbf16>
    %189 = vector.shape_cast %188 : vector<1x1x4x8xbf16> to vector<4x8xbf16>
    %c0_320 = arith.constant 0 : index
    %c6_321 = arith.constant 6 : index
    %c0_322 = arith.constant 0 : index
    %c0_323 = arith.constant 0 : index
    %190 = vector.load %arg2[%c0_320, %c6_321, %c0_322, %c0_323] : memref<1x18x5x8xbf16, #tpu.memory_space<vmem>>, vector<1x1x4x8xbf16>
    %191 = vector.shape_cast %190 : vector<1x1x4x8xbf16> to vector<4x8xbf16>
    %c0_324 = arith.constant 0 : index
    %c6_325 = arith.constant 6 : index
    %c0_326 = arith.constant 0 : index
    %c0_327 = arith.constant 0 : index
    %192 = vector.load %arg3[%c0_324, %c6_325, %c0_326, %c0_327] : memref<1x18x4x8xbf16, #tpu.memory_space<vmem>>, vector<1x1x4x8xbf16>
    %193 = vector.shape_cast %192 : vector<1x1x4x8xbf16> to vector<4x8xbf16>
    %c0_328 = arith.constant 0 : index
    %c6_329 = arith.constant 6 : index
    %c0_330 = arith.constant 0 : index
    %c0_331 = arith.constant 0 : index
    %194 = vector.load %arg4[%c0_328, %c6_329, %c0_330, %c0_331] : memref<1x18x4x8xbf16, #tpu.memory_space<vmem>>, vector<1x1x4x8xbf16>
    %195 = vector.shape_cast %194 : vector<1x1x4x8xbf16> to vector<4x8xbf16>
    %c0_332 = arith.constant 0 : index
    %c7 = arith.constant 7 : index
    %c0_333 = arith.constant 0 : index
    %c0_334 = arith.constant 0 : index
    %196 = vector.load %arg1[%c0_332, %c7, %c0_333, %c0_334] : memref<1x18x5x8xbf16, #tpu.memory_space<vmem>>, vector<1x1x4x8xbf16>
    %197 = vector.shape_cast %196 : vector<1x1x4x8xbf16> to vector<4x8xbf16>
    %c0_335 = arith.constant 0 : index
    %c7_336 = arith.constant 7 : index
    %c0_337 = arith.constant 0 : index
    %c0_338 = arith.constant 0 : index
    %198 = vector.load %arg2[%c0_335, %c7_336, %c0_337, %c0_338] : memref<1x18x5x8xbf16, #tpu.memory_space<vmem>>, vector<1x1x4x8xbf16>
    %199 = vector.shape_cast %198 : vector<1x1x4x8xbf16> to vector<4x8xbf16>
    %c0_339 = arith.constant 0 : index
    %c7_340 = arith.constant 7 : index
    %c0_341 = arith.constant 0 : index
    %c0_342 = arith.constant 0 : index
    %200 = vector.load %arg3[%c0_339, %c7_340, %c0_341, %c0_342] : memref<1x18x4x8xbf16, #tpu.memory_space<vmem>>, vector<1x1x4x8xbf16>
    %201 = vector.shape_cast %200 : vector<1x1x4x8xbf16> to vector<4x8xbf16>
    %c0_343 = arith.constant 0 : index
    %c7_344 = arith.constant 7 : index
    %c0_345 = arith.constant 0 : index
    %c0_346 = arith.constant 0 : index
    %202 = vector.load %arg4[%c0_343, %c7_344, %c0_345, %c0_346] : memref<1x18x4x8xbf16, #tpu.memory_space<vmem>>, vector<1x1x4x8xbf16>
    %203 = vector.shape_cast %202 : vector<1x1x4x8xbf16> to vector<4x8xbf16>
    %204 = tpu.concatenate %173, %175, %177, %179, %181, %183, %185, %187, %189, %191, %193, %195, %197, %199, %201, %203 in 1 : vector<4x8xbf16>, vector<4x8xbf16>, vector<4x8xbf16>, vector<4x8xbf16>, vector<4x8xbf16>, vector<4x8xbf16>, vector<4x8xbf16>, vector<4x8xbf16>, vector<4x8xbf16>, vector<4x8xbf16>, vector<4x8xbf16>, vector<4x8xbf16>, vector<4x8xbf16>, vector<4x8xbf16>, vector<4x8xbf16>, vector<4x8xbf16> -> vector<4x128xbf16>
    %cst_347 = arith.constant dense<0.000000e+00> : vector<4x8xf32>
    %205 = tpu.matmul %204, %0, %cst_347 {dimension_numbers = #tpu.dot_dimension_numbers<[1], [0], [0], [1], [0, 0, 1, 1], [], []>} : vector<4x128xbf16>, vector<128x8xbf16>, vector<4x8xf32> -> vector<4x8xf32>
    %206 = vector.broadcast %1 : vector<1x8xf32> to vector<4x8xf32>
    %207 = arith.addf %205, %206 : vector<4x8xf32>
    %cst_348 = arith.constant 0.000000e+00 : f32
    %208 = vector.broadcast %cst_348 : f32 to vector<4x8xf32>
    %209 = arith.maximumf %207, %208 : vector<4x8xf32>
    %c3_349 = arith.constant 3 : index
    %c0_350 = arith.constant 0 : index
    %c0_351 = arith.constant 0 : index
    %210 = vector.load %arg11[%c3_349, %c0_350, %c0_351] : memref<10x5x8xf32, #tpu.memory_space<vmem>>, vector<1x4x8xf32>
    %211 = vector.shape_cast %210 : vector<1x4x8xf32> to vector<4x8xf32>
    %212 = vector.shape_cast %209 : vector<4x8xf32> to vector<1x4x8xf32>
    tpu.vector_store %arg11[%c3_349, %c0_350, %c0_351], %212 {strides = array<i32>} : memref<10x5x8xf32, #tpu.memory_space<vmem>>, vector<1x4x8xf32>,
    %c0_352 = arith.constant 0 : index
    %c4_353 = arith.constant 4 : index
    %c0_354 = arith.constant 0 : index
    %c0_355 = arith.constant 0 : index
    %213 = vector.load %arg3[%c0_352, %c4_353, %c0_354, %c0_355] : memref<1x18x4x8xbf16, #tpu.memory_space<vmem>>, vector<1x1x4x8xbf16>
    %214 = vector.shape_cast %213 : vector<1x1x4x8xbf16> to vector<4x8xbf16>
    %c0_356 = arith.constant 0 : index
    %c4_357 = arith.constant 4 : index
    %c0_358 = arith.constant 0 : index
    %c0_359 = arith.constant 0 : index
    %215 = vector.load %arg4[%c0_356, %c4_357, %c0_358, %c0_359] : memref<1x18x4x8xbf16, #tpu.memory_space<vmem>>, vector<1x1x4x8xbf16>
    %216 = vector.shape_cast %215 : vector<1x1x4x8xbf16> to vector<4x8xbf16>
    %c0_360 = arith.constant 0 : index
    %c4_361 = arith.constant 4 : index
    %c1_362 = arith.constant 1 : index
    %c0_363 = arith.constant 0 : index
    %217 = vector.load %arg1[%c0_360, %c4_361, %c1_362, %c0_363] : memref<1x18x5x8xbf16, #tpu.memory_space<vmem>>, vector<1x1x4x8xbf16>
    %218 = vector.shape_cast %217 : vector<1x1x4x8xbf16> to vector<4x8xbf16>
    %c0_364 = arith.constant 0 : index
    %c4_365 = arith.constant 4 : index
    %c1_366 = arith.constant 1 : index
    %c0_367 = arith.constant 0 : index
    %219 = vector.load %arg2[%c0_364, %c4_365, %c1_366, %c0_367] : memref<1x18x5x8xbf16, #tpu.memory_space<vmem>>, vector<1x1x4x8xbf16>
    %220 = vector.shape_cast %219 : vector<1x1x4x8xbf16> to vector<4x8xbf16>
    %c0_368 = arith.constant 0 : index
    %c5_369 = arith.constant 5 : index
    %c0_370 = arith.constant 0 : index
    %c0_371 = arith.constant 0 : index
    %221 = vector.load %arg3[%c0_368, %c5_369, %c0_370, %c0_371] : memref<1x18x4x8xbf16, #tpu.memory_space<vmem>>, vector<1x1x4x8xbf16>
    %222 = vector.shape_cast %221 : vector<1x1x4x8xbf16> to vector<4x8xbf16>
    %c0_372 = arith.constant 0 : index
    %c5_373 = arith.constant 5 : index
    %c0_374 = arith.constant 0 : index
    %c0_375 = arith.constant 0 : index
    %223 = vector.load %arg4[%c0_372, %c5_373, %c0_374, %c0_375] : memref<1x18x4x8xbf16, #tpu.memory_space<vmem>>, vector<1x1x4x8xbf16>
    %224 = vector.shape_cast %223 : vector<1x1x4x8xbf16> to vector<4x8xbf16>
    %c0_376 = arith.constant 0 : index
    %c5_377 = arith.constant 5 : index
    %c1_378 = arith.constant 1 : index
    %c0_379 = arith.constant 0 : index
    %225 = vector.load %arg1[%c0_376, %c5_377, %c1_378, %c0_379] : memref<1x18x5x8xbf16, #tpu.memory_space<vmem>>, vector<1x1x4x8xbf16>
    %226 = vector.shape_cast %225 : vector<1x1x4x8xbf16> to vector<4x8xbf16>
    %c0_380 = arith.constant 0 : index
    %c5_381 = arith.constant 5 : index
    %c1_382 = arith.constant 1 : index
    %c0_383 = arith.constant 0 : index
    %227 = vector.load %arg2[%c0_380, %c5_381, %c1_382, %c0_383] : memref<1x18x5x8xbf16, #tpu.memory_space<vmem>>, vector<1x1x4x8xbf16>
    %228 = vector.shape_cast %227 : vector<1x1x4x8xbf16> to vector<4x8xbf16>
    %c0_384 = arith.constant 0 : index
    %c6_385 = arith.constant 6 : index
    %c0_386 = arith.constant 0 : index
    %c0_387 = arith.constant 0 : index
    %229 = vector.load %arg3[%c0_384, %c6_385, %c0_386, %c0_387] : memref<1x18x4x8xbf16, #tpu.memory_space<vmem>>, vector<1x1x4x8xbf16>
    %230 = vector.shape_cast %229 : vector<1x1x4x8xbf16> to vector<4x8xbf16>
    %c0_388 = arith.constant 0 : index
    %c6_389 = arith.constant 6 : index
    %c0_390 = arith.constant 0 : index
    %c0_391 = arith.constant 0 : index
    %231 = vector.load %arg4[%c0_388, %c6_389, %c0_390, %c0_391] : memref<1x18x4x8xbf16, #tpu.memory_space<vmem>>, vector<1x1x4x8xbf16>
    %232 = vector.shape_cast %231 : vector<1x1x4x8xbf16> to vector<4x8xbf16>
    %c0_392 = arith.constant 0 : index
    %c6_393 = arith.constant 6 : index
    %c1_394 = arith.constant 1 : index
    %c0_395 = arith.constant 0 : index
    %233 = vector.load %arg1[%c0_392, %c6_393, %c1_394, %c0_395] : memref<1x18x5x8xbf16, #tpu.memory_space<vmem>>, vector<1x1x4x8xbf16>
    %234 = vector.shape_cast %233 : vector<1x1x4x8xbf16> to vector<4x8xbf16>
    %c0_396 = arith.constant 0 : index
    %c6_397 = arith.constant 6 : index
    %c1_398 = arith.constant 1 : index
    %c0_399 = arith.constant 0 : index
    %235 = vector.load %arg2[%c0_396, %c6_397, %c1_398, %c0_399] : memref<1x18x5x8xbf16, #tpu.memory_space<vmem>>, vector<1x1x4x8xbf16>
    %236 = vector.shape_cast %235 : vector<1x1x4x8xbf16> to vector<4x8xbf16>
    %c0_400 = arith.constant 0 : index
    %c7_401 = arith.constant 7 : index
    %c0_402 = arith.constant 0 : index
    %c0_403 = arith.constant 0 : index
    %237 = vector.load %arg3[%c0_400, %c7_401, %c0_402, %c0_403] : memref<1x18x4x8xbf16, #tpu.memory_space<vmem>>, vector<1x1x4x8xbf16>
    %238 = vector.shape_cast %237 : vector<1x1x4x8xbf16> to vector<4x8xbf16>
    %c0_404 = arith.constant 0 : index
    %c7_405 = arith.constant 7 : index
    %c0_406 = arith.constant 0 : index
    %c0_407 = arith.constant 0 : index
    %239 = vector.load %arg4[%c0_404, %c7_405, %c0_406, %c0_407] : memref<1x18x4x8xbf16, #tpu.memory_space<vmem>>, vector<1x1x4x8xbf16>
    %240 = vector.shape_cast %239 : vector<1x1x4x8xbf16> to vector<4x8xbf16>
    %c0_408 = arith.constant 0 : index
    %c7_409 = arith.constant 7 : index
    %c1_410 = arith.constant 1 : index
    %c0_411 = arith.constant 0 : index
    %241 = vector.load %arg1[%c0_408, %c7_409, %c1_410, %c0_411] : memref<1x18x5x8xbf16, #tpu.memory_space<vmem>>, vector<1x1x4x8xbf16>
    %242 = vector.shape_cast %241 : vector<1x1x4x8xbf16> to vector<4x8xbf16>
    %c0_412 = arith.constant 0 : index
    %c7_413 = arith.constant 7 : index
    %c1_414 = arith.constant 1 : index
    %c0_415 = arith.constant 0 : index
    %243 = vector.load %arg2[%c0_412, %c7_413, %c1_414, %c0_415] : memref<1x18x5x8xbf16, #tpu.memory_space<vmem>>, vector<1x1x4x8xbf16>
    %244 = vector.shape_cast %243 : vector<1x1x4x8xbf16> to vector<4x8xbf16>
    %245 = tpu.concatenate %214, %216, %218, %220, %222, %224, %226, %228, %230, %232, %234, %236, %238, %240, %242, %244 in 1 : vector<4x8xbf16>, vector<4x8xbf16>, vector<4x8xbf16>, vector<4x8xbf16>, vector<4x8xbf16>, vector<4x8xbf16>, vector<4x8xbf16>, vector<4x8xbf16>, vector<4x8xbf16>, vector<4x8xbf16>, vector<4x8xbf16>, vector<4x8xbf16>, vector<4x8xbf16>, vector<4x8xbf16>, vector<4x8xbf16>, vector<4x8xbf16> -> vector<4x128xbf16>
    %cst_416 = arith.constant dense<0.000000e+00> : vector<4x8xf32>
    %246 = tpu.matmul %245, %0, %cst_416 {dimension_numbers = #tpu.dot_dimension_numbers<[1], [0], [0], [1], [0, 0, 1, 1], [], []>} : vector<4x128xbf16>, vector<128x8xbf16>, vector<4x8xf32> -> vector<4x8xf32>
    %247 = vector.broadcast %1 : vector<1x8xf32> to vector<4x8xf32>
    %248 = arith.addf %246, %247 : vector<4x8xf32>
    %cst_417 = arith.constant 0.000000e+00 : f32
    %249 = vector.broadcast %cst_417 : f32 to vector<4x8xf32>
    %250 = arith.maximumf %248, %249 : vector<4x8xf32>
    %c3_418 = arith.constant 3 : index
    %c1_419 = arith.constant 1 : index
    %c0_420 = arith.constant 0 : index
    %251 = vector.load %arg10[%c3_418, %c1_419, %c0_420] : memref<10x5x8xf32, #tpu.memory_space<vmem>>, vector<1x4x8xf32>
    %252 = vector.shape_cast %251 : vector<1x4x8xf32> to vector<4x8xf32>
    %253 = vector.shape_cast %250 : vector<4x8xf32> to vector<1x4x8xf32>
    tpu.vector_store %arg10[%c3_418, %c1_419, %c0_420], %253 {strides = array<i32>} : memref<10x5x8xf32, #tpu.memory_space<vmem>>, vector<1x4x8xf32>,
    %c0_421 = arith.constant 0 : index
    %c6_422 = arith.constant 6 : index
    %c0_423 = arith.constant 0 : index
    %c0_424 = arith.constant 0 : index
    %254 = vector.load %arg1[%c0_421, %c6_422, %c0_423, %c0_424] : memref<1x18x5x8xbf16, #tpu.memory_space<vmem>>, vector<1x1x4x8xbf16>
    %255 = vector.shape_cast %254 : vector<1x1x4x8xbf16> to vector<4x8xbf16>
    %c0_425 = arith.constant 0 : index
    %c6_426 = arith.constant 6 : index
    %c0_427 = arith.constant 0 : index
    %c0_428 = arith.constant 0 : index
    %256 = vector.load %arg2[%c0_425, %c6_426, %c0_427, %c0_428] : memref<1x18x5x8xbf16, #tpu.memory_space<vmem>>, vector<1x1x4x8xbf16>
    %257 = vector.shape_cast %256 : vector<1x1x4x8xbf16> to vector<4x8xbf16>
    %c0_429 = arith.constant 0 : index
    %c6_430 = arith.constant 6 : index
    %c0_431 = arith.constant 0 : index
    %c0_432 = arith.constant 0 : index
    %258 = vector.load %arg3[%c0_429, %c6_430, %c0_431, %c0_432] : memref<1x18x4x8xbf16, #tpu.memory_space<vmem>>, vector<1x1x4x8xbf16>
    %259 = vector.shape_cast %258 : vector<1x1x4x8xbf16> to vector<4x8xbf16>
    %c0_433 = arith.constant 0 : index
    %c6_434 = arith.constant 6 : index
    %c0_435 = arith.constant 0 : index
    %c0_436 = arith.constant 0 : index
    %260 = vector.load %arg4[%c0_433, %c6_434, %c0_435, %c0_436] : memref<1x18x4x8xbf16, #tpu.memory_space<vmem>>, vector<1x1x4x8xbf16>
    %261 = vector.shape_cast %260 : vector<1x1x4x8xbf16> to vector<4x8xbf16>
    %c0_437 = arith.constant 0 : index
    %c7_438 = arith.constant 7 : index
    %c0_439 = arith.constant 0 : index
    %c0_440 = arith.constant 0 : index
    %262 = vector.load %arg1[%c0_437, %c7_438, %c0_439, %c0_440] : memref<1x18x5x8xbf16, #tpu.memory_space<vmem>>, vector<1x1x4x8xbf16>
    %263 = vector.shape_cast %262 : vector<1x1x4x8xbf16> to vector<4x8xbf16>
    %c0_441 = arith.constant 0 : index
    %c7_442 = arith.constant 7 : index
    %c0_443 = arith.constant 0 : index
    %c0_444 = arith.constant 0 : index
    %264 = vector.load %arg2[%c0_441, %c7_442, %c0_443, %c0_444] : memref<1x18x5x8xbf16, #tpu.memory_space<vmem>>, vector<1x1x4x8xbf16>
    %265 = vector.shape_cast %264 : vector<1x1x4x8xbf16> to vector<4x8xbf16>
    %c0_445 = arith.constant 0 : index
    %c7_446 = arith.constant 7 : index
    %c0_447 = arith.constant 0 : index
    %c0_448 = arith.constant 0 : index
    %266 = vector.load %arg3[%c0_445, %c7_446, %c0_447, %c0_448] : memref<1x18x4x8xbf16, #tpu.memory_space<vmem>>, vector<1x1x4x8xbf16>
    %267 = vector.shape_cast %266 : vector<1x1x4x8xbf16> to vector<4x8xbf16>
    %c0_449 = arith.constant 0 : index
    %c7_450 = arith.constant 7 : index
    %c0_451 = arith.constant 0 : index
    %c0_452 = arith.constant 0 : index
    %268 = vector.load %arg4[%c0_449, %c7_450, %c0_451, %c0_452] : memref<1x18x4x8xbf16, #tpu.memory_space<vmem>>, vector<1x1x4x8xbf16>
    %269 = vector.shape_cast %268 : vector<1x1x4x8xbf16> to vector<4x8xbf16>
    %c0_453 = arith.constant 0 : index
    %c8 = arith.constant 8 : index
    %c0_454 = arith.constant 0 : index
    %c0_455 = arith.constant 0 : index
    %270 = vector.load %arg1[%c0_453, %c8, %c0_454, %c0_455] : memref<1x18x5x8xbf16, #tpu.memory_space<vmem>>, vector<1x1x4x8xbf16>
    %271 = vector.shape_cast %270 : vector<1x1x4x8xbf16> to vector<4x8xbf16>
    %c0_456 = arith.constant 0 : index
    %c8_457 = arith.constant 8 : index
    %c0_458 = arith.constant 0 : index
    %c0_459 = arith.constant 0 : index
    %272 = vector.load %arg2[%c0_456, %c8_457, %c0_458, %c0_459] : memref<1x18x5x8xbf16, #tpu.memory_space<vmem>>, vector<1x1x4x8xbf16>
    %273 = vector.shape_cast %272 : vector<1x1x4x8xbf16> to vector<4x8xbf16>
    %c0_460 = arith.constant 0 : index
    %c8_461 = arith.constant 8 : index
    %c0_462 = arith.constant 0 : index
    %c0_463 = arith.constant 0 : index
    %274 = vector.load %arg3[%c0_460, %c8_461, %c0_462, %c0_463] : memref<1x18x4x8xbf16, #tpu.memory_space<vmem>>, vector<1x1x4x8xbf16>
    %275 = vector.shape_cast %274 : vector<1x1x4x8xbf16> to vector<4x8xbf16>
    %c0_464 = arith.constant 0 : index
    %c8_465 = arith.constant 8 : index
    %c0_466 = arith.constant 0 : index
    %c0_467 = arith.constant 0 : index
    %276 = vector.load %arg4[%c0_464, %c8_465, %c0_466, %c0_467] : memref<1x18x4x8xbf16, #tpu.memory_space<vmem>>, vector<1x1x4x8xbf16>
    %277 = vector.shape_cast %276 : vector<1x1x4x8xbf16> to vector<4x8xbf16>
    %c0_468 = arith.constant 0 : index
    %c9 = arith.constant 9 : index
    %c0_469 = arith.constant 0 : index
    %c0_470 = arith.constant 0 : index
    %278 = vector.load %arg1[%c0_468, %c9, %c0_469, %c0_470] : memref<1x18x5x8xbf16, #tpu.memory_space<vmem>>, vector<1x1x4x8xbf16>
    %279 = vector.shape_cast %278 : vector<1x1x4x8xbf16> to vector<4x8xbf16>
    %c0_471 = arith.constant 0 : index
    %c9_472 = arith.constant 9 : index
    %c0_473 = arith.constant 0 : index
    %c0_474 = arith.constant 0 : index
    %280 = vector.load %arg2[%c0_471, %c9_472, %c0_473, %c0_474] : memref<1x18x5x8xbf16, #tpu.memory_space<vmem>>, vector<1x1x4x8xbf16>
    %281 = vector.shape_cast %280 : vector<1x1x4x8xbf16> to vector<4x8xbf16>
    %c0_475 = arith.constant 0 : index
    %c9_476 = arith.constant 9 : index
    %c0_477 = arith.constant 0 : index
    %c0_478 = arith.constant 0 : index
    %282 = vector.load %arg3[%c0_475, %c9_476, %c0_477, %c0_478] : memref<1x18x4x8xbf16, #tpu.memory_space<vmem>>, vector<1x1x4x8xbf16>
    %283 = vector.shape_cast %282 : vector<1x1x4x8xbf16> to vector<4x8xbf16>
    %c0_479 = arith.constant 0 : index
    %c9_480 = arith.constant 9 : index
    %c0_481 = arith.constant 0 : index
    %c0_482 = arith.constant 0 : index
    %284 = vector.load %arg4[%c0_479, %c9_480, %c0_481, %c0_482] : memref<1x18x4x8xbf16, #tpu.memory_space<vmem>>, vector<1x1x4x8xbf16>
    %285 = vector.shape_cast %284 : vector<1x1x4x8xbf16> to vector<4x8xbf16>
    %286 = tpu.concatenate %255, %257, %259, %261, %263, %265, %267, %269, %271, %273, %275, %277, %279, %281, %283, %285 in 1 : vector<4x8xbf16>, vector<4x8xbf16>, vector<4x8xbf16>, vector<4x8xbf16>, vector<4x8xbf16>, vector<4x8xbf16>, vector<4x8xbf16>, vector<4x8xbf16>, vector<4x8xbf16>, vector<4x8xbf16>, vector<4x8xbf16>, vector<4x8xbf16>, vector<4x8xbf16>, vector<4x8xbf16>, vector<4x8xbf16>, vector<4x8xbf16> -> vector<4x128xbf16>
    %cst_483 = arith.constant dense<0.000000e+00> : vector<4x8xf32>
    %287 = tpu.matmul %286, %0, %cst_483 {dimension_numbers = #tpu.dot_dimension_numbers<[1], [0], [0], [1], [0, 0, 1, 1], [], []>} : vector<4x128xbf16>, vector<128x8xbf16>, vector<4x8xf32> -> vector<4x8xf32>
    %288 = vector.broadcast %1 : vector<1x8xf32> to vector<4x8xf32>
    %289 = arith.addf %287, %288 : vector<4x8xf32>
    %cst_484 = arith.constant 0.000000e+00 : f32
    %290 = vector.broadcast %cst_484 : f32 to vector<4x8xf32>
    %291 = arith.maximumf %289, %290 : vector<4x8xf32>
    %c4_485 = arith.constant 4 : index
    %c0_486 = arith.constant 0 : index
    %c0_487 = arith.constant 0 : index
    %292 = vector.load %arg11[%c4_485, %c0_486, %c0_487] : memref<10x5x8xf32, #tpu.memory_space<vmem>>, vector<1x4x8xf32>
    %293 = vector.shape_cast %292 : vector<1x4x8xf32> to vector<4x8xf32>
    %294 = vector.shape_cast %291 : vector<4x8xf32> to vector<1x4x8xf32>
    tpu.vector_store %arg11[%c4_485, %c0_486, %c0_487], %294 {strides = array<i32>} : memref<10x5x8xf32, #tpu.memory_space<vmem>>, vector<1x4x8xf32>,
    %c0_488 = arith.constant 0 : index
    %c6_489 = arith.constant 6 : index
    %c0_490 = arith.constant 0 : index
    %c0_491 = arith.constant 0 : index
    %295 = vector.load %arg3[%c0_488, %c6_489, %c0_490, %c0_491] : memref<1x18x4x8xbf16, #tpu.memory_space<vmem>>, vector<1x1x4x8xbf16>
    %296 = vector.shape_cast %295 : vector<1x1x4x8xbf16> to vector<4x8xbf16>
    %c0_492 = arith.constant 0 : index
    %c6_493 = arith.constant 6 : index
    %c0_494 = arith.constant 0 : index
    %c0_495 = arith.constant 0 : index
    %297 = vector.load %arg4[%c0_492, %c6_493, %c0_494, %c0_495] : memref<1x18x4x8xbf16, #tpu.memory_space<vmem>>, vector<1x1x4x8xbf16>
    %298 = vector.shape_cast %297 : vector<1x1x4x8xbf16> to vector<4x8xbf16>
    %c0_496 = arith.constant 0 : index
    %c6_497 = arith.constant 6 : index
    %c1_498 = arith.constant 1 : index
    %c0_499 = arith.constant 0 : index
    %299 = vector.load %arg1[%c0_496, %c6_497, %c1_498, %c0_499] : memref<1x18x5x8xbf16, #tpu.memory_space<vmem>>, vector<1x1x4x8xbf16>
    %300 = vector.shape_cast %299 : vector<1x1x4x8xbf16> to vector<4x8xbf16>
    %c0_500 = arith.constant 0 : index
    %c6_501 = arith.constant 6 : index
    %c1_502 = arith.constant 1 : index
    %c0_503 = arith.constant 0 : index
    %301 = vector.load %arg2[%c0_500, %c6_501, %c1_502, %c0_503] : memref<1x18x5x8xbf16, #tpu.memory_space<vmem>>, vector<1x1x4x8xbf16>
    %302 = vector.shape_cast %301 : vector<1x1x4x8xbf16> to vector<4x8xbf16>
    %c0_504 = arith.constant 0 : index
    %c7_505 = arith.constant 7 : index
    %c0_506 = arith.constant 0 : index
    %c0_507 = arith.constant 0 : index
    %303 = vector.load %arg3[%c0_504, %c7_505, %c0_506, %c0_507] : memref<1x18x4x8xbf16, #tpu.memory_space<vmem>>, vector<1x1x4x8xbf16>
    %304 = vector.shape_cast %303 : vector<1x1x4x8xbf16> to vector<4x8xbf16>
    %c0_508 = arith.constant 0 : index
    %c7_509 = arith.constant 7 : index
    %c0_510 = arith.constant 0 : index
    %c0_511 = arith.constant 0 : index
    %305 = vector.load %arg4[%c0_508, %c7_509, %c0_510, %c0_511] : memref<1x18x4x8xbf16, #tpu.memory_space<vmem>>, vector<1x1x4x8xbf16>
    %306 = vector.shape_cast %305 : vector<1x1x4x8xbf16> to vector<4x8xbf16>
    %c0_512 = arith.constant 0 : index
    %c7_513 = arith.constant 7 : index
    %c1_514 = arith.constant 1 : index
    %c0_515 = arith.constant 0 : index
    %307 = vector.load %arg1[%c0_512, %c7_513, %c1_514, %c0_515] : memref<1x18x5x8xbf16, #tpu.memory_space<vmem>>, vector<1x1x4x8xbf16>
    %308 = vector.shape_cast %307 : vector<1x1x4x8xbf16> to vector<4x8xbf16>
    %c0_516 = arith.constant 0 : index
    %c7_517 = arith.constant 7 : index
    %c1_518 = arith.constant 1 : index
    %c0_519 = arith.constant 0 : index
    %309 = vector.load %arg2[%c0_516, %c7_517, %c1_518, %c0_519] : memref<1x18x5x8xbf16, #tpu.memory_space<vmem>>, vector<1x1x4x8xbf16>
    %310 = vector.shape_cast %309 : vector<1x1x4x8xbf16> to vector<4x8xbf16>
    %c0_520 = arith.constant 0 : index
    %c8_521 = arith.constant 8 : index
    %c0_522 = arith.constant 0 : index
    %c0_523 = arith.constant 0 : index
    %311 = vector.load %arg3[%c0_520, %c8_521, %c0_522, %c0_523] : memref<1x18x4x8xbf16, #tpu.memory_space<vmem>>, vector<1x1x4x8xbf16>
    %312 = vector.shape_cast %311 : vector<1x1x4x8xbf16> to vector<4x8xbf16>
    %c0_524 = arith.constant 0 : index
    %c8_525 = arith.constant 8 : index
    %c0_526 = arith.constant 0 : index
    %c0_527 = arith.constant 0 : index
    %313 = vector.load %arg4[%c0_524, %c8_525, %c0_526, %c0_527] : memref<1x18x4x8xbf16, #tpu.memory_space<vmem>>, vector<1x1x4x8xbf16>
    %314 = vector.shape_cast %313 : vector<1x1x4x8xbf16> to vector<4x8xbf16>
    %c0_528 = arith.constant 0 : index
    %c8_529 = arith.constant 8 : index
    %c1_530 = arith.constant 1 : index
    %c0_531 = arith.constant 0 : index
    %315 = vector.load %arg1[%c0_528, %c8_529, %c1_530, %c0_531] : memref<1x18x5x8xbf16, #tpu.memory_space<vmem>>, vector<1x1x4x8xbf16>
    %316 = vector.shape_cast %315 : vector<1x1x4x8xbf16> to vector<4x8xbf16>
    %c0_532 = arith.constant 0 : index
    %c8_533 = arith.constant 8 : index
    %c1_534 = arith.constant 1 : index
    %c0_535 = arith.constant 0 : index
    %317 = vector.load %arg2[%c0_532, %c8_533, %c1_534, %c0_535] : memref<1x18x5x8xbf16, #tpu.memory_space<vmem>>, vector<1x1x4x8xbf16>
    %318 = vector.shape_cast %317 : vector<1x1x4x8xbf16> to vector<4x8xbf16>
    %c0_536 = arith.constant 0 : index
    %c9_537 = arith.constant 9 : index
    %c0_538 = arith.constant 0 : index
    %c0_539 = arith.constant 0 : index
    %319 = vector.load %arg3[%c0_536, %c9_537, %c0_538, %c0_539] : memref<1x18x4x8xbf16, #tpu.memory_space<vmem>>, vector<1x1x4x8xbf16>
    %320 = vector.shape_cast %319 : vector<1x1x4x8xbf16> to vector<4x8xbf16>
    %c0_540 = arith.constant 0 : index
    %c9_541 = arith.constant 9 : index
    %c0_542 = arith.constant 0 : index
    %c0_543 = arith.constant 0 : index
    %321 = vector.load %arg4[%c0_540, %c9_541, %c0_542, %c0_543] : memref<1x18x4x8xbf16, #tpu.memory_space<vmem>>, vector<1x1x4x8xbf16>
    %322 = vector.shape_cast %321 : vector<1x1x4x8xbf16> to vector<4x8xbf16>
    %c0_544 = arith.constant 0 : index
    %c9_545 = arith.constant 9 : index
    %c1_546 = arith.constant 1 : index
    %c0_547 = arith.constant 0 : index
    %323 = vector.load %arg1[%c0_544, %c9_545, %c1_546, %c0_547] : memref<1x18x5x8xbf16, #tpu.memory_space<vmem>>, vector<1x1x4x8xbf16>
    %324 = vector.shape_cast %323 : vector<1x1x4x8xbf16> to vector<4x8xbf16>
    %c0_548 = arith.constant 0 : index
    %c9_549 = arith.constant 9 : index
    %c1_550 = arith.constant 1 : index
    %c0_551 = arith.constant 0 : index
    %325 = vector.load %arg2[%c0_548, %c9_549, %c1_550, %c0_551] : memref<1x18x5x8xbf16, #tpu.memory_space<vmem>>, vector<1x1x4x8xbf16>
    %326 = vector.shape_cast %325 : vector<1x1x4x8xbf16> to vector<4x8xbf16>
    %327 = tpu.concatenate %296, %298, %300, %302, %304, %306, %308, %310, %312, %314, %316, %318, %320, %322, %324, %326 in 1 : vector<4x8xbf16>, vector<4x8xbf16>, vector<4x8xbf16>, vector<4x8xbf16>, vector<4x8xbf16>, vector<4x8xbf16>, vector<4x8xbf16>, vector<4x8xbf16>, vector<4x8xbf16>, vector<4x8xbf16>, vector<4x8xbf16>, vector<4x8xbf16>, vector<4x8xbf16>, vector<4x8xbf16>, vector<4x8xbf16>, vector<4x8xbf16> -> vector<4x128xbf16>
    %cst_552 = arith.constant dense<0.000000e+00> : vector<4x8xf32>
    %328 = tpu.matmul %327, %0, %cst_552 {dimension_numbers = #tpu.dot_dimension_numbers<[1], [0], [0], [1], [0, 0, 1, 1], [], []>} : vector<4x128xbf16>, vector<128x8xbf16>, vector<4x8xf32> -> vector<4x8xf32>
    %329 = vector.broadcast %1 : vector<1x8xf32> to vector<4x8xf32>
    %330 = arith.addf %328, %329 : vector<4x8xf32>
    %cst_553 = arith.constant 0.000000e+00 : f32
    %331 = vector.broadcast %cst_553 : f32 to vector<4x8xf32>
    %332 = arith.maximumf %330, %331 : vector<4x8xf32>
    %c4_554 = arith.constant 4 : index
    %c1_555 = arith.constant 1 : index
    %c0_556 = arith.constant 0 : index
    %333 = vector.load %arg10[%c4_554, %c1_555, %c0_556] : memref<10x5x8xf32, #tpu.memory_space<vmem>>, vector<1x4x8xf32>
    %334 = vector.shape_cast %333 : vector<1x4x8xf32> to vector<4x8xf32>
    %335 = vector.shape_cast %332 : vector<4x8xf32> to vector<1x4x8xf32>
    tpu.vector_store %arg10[%c4_554, %c1_555, %c0_556], %335 {strides = array<i32>} : memref<10x5x8xf32, #tpu.memory_space<vmem>>, vector<1x4x8xf32>,
    %c0_557 = arith.constant 0 : index
    %c8_558 = arith.constant 8 : index
    %c0_559 = arith.constant 0 : index
    %c0_560 = arith.constant 0 : index
    %336 = vector.load %arg1[%c0_557, %c8_558, %c0_559, %c0_560] : memref<1x18x5x8xbf16, #tpu.memory_space<vmem>>, vector<1x1x4x8xbf16>
    %337 = vector.shape_cast %336 : vector<1x1x4x8xbf16> to vector<4x8xbf16>
    %c0_561 = arith.constant 0 : index
    %c8_562 = arith.constant 8 : index
    %c0_563 = arith.constant 0 : index
    %c0_564 = arith.constant 0 : index
    %338 = vector.load %arg2[%c0_561, %c8_562, %c0_563, %c0_564] : memref<1x18x5x8xbf16, #tpu.memory_space<vmem>>, vector<1x1x4x8xbf16>
    %339 = vector.shape_cast %338 : vector<1x1x4x8xbf16> to vector<4x8xbf16>
    %c0_565 = arith.constant 0 : index
    %c8_566 = arith.constant 8 : index
    %c0_567 = arith.constant 0 : index
    %c0_568 = arith.constant 0 : index
    %340 = vector.load %arg3[%c0_565, %c8_566, %c0_567, %c0_568] : memref<1x18x4x8xbf16, #tpu.memory_space<vmem>>, vector<1x1x4x8xbf16>
    %341 = vector.shape_cast %340 : vector<1x1x4x8xbf16> to vector<4x8xbf16>
    %c0_569 = arith.constant 0 : index
    %c8_570 = arith.constant 8 : index
    %c0_571 = arith.constant 0 : index
    %c0_572 = arith.constant 0 : index
    %342 = vector.load %arg4[%c0_569, %c8_570, %c0_571, %c0_572] : memref<1x18x4x8xbf16, #tpu.memory_space<vmem>>, vector<1x1x4x8xbf16>
    %343 = vector.shape_cast %342 : vector<1x1x4x8xbf16> to vector<4x8xbf16>
    %c0_573 = arith.constant 0 : index
    %c9_574 = arith.constant 9 : index
    %c0_575 = arith.constant 0 : index
    %c0_576 = arith.constant 0 : index
    %344 = vector.load %arg1[%c0_573, %c9_574, %c0_575, %c0_576] : memref<1x18x5x8xbf16, #tpu.memory_space<vmem>>, vector<1x1x4x8xbf16>
    %345 = vector.shape_cast %344 : vector<1x1x4x8xbf16> to vector<4x8xbf16>
    %c0_577 = arith.constant 0 : index
    %c9_578 = arith.constant 9 : index
    %c0_579 = arith.constant 0 : index
    %c0_580 = arith.constant 0 : index
    %346 = vector.load %arg2[%c0_577, %c9_578, %c0_579, %c0_580] : memref<1x18x5x8xbf16, #tpu.memory_space<vmem>>, vector<1x1x4x8xbf16>
    %347 = vector.shape_cast %346 : vector<1x1x4x8xbf16> to vector<4x8xbf16>
    %c0_581 = arith.constant 0 : index
    %c9_582 = arith.constant 9 : index
    %c0_583 = arith.constant 0 : index
    %c0_584 = arith.constant 0 : index
    %348 = vector.load %arg3[%c0_581, %c9_582, %c0_583, %c0_584] : memref<1x18x4x8xbf16, #tpu.memory_space<vmem>>, vector<1x1x4x8xbf16>
    %349 = vector.shape_cast %348 : vector<1x1x4x8xbf16> to vector<4x8xbf16>
    %c0_585 = arith.constant 0 : index
    %c9_586 = arith.constant 9 : index
    %c0_587 = arith.constant 0 : index
    %c0_588 = arith.constant 0 : index
    %350 = vector.load %arg4[%c0_585, %c9_586, %c0_587, %c0_588] : memref<1x18x4x8xbf16, #tpu.memory_space<vmem>>, vector<1x1x4x8xbf16>
    %351 = vector.shape_cast %350 : vector<1x1x4x8xbf16> to vector<4x8xbf16>
    %c0_589 = arith.constant 0 : index
    %c10 = arith.constant 10 : index
    %c0_590 = arith.constant 0 : index
    %c0_591 = arith.constant 0 : index
    %352 = vector.load %arg1[%c0_589, %c10, %c0_590, %c0_591] : memref<1x18x5x8xbf16, #tpu.memory_space<vmem>>, vector<1x1x4x8xbf16>
    %353 = vector.shape_cast %352 : vector<1x1x4x8xbf16> to vector<4x8xbf16>
    %c0_592 = arith.constant 0 : index
    %c10_593 = arith.constant 10 : index
    %c0_594 = arith.constant 0 : index
    %c0_595 = arith.constant 0 : index
    %354 = vector.load %arg2[%c0_592, %c10_593, %c0_594, %c0_595] : memref<1x18x5x8xbf16, #tpu.memory_space<vmem>>, vector<1x1x4x8xbf16>
    %355 = vector.shape_cast %354 : vector<1x1x4x8xbf16> to vector<4x8xbf16>
    %c0_596 = arith.constant 0 : index
    %c10_597 = arith.constant 10 : index
    %c0_598 = arith.constant 0 : index
    %c0_599 = arith.constant 0 : index
    %356 = vector.load %arg3[%c0_596, %c10_597, %c0_598, %c0_599] : memref<1x18x4x8xbf16, #tpu.memory_space<vmem>>, vector<1x1x4x8xbf16>
    %357 = vector.shape_cast %356 : vector<1x1x4x8xbf16> to vector<4x8xbf16>
    %c0_600 = arith.constant 0 : index
    %c10_601 = arith.constant 10 : index
    %c0_602 = arith.constant 0 : index
    %c0_603 = arith.constant 0 : index
    %358 = vector.load %arg4[%c0_600, %c10_601, %c0_602, %c0_603] : memref<1x18x4x8xbf16, #tpu.memory_space<vmem>>, vector<1x1x4x8xbf16>
    %359 = vector.shape_cast %358 : vector<1x1x4x8xbf16> to vector<4x8xbf16>
    %c0_604 = arith.constant 0 : index
    %c11 = arith.constant 11 : index
    %c0_605 = arith.constant 0 : index
    %c0_606 = arith.constant 0 : index
    %360 = vector.load %arg1[%c0_604, %c11, %c0_605, %c0_606] : memref<1x18x5x8xbf16, #tpu.memory_space<vmem>>, vector<1x1x4x8xbf16>
    %361 = vector.shape_cast %360 : vector<1x1x4x8xbf16> to vector<4x8xbf16>
    %c0_607 = arith.constant 0 : index
    %c11_608 = arith.constant 11 : index
    %c0_609 = arith.constant 0 : index
    %c0_610 = arith.constant 0 : index
    %362 = vector.load %arg2[%c0_607, %c11_608, %c0_609, %c0_610] : memref<1x18x5x8xbf16, #tpu.memory_space<vmem>>, vector<1x1x4x8xbf16>
    %363 = vector.shape_cast %362 : vector<1x1x4x8xbf16> to vector<4x8xbf16>
    %c0_611 = arith.constant 0 : index
    %c11_612 = arith.constant 11 : index
    %c0_613 = arith.constant 0 : index
    %c0_614 = arith.constant 0 : index
    %364 = vector.load %arg3[%c0_611, %c11_612, %c0_613, %c0_614] : memref<1x18x4x8xbf16, #tpu.memory_space<vmem>>, vector<1x1x4x8xbf16>
    %365 = vector.shape_cast %364 : vector<1x1x4x8xbf16> to vector<4x8xbf16>
    %c0_615 = arith.constant 0 : index
    %c11_616 = arith.constant 11 : index
    %c0_617 = arith.constant 0 : index
    %c0_618 = arith.constant 0 : index
    %366 = vector.load %arg4[%c0_615, %c11_616, %c0_617, %c0_618] : memref<1x18x4x8xbf16, #tpu.memory_space<vmem>>, vector<1x1x4x8xbf16>
    %367 = vector.shape_cast %366 : vector<1x1x4x8xbf16> to vector<4x8xbf16>
    %368 = tpu.concatenate %337, %339, %341, %343, %345, %347, %349, %351, %353, %355, %357, %359, %361, %363, %365, %367 in 1 : vector<4x8xbf16>, vector<4x8xbf16>, vector<4x8xbf16>, vector<4x8xbf16>, vector<4x8xbf16>, vector<4x8xbf16>, vector<4x8xbf16>, vector<4x8xbf16>, vector<4x8xbf16>, vector<4x8xbf16>, vector<4x8xbf16>, vector<4x8xbf16>, vector<4x8xbf16>, vector<4x8xbf16>, vector<4x8xbf16>, vector<4x8xbf16> -> vector<4x128xbf16>
    %cst_619 = arith.constant dense<0.000000e+00> : vector<4x8xf32>
    %369 = tpu.matmul %368, %0, %cst_619 {dimension_numbers = #tpu.dot_dimension_numbers<[1], [0], [0], [1], [0, 0, 1, 1], [], []>} : vector<4x128xbf16>, vector<128x8xbf16>, vector<4x8xf32> -> vector<4x8xf32>
    %370 = vector.broadcast %1 : vector<1x8xf32> to vector<4x8xf32>
    %371 = arith.addf %369, %370 : vector<4x8xf32>
    %cst_620 = arith.constant 0.000000e+00 : f32
    %372 = vector.broadcast %cst_620 : f32 to vector<4x8xf32>
    %373 = arith.maximumf %371, %372 : vector<4x8xf32>
    %c5_621 = arith.constant 5 : index
    %c0_622 = arith.constant 0 : index
    %c0_623 = arith.constant 0 : index
    %374 = vector.load %arg11[%c5_621, %c0_622, %c0_623] : memref<10x5x8xf32, #tpu.memory_space<vmem>>, vector<1x4x8xf32>
    %375 = vector.shape_cast %374 : vector<1x4x8xf32> to vector<4x8xf32>
    %376 = vector.shape_cast %373 : vector<4x8xf32> to vector<1x4x8xf32>
    tpu.vector_store %arg11[%c5_621, %c0_622, %c0_623], %376 {strides = array<i32>} : memref<10x5x8xf32, #tpu.memory_space<vmem>>, vector<1x4x8xf32>,
    %c0_624 = arith.constant 0 : index
    %c8_625 = arith.constant 8 : index
    %c0_626 = arith.constant 0 : index
    %c0_627 = arith.constant 0 : index
    %377 = vector.load %arg3[%c0_624, %c8_625, %c0_626, %c0_627] : memref<1x18x4x8xbf16, #tpu.memory_space<vmem>>, vector<1x1x4x8xbf16>
    %378 = vector.shape_cast %377 : vector<1x1x4x8xbf16> to vector<4x8xbf16>
    %c0_628 = arith.constant 0 : index
    %c8_629 = arith.constant 8 : index
    %c0_630 = arith.constant 0 : index
    %c0_631 = arith.constant 0 : index
    %379 = vector.load %arg4[%c0_628, %c8_629, %c0_630, %c0_631] : memref<1x18x4x8xbf16, #tpu.memory_space<vmem>>, vector<1x1x4x8xbf16>
    %380 = vector.shape_cast %379 : vector<1x1x4x8xbf16> to vector<4x8xbf16>
    %c0_632 = arith.constant 0 : index
    %c8_633 = arith.constant 8 : index
    %c1_634 = arith.constant 1 : index
    %c0_635 = arith.constant 0 : index
    %381 = vector.load %arg1[%c0_632, %c8_633, %c1_634, %c0_635] : memref<1x18x5x8xbf16, #tpu.memory_space<vmem>>, vector<1x1x4x8xbf16>
    %382 = vector.shape_cast %381 : vector<1x1x4x8xbf16> to vector<4x8xbf16>
    %c0_636 = arith.constant 0 : index
    %c8_637 = arith.constant 8 : index
    %c1_638 = arith.constant 1 : index
    %c0_639 = arith.constant 0 : index
    %383 = vector.load %arg2[%c0_636, %c8_637, %c1_638, %c0_639] : memref<1x18x5x8xbf16, #tpu.memory_space<vmem>>, vector<1x1x4x8xbf16>
    %384 = vector.shape_cast %383 : vector<1x1x4x8xbf16> to vector<4x8xbf16>
    %c0_640 = arith.constant 0 : index
    %c9_641 = arith.constant 9 : index
    %c0_642 = arith.constant 0 : index
    %c0_643 = arith.constant 0 : index
    %385 = vector.load %arg3[%c0_640, %c9_641, %c0_642, %c0_643] : memref<1x18x4x8xbf16, #tpu.memory_space<vmem>>, vector<1x1x4x8xbf16>
    %386 = vector.shape_cast %385 : vector<1x1x4x8xbf16> to vector<4x8xbf16>
    %c0_644 = arith.constant 0 : index
    %c9_645 = arith.constant 9 : index
    %c0_646 = arith.constant 0 : index
    %c0_647 = arith.constant 0 : index
    %387 = vector.load %arg4[%c0_644, %c9_645, %c0_646, %c0_647] : memref<1x18x4x8xbf16, #tpu.memory_space<vmem>>, vector<1x1x4x8xbf16>
    %388 = vector.shape_cast %387 : vector<1x1x4x8xbf16> to vector<4x8xbf16>
    %c0_648 = arith.constant 0 : index
    %c9_649 = arith.constant 9 : index
    %c1_650 = arith.constant 1 : index
    %c0_651 = arith.constant 0 : index
    %389 = vector.load %arg1[%c0_648, %c9_649, %c1_650, %c0_651] : memref<1x18x5x8xbf16, #tpu.memory_space<vmem>>, vector<1x1x4x8xbf16>
    %390 = vector.shape_cast %389 : vector<1x1x4x8xbf16> to vector<4x8xbf16>
    %c0_652 = arith.constant 0 : index
    %c9_653 = arith.constant 9 : index
    %c1_654 = arith.constant 1 : index
    %c0_655 = arith.constant 0 : index
    %391 = vector.load %arg2[%c0_652, %c9_653, %c1_654, %c0_655] : memref<1x18x5x8xbf16, #tpu.memory_space<vmem>>, vector<1x1x4x8xbf16>
    %392 = vector.shape_cast %391 : vector<1x1x4x8xbf16> to vector<4x8xbf16>
    %c0_656 = arith.constant 0 : index
    %c10_657 = arith.constant 10 : index
    %c0_658 = arith.constant 0 : index
    %c0_659 = arith.constant 0 : index
    %393 = vector.load %arg3[%c0_656, %c10_657, %c0_658, %c0_659] : memref<1x18x4x8xbf16, #tpu.memory_space<vmem>>, vector<1x1x4x8xbf16>
    %394 = vector.shape_cast %393 : vector<1x1x4x8xbf16> to vector<4x8xbf16>
    %c0_660 = arith.constant 0 : index
    %c10_661 = arith.constant 10 : index
    %c0_662 = arith.constant 0 : index
    %c0_663 = arith.constant 0 : index
    %395 = vector.load %arg4[%c0_660, %c10_661, %c0_662, %c0_663] : memref<1x18x4x8xbf16, #tpu.memory_space<vmem>>, vector<1x1x4x8xbf16>
    %396 = vector.shape_cast %395 : vector<1x1x4x8xbf16> to vector<4x8xbf16>
    %c0_664 = arith.constant 0 : index
    %c10_665 = arith.constant 10 : index
    %c1_666 = arith.constant 1 : index
    %c0_667 = arith.constant 0 : index
    %397 = vector.load %arg1[%c0_664, %c10_665, %c1_666, %c0_667] : memref<1x18x5x8xbf16, #tpu.memory_space<vmem>>, vector<1x1x4x8xbf16>
    %398 = vector.shape_cast %397 : vector<1x1x4x8xbf16> to vector<4x8xbf16>
    %c0_668 = arith.constant 0 : index
    %c10_669 = arith.constant 10 : index
    %c1_670 = arith.constant 1 : index
    %c0_671 = arith.constant 0 : index
    %399 = vector.load %arg2[%c0_668, %c10_669, %c1_670, %c0_671] : memref<1x18x5x8xbf16, #tpu.memory_space<vmem>>, vector<1x1x4x8xbf16>
    %400 = vector.shape_cast %399 : vector<1x1x4x8xbf16> to vector<4x8xbf16>
    %c0_672 = arith.constant 0 : index
    %c11_673 = arith.constant 11 : index
    %c0_674 = arith.constant 0 : index
    %c0_675 = arith.constant 0 : index
    %401 = vector.load %arg3[%c0_672, %c11_673, %c0_674, %c0_675] : memref<1x18x4x8xbf16, #tpu.memory_space<vmem>>, vector<1x1x4x8xbf16>
    %402 = vector.shape_cast %401 : vector<1x1x4x8xbf16> to vector<4x8xbf16>
    %c0_676 = arith.constant 0 : index
    %c11_677 = arith.constant 11 : index
    %c0_678 = arith.constant 0 : index
    %c0_679 = arith.constant 0 : index
    %403 = vector.load %arg4[%c0_676, %c11_677, %c0_678, %c0_679] : memref<1x18x4x8xbf16, #tpu.memory_space<vmem>>, vector<1x1x4x8xbf16>
    %404 = vector.shape_cast %403 : vector<1x1x4x8xbf16> to vector<4x8xbf16>
    %c0_680 = arith.constant 0 : index
    %c11_681 = arith.constant 11 : index
    %c1_682 = arith.constant 1 : index
    %c0_683 = arith.constant 0 : index
    %405 = vector.load %arg1[%c0_680, %c11_681, %c1_682, %c0_683] : memref<1x18x5x8xbf16, #tpu.memory_space<vmem>>, vector<1x1x4x8xbf16>
    %406 = vector.shape_cast %405 : vector<1x1x4x8xbf16> to vector<4x8xbf16>
    %c0_684 = arith.constant 0 : index
    %c11_685 = arith.constant 11 : index
    %c1_686 = arith.constant 1 : index
    %c0_687 = arith.constant 0 : index
    %407 = vector.load %arg2[%c0_684, %c11_685, %c1_686, %c0_687] : memref<1x18x5x8xbf16, #tpu.memory_space<vmem>>, vector<1x1x4x8xbf16>
    %408 = vector.shape_cast %407 : vector<1x1x4x8xbf16> to vector<4x8xbf16>
    %409 = tpu.concatenate %378, %380, %382, %384, %386, %388, %390, %392, %394, %396, %398, %400, %402, %404, %406, %408 in 1 : vector<4x8xbf16>, vector<4x8xbf16>, vector<4x8xbf16>, vector<4x8xbf16>, vector<4x8xbf16>, vector<4x8xbf16>, vector<4x8xbf16>, vector<4x8xbf16>, vector<4x8xbf16>, vector<4x8xbf16>, vector<4x8xbf16>, vector<4x8xbf16>, vector<4x8xbf16>, vector<4x8xbf16>, vector<4x8xbf16>, vector<4x8xbf16> -> vector<4x128xbf16>
    %cst_688 = arith.constant dense<0.000000e+00> : vector<4x8xf32>
    %410 = tpu.matmul %409, %0, %cst_688 {dimension_numbers = #tpu.dot_dimension_numbers<[1], [0], [0], [1], [0, 0, 1, 1], [], []>} : vector<4x128xbf16>, vector<128x8xbf16>, vector<4x8xf32> -> vector<4x8xf32>
    %411 = vector.broadcast %1 : vector<1x8xf32> to vector<4x8xf32>
    %412 = arith.addf %410, %411 : vector<4x8xf32>
    %cst_689 = arith.constant 0.000000e+00 : f32
    %413 = vector.broadcast %cst_689 : f32 to vector<4x8xf32>
    %414 = arith.maximumf %412, %413 : vector<4x8xf32>
    %c5_690 = arith.constant 5 : index
    %c1_691 = arith.constant 1 : index
    %c0_692 = arith.constant 0 : index
    %415 = vector.load %arg10[%c5_690, %c1_691, %c0_692] : memref<10x5x8xf32, #tpu.memory_space<vmem>>, vector<1x4x8xf32>
    %416 = vector.shape_cast %415 : vector<1x4x8xf32> to vector<4x8xf32>
    %417 = vector.shape_cast %414 : vector<4x8xf32> to vector<1x4x8xf32>
    tpu.vector_store %arg10[%c5_690, %c1_691, %c0_692], %417 {strides = array<i32>} : memref<10x5x8xf32, #tpu.memory_space<vmem>>, vector<1x4x8xf32>,
    %c0_693 = arith.constant 0 : index
    %c10_694 = arith.constant 10 : index
    %c0_695 = arith.constant 0 : index
    %c0_696 = arith.constant 0 : index
    %418 = vector.load %arg1[%c0_693, %c10_694, %c0_695, %c0_696] : memref<1x18x5x8xbf16, #tpu.memory_space<vmem>>, vector<1x1x4x8xbf16>
    %419 = vector.shape_cast %418 : vector<1x1x4x8xbf16> to vector<4x8xbf16>
    %c0_697 = arith.constant 0 : index
    %c10_698 = arith.constant 10 : index
    %c0_699 = arith.constant 0 : index
    %c0_700 = arith.constant 0 : index
    %420 = vector.load %arg2[%c0_697, %c10_698, %c0_699, %c0_700] : memref<1x18x5x8xbf16, #tpu.memory_space<vmem>>, vector<1x1x4x8xbf16>
    %421 = vector.shape_cast %420 : vector<1x1x4x8xbf16> to vector<4x8xbf16>
    %c0_701 = arith.constant 0 : index
    %c10_702 = arith.constant 10 : index
    %c0_703 = arith.constant 0 : index
    %c0_704 = arith.constant 0 : index
    %422 = vector.load %arg3[%c0_701, %c10_702, %c0_703, %c0_704] : memref<1x18x4x8xbf16, #tpu.memory_space<vmem>>, vector<1x1x4x8xbf16>
    %423 = vector.shape_cast %422 : vector<1x1x4x8xbf16> to vector<4x8xbf16>
    %c0_705 = arith.constant 0 : index
    %c10_706 = arith.constant 10 : index
    %c0_707 = arith.constant 0 : index
    %c0_708 = arith.constant 0 : index
    %424 = vector.load %arg4[%c0_705, %c10_706, %c0_707, %c0_708] : memref<1x18x4x8xbf16, #tpu.memory_space<vmem>>, vector<1x1x4x8xbf16>
    %425 = vector.shape_cast %424 : vector<1x1x4x8xbf16> to vector<4x8xbf16>
    %c0_709 = arith.constant 0 : index
    %c11_710 = arith.constant 11 : index
    %c0_711 = arith.constant 0 : index
    %c0_712 = arith.constant 0 : index
    %426 = vector.load %arg1[%c0_709, %c11_710, %c0_711, %c0_712] : memref<1x18x5x8xbf16, #tpu.memory_space<vmem>>, vector<1x1x4x8xbf16>
    %427 = vector.shape_cast %426 : vector<1x1x4x8xbf16> to vector<4x8xbf16>
    %c0_713 = arith.constant 0 : index
    %c11_714 = arith.constant 11 : index
    %c0_715 = arith.constant 0 : index
    %c0_716 = arith.constant 0 : index
    %428 = vector.load %arg2[%c0_713, %c11_714, %c0_715, %c0_716] : memref<1x18x5x8xbf16, #tpu.memory_space<vmem>>, vector<1x1x4x8xbf16>
    %429 = vector.shape_cast %428 : vector<1x1x4x8xbf16> to vector<4x8xbf16>
    %c0_717 = arith.constant 0 : index
    %c11_718 = arith.constant 11 : index
    %c0_719 = arith.constant 0 : index
    %c0_720 = arith.constant 0 : index
    %430 = vector.load %arg3[%c0_717, %c11_718, %c0_719, %c0_720] : memref<1x18x4x8xbf16, #tpu.memory_space<vmem>>, vector<1x1x4x8xbf16>
    %431 = vector.shape_cast %430 : vector<1x1x4x8xbf16> to vector<4x8xbf16>
    %c0_721 = arith.constant 0 : index
    %c11_722 = arith.constant 11 : index
    %c0_723 = arith.constant 0 : index
    %c0_724 = arith.constant 0 : index
    %432 = vector.load %arg4[%c0_721, %c11_722, %c0_723, %c0_724] : memref<1x18x4x8xbf16, #tpu.memory_space<vmem>>, vector<1x1x4x8xbf16>
    %433 = vector.shape_cast %432 : vector<1x1x4x8xbf16> to vector<4x8xbf16>
    %c0_725 = arith.constant 0 : index
    %c12 = arith.constant 12 : index
    %c0_726 = arith.constant 0 : index
    %c0_727 = arith.constant 0 : index
    %434 = vector.load %arg1[%c0_725, %c12, %c0_726, %c0_727] : memref<1x18x5x8xbf16, #tpu.memory_space<vmem>>, vector<1x1x4x8xbf16>
    %435 = vector.shape_cast %434 : vector<1x1x4x8xbf16> to vector<4x8xbf16>
    %c0_728 = arith.constant 0 : index
    %c12_729 = arith.constant 12 : index
    %c0_730 = arith.constant 0 : index
    %c0_731 = arith.constant 0 : index
    %436 = vector.load %arg2[%c0_728, %c12_729, %c0_730, %c0_731] : memref<1x18x5x8xbf16, #tpu.memory_space<vmem>>, vector<1x1x4x8xbf16>
    %437 = vector.shape_cast %436 : vector<1x1x4x8xbf16> to vector<4x8xbf16>
    %c0_732 = arith.constant 0 : index
    %c12_733 = arith.constant 12 : index
    %c0_734 = arith.constant 0 : index
    %c0_735 = arith.constant 0 : index
    %438 = vector.load %arg3[%c0_732, %c12_733, %c0_734, %c0_735] : memref<1x18x4x8xbf16, #tpu.memory_space<vmem>>, vector<1x1x4x8xbf16>
    %439 = vector.shape_cast %438 : vector<1x1x4x8xbf16> to vector<4x8xbf16>
    %c0_736 = arith.constant 0 : index
    %c12_737 = arith.constant 12 : index
    %c0_738 = arith.constant 0 : index
    %c0_739 = arith.constant 0 : index
    %440 = vector.load %arg4[%c0_736, %c12_737, %c0_738, %c0_739] : memref<1x18x4x8xbf16, #tpu.memory_space<vmem>>, vector<1x1x4x8xbf16>
    %441 = vector.shape_cast %440 : vector<1x1x4x8xbf16> to vector<4x8xbf16>
    %c0_740 = arith.constant 0 : index
    %c13 = arith.constant 13 : index
    %c0_741 = arith.constant 0 : index
    %c0_742 = arith.constant 0 : index
    %442 = vector.load %arg1[%c0_740, %c13, %c0_741, %c0_742] : memref<1x18x5x8xbf16, #tpu.memory_space<vmem>>, vector<1x1x4x8xbf16>
    %443 = vector.shape_cast %442 : vector<1x1x4x8xbf16> to vector<4x8xbf16>
    %c0_743 = arith.constant 0 : index
    %c13_744 = arith.constant 13 : index
    %c0_745 = arith.constant 0 : index
    %c0_746 = arith.constant 0 : index
    %444 = vector.load %arg2[%c0_743, %c13_744, %c0_745, %c0_746] : memref<1x18x5x8xbf16, #tpu.memory_space<vmem>>, vector<1x1x4x8xbf16>
    %445 = vector.shape_cast %444 : vector<1x1x4x8xbf16> to vector<4x8xbf16>
    %c0_747 = arith.constant 0 : index
    %c13_748 = arith.constant 13 : index
    %c0_749 = arith.constant 0 : index
    %c0_750 = arith.constant 0 : index
    %446 = vector.load %arg3[%c0_747, %c13_748, %c0_749, %c0_750] : memref<1x18x4x8xbf16, #tpu.memory_space<vmem>>, vector<1x1x4x8xbf16>
    %447 = vector.shape_cast %446 : vector<1x1x4x8xbf16> to vector<4x8xbf16>
    %c0_751 = arith.constant 0 : index
    %c13_752 = arith.constant 13 : index
    %c0_753 = arith.constant 0 : index
    %c0_754 = arith.constant 0 : index
    %448 = vector.load %arg4[%c0_751, %c13_752, %c0_753, %c0_754] : memref<1x18x4x8xbf16, #tpu.memory_space<vmem>>, vector<1x1x4x8xbf16>
    %449 = vector.shape_cast %448 : vector<1x1x4x8xbf16> to vector<4x8xbf16>
    %450 = tpu.concatenate %419, %421, %423, %425, %427, %429, %431, %433, %435, %437, %439, %441, %443, %445, %447, %449 in 1 : vector<4x8xbf16>, vector<4x8xbf16>, vector<4x8xbf16>, vector<4x8xbf16>, vector<4x8xbf16>, vector<4x8xbf16>, vector<4x8xbf16>, vector<4x8xbf16>, vector<4x8xbf16>, vector<4x8xbf16>, vector<4x8xbf16>, vector<4x8xbf16>, vector<4x8xbf16>, vector<4x8xbf16>, vector<4x8xbf16>, vector<4x8xbf16> -> vector<4x128xbf16>
    %cst_755 = arith.constant dense<0.000000e+00> : vector<4x8xf32>
    %451 = tpu.matmul %450, %0, %cst_755 {dimension_numbers = #tpu.dot_dimension_numbers<[1], [0], [0], [1], [0, 0, 1, 1], [], []>} : vector<4x128xbf16>, vector<128x8xbf16>, vector<4x8xf32> -> vector<4x8xf32>
    %452 = vector.broadcast %1 : vector<1x8xf32> to vector<4x8xf32>
    %453 = arith.addf %451, %452 : vector<4x8xf32>
    %cst_756 = arith.constant 0.000000e+00 : f32
    %454 = vector.broadcast %cst_756 : f32 to vector<4x8xf32>
    %455 = arith.maximumf %453, %454 : vector<4x8xf32>
    %c6_757 = arith.constant 6 : index
    %c0_758 = arith.constant 0 : index
    %c0_759 = arith.constant 0 : index
    %456 = vector.load %arg11[%c6_757, %c0_758, %c0_759] : memref<10x5x8xf32, #tpu.memory_space<vmem>>, vector<1x4x8xf32>
    %457 = vector.shape_cast %456 : vector<1x4x8xf32> to vector<4x8xf32>
    %458 = vector.shape_cast %455 : vector<4x8xf32> to vector<1x4x8xf32>
    tpu.vector_store %arg11[%c6_757, %c0_758, %c0_759], %458 {strides = array<i32>} : memref<10x5x8xf32, #tpu.memory_space<vmem>>, vector<1x4x8xf32>,
    %c0_760 = arith.constant 0 : index
    %c10_761 = arith.constant 10 : index
    %c0_762 = arith.constant 0 : index
    %c0_763 = arith.constant 0 : index
    %459 = vector.load %arg3[%c0_760, %c10_761, %c0_762, %c0_763] : memref<1x18x4x8xbf16, #tpu.memory_space<vmem>>, vector<1x1x4x8xbf16>
    %460 = vector.shape_cast %459 : vector<1x1x4x8xbf16> to vector<4x8xbf16>
    %c0_764 = arith.constant 0 : index
    %c10_765 = arith.constant 10 : index
    %c0_766 = arith.constant 0 : index
    %c0_767 = arith.constant 0 : index
    %461 = vector.load %arg4[%c0_764, %c10_765, %c0_766, %c0_767] : memref<1x18x4x8xbf16, #tpu.memory_space<vmem>>, vector<1x1x4x8xbf16>
    %462 = vector.shape_cast %461 : vector<1x1x4x8xbf16> to vector<4x8xbf16>
    %c0_768 = arith.constant 0 : index
    %c10_769 = arith.constant 10 : index
    %c1_770 = arith.constant 1 : index
    %c0_771 = arith.constant 0 : index
    %463 = vector.load %arg1[%c0_768, %c10_769, %c1_770, %c0_771] : memref<1x18x5x8xbf16, #tpu.memory_space<vmem>>, vector<1x1x4x8xbf16>
    %464 = vector.shape_cast %463 : vector<1x1x4x8xbf16> to vector<4x8xbf16>
    %c0_772 = arith.constant 0 : index
    %c10_773 = arith.constant 10 : index
    %c1_774 = arith.constant 1 : index
    %c0_775 = arith.constant 0 : index
    %465 = vector.load %arg2[%c0_772, %c10_773, %c1_774, %c0_775] : memref<1x18x5x8xbf16, #tpu.memory_space<vmem>>, vector<1x1x4x8xbf16>
    %466 = vector.shape_cast %465 : vector<1x1x4x8xbf16> to vector<4x8xbf16>
    %c0_776 = arith.constant 0 : index
    %c11_777 = arith.constant 11 : index
    %c0_778 = arith.constant 0 : index
    %c0_779 = arith.constant 0 : index
    %467 = vector.load %arg3[%c0_776, %c11_777, %c0_778, %c0_779] : memref<1x18x4x8xbf16, #tpu.memory_space<vmem>>, vector<1x1x4x8xbf16>
    %468 = vector.shape_cast %467 : vector<1x1x4x8xbf16> to vector<4x8xbf16>
    %c0_780 = arith.constant 0 : index
    %c11_781 = arith.constant 11 : index
    %c0_782 = arith.constant 0 : index
    %c0_783 = arith.constant 0 : index
    %469 = vector.load %arg4[%c0_780, %c11_781, %c0_782, %c0_783] : memref<1x18x4x8xbf16, #tpu.memory_space<vmem>>, vector<1x1x4x8xbf16>
    %470 = vector.shape_cast %469 : vector<1x1x4x8xbf16> to vector<4x8xbf16>
    %c0_784 = arith.constant 0 : index
    %c11_785 = arith.constant 11 : index
    %c1_786 = arith.constant 1 : index
    %c0_787 = arith.constant 0 : index
    %471 = vector.load %arg1[%c0_784, %c11_785, %c1_786, %c0_787] : memref<1x18x5x8xbf16, #tpu.memory_space<vmem>>, vector<1x1x4x8xbf16>
    %472 = vector.shape_cast %471 : vector<1x1x4x8xbf16> to vector<4x8xbf16>
    %c0_788 = arith.constant 0 : index
    %c11_789 = arith.constant 11 : index
    %c1_790 = arith.constant 1 : index
    %c0_791 = arith.constant 0 : index
    %473 = vector.load %arg2[%c0_788, %c11_789, %c1_790, %c0_791] : memref<1x18x5x8xbf16, #tpu.memory_space<vmem>>, vector<1x1x4x8xbf16>
    %474 = vector.shape_cast %473 : vector<1x1x4x8xbf16> to vector<4x8xbf16>
    %c0_792 = arith.constant 0 : index
    %c12_793 = arith.constant 12 : index
    %c0_794 = arith.constant 0 : index
    %c0_795 = arith.constant 0 : index
    %475 = vector.load %arg3[%c0_792, %c12_793, %c0_794, %c0_795] : memref<1x18x4x8xbf16, #tpu.memory_space<vmem>>, vector<1x1x4x8xbf16>
    %476 = vector.shape_cast %475 : vector<1x1x4x8xbf16> to vector<4x8xbf16>
    %c0_796 = arith.constant 0 : index
    %c12_797 = arith.constant 12 : index
    %c0_798 = arith.constant 0 : index
    %c0_799 = arith.constant 0 : index
    %477 = vector.load %arg4[%c0_796, %c12_797, %c0_798, %c0_799] : memref<1x18x4x8xbf16, #tpu.memory_space<vmem>>, vector<1x1x4x8xbf16>
    %478 = vector.shape_cast %477 : vector<1x1x4x8xbf16> to vector<4x8xbf16>
    %c0_800 = arith.constant 0 : index
    %c12_801 = arith.constant 12 : index
    %c1_802 = arith.constant 1 : index
    %c0_803 = arith.constant 0 : index
    %479 = vector.load %arg1[%c0_800, %c12_801, %c1_802, %c0_803] : memref<1x18x5x8xbf16, #tpu.memory_space<vmem>>, vector<1x1x4x8xbf16>
    %480 = vector.shape_cast %479 : vector<1x1x4x8xbf16> to vector<4x8xbf16>
    %c0_804 = arith.constant 0 : index
    %c12_805 = arith.constant 12 : index
    %c1_806 = arith.constant 1 : index
    %c0_807 = arith.constant 0 : index
    %481 = vector.load %arg2[%c0_804, %c12_805, %c1_806, %c0_807] : memref<1x18x5x8xbf16, #tpu.memory_space<vmem>>, vector<1x1x4x8xbf16>
    %482 = vector.shape_cast %481 : vector<1x1x4x8xbf16> to vector<4x8xbf16>
    %c0_808 = arith.constant 0 : index
    %c13_809 = arith.constant 13 : index
    %c0_810 = arith.constant 0 : index
    %c0_811 = arith.constant 0 : index
    %483 = vector.load %arg3[%c0_808, %c13_809, %c0_810, %c0_811] : memref<1x18x4x8xbf16, #tpu.memory_space<vmem>>, vector<1x1x4x8xbf16>
    %484 = vector.shape_cast %483 : vector<1x1x4x8xbf16> to vector<4x8xbf16>
    %c0_812 = arith.constant 0 : index
    %c13_813 = arith.constant 13 : index
    %c0_814 = arith.constant 0 : index
    %c0_815 = arith.constant 0 : index
    %485 = vector.load %arg4[%c0_812, %c13_813, %c0_814, %c0_815] : memref<1x18x4x8xbf16, #tpu.memory_space<vmem>>, vector<1x1x4x8xbf16>
    %486 = vector.shape_cast %485 : vector<1x1x4x8xbf16> to vector<4x8xbf16>
    %c0_816 = arith.constant 0 : index
    %c13_817 = arith.constant 13 : index
    %c1_818 = arith.constant 1 : index
    %c0_819 = arith.constant 0 : index
    %487 = vector.load %arg1[%c0_816, %c13_817, %c1_818, %c0_819] : memref<1x18x5x8xbf16, #tpu.memory_space<vmem>>, vector<1x1x4x8xbf16>
    %488 = vector.shape_cast %487 : vector<1x1x4x8xbf16> to vector<4x8xbf16>
    %c0_820 = arith.constant 0 : index
    %c13_821 = arith.constant 13 : index
    %c1_822 = arith.constant 1 : index
    %c0_823 = arith.constant 0 : index
    %489 = vector.load %arg2[%c0_820, %c13_821, %c1_822, %c0_823] : memref<1x18x5x8xbf16, #tpu.memory_space<vmem>>, vector<1x1x4x8xbf16>
    %490 = vector.shape_cast %489 : vector<1x1x4x8xbf16> to vector<4x8xbf16>
    %491 = tpu.concatenate %460, %462, %464, %466, %468, %470, %472, %474, %476, %478, %480, %482, %484, %486, %488, %490 in 1 : vector<4x8xbf16>, vector<4x8xbf16>, vector<4x8xbf16>, vector<4x8xbf16>, vector<4x8xbf16>, vector<4x8xbf16>, vector<4x8xbf16>, vector<4x8xbf16>, vector<4x8xbf16>, vector<4x8xbf16>, vector<4x8xbf16>, vector<4x8xbf16>, vector<4x8xbf16>, vector<4x8xbf16>, vector<4x8xbf16>, vector<4x8xbf16> -> vector<4x128xbf16>
    %cst_824 = arith.constant dense<0.000000e+00> : vector<4x8xf32>
    %492 = tpu.matmul %491, %0, %cst_824 {dimension_numbers = #tpu.dot_dimension_numbers<[1], [0], [0], [1], [0, 0, 1, 1], [], []>} : vector<4x128xbf16>, vector<128x8xbf16>, vector<4x8xf32> -> vector<4x8xf32>
    %493 = vector.broadcast %1 : vector<1x8xf32> to vector<4x8xf32>
    %494 = arith.addf %492, %493 : vector<4x8xf32>
    %cst_825 = arith.constant 0.000000e+00 : f32
    %495 = vector.broadcast %cst_825 : f32 to vector<4x8xf32>
    %496 = arith.maximumf %494, %495 : vector<4x8xf32>
    %c6_826 = arith.constant 6 : index
    %c1_827 = arith.constant 1 : index
    %c0_828 = arith.constant 0 : index
    %497 = vector.load %arg10[%c6_826, %c1_827, %c0_828] : memref<10x5x8xf32, #tpu.memory_space<vmem>>, vector<1x4x8xf32>
    %498 = vector.shape_cast %497 : vector<1x4x8xf32> to vector<4x8xf32>
    %499 = vector.shape_cast %496 : vector<4x8xf32> to vector<1x4x8xf32>
    tpu.vector_store %arg10[%c6_826, %c1_827, %c0_828], %499 {strides = array<i32>} : memref<10x5x8xf32, #tpu.memory_space<vmem>>, vector<1x4x8xf32>,
    %c0_829 = arith.constant 0 : index
    %c12_830 = arith.constant 12 : index
    %c0_831 = arith.constant 0 : index
    %c0_832 = arith.constant 0 : index
    %500 = vector.load %arg1[%c0_829, %c12_830, %c0_831, %c0_832] : memref<1x18x5x8xbf16, #tpu.memory_space<vmem>>, vector<1x1x4x8xbf16>
    %501 = vector.shape_cast %500 : vector<1x1x4x8xbf16> to vector<4x8xbf16>
    %c0_833 = arith.constant 0 : index
    %c12_834 = arith.constant 12 : index
    %c0_835 = arith.constant 0 : index
    %c0_836 = arith.constant 0 : index
    %502 = vector.load %arg2[%c0_833, %c12_834, %c0_835, %c0_836] : memref<1x18x5x8xbf16, #tpu.memory_space<vmem>>, vector<1x1x4x8xbf16>
    %503 = vector.shape_cast %502 : vector<1x1x4x8xbf16> to vector<4x8xbf16>
    %c0_837 = arith.constant 0 : index
    %c12_838 = arith.constant 12 : index
    %c0_839 = arith.constant 0 : index
    %c0_840 = arith.constant 0 : index
    %504 = vector.load %arg3[%c0_837, %c12_838, %c0_839, %c0_840] : memref<1x18x4x8xbf16, #tpu.memory_space<vmem>>, vector<1x1x4x8xbf16>
    %505 = vector.shape_cast %504 : vector<1x1x4x8xbf16> to vector<4x8xbf16>
    %c0_841 = arith.constant 0 : index
    %c12_842 = arith.constant 12 : index
    %c0_843 = arith.constant 0 : index
    %c0_844 = arith.constant 0 : index
    %506 = vector.load %arg4[%c0_841, %c12_842, %c0_843, %c0_844] : memref<1x18x4x8xbf16, #tpu.memory_space<vmem>>, vector<1x1x4x8xbf16>
    %507 = vector.shape_cast %506 : vector<1x1x4x8xbf16> to vector<4x8xbf16>
    %c0_845 = arith.constant 0 : index
    %c13_846 = arith.constant 13 : index
    %c0_847 = arith.constant 0 : index
    %c0_848 = arith.constant 0 : index
    %508 = vector.load %arg1[%c0_845, %c13_846, %c0_847, %c0_848] : memref<1x18x5x8xbf16, #tpu.memory_space<vmem>>, vector<1x1x4x8xbf16>
    %509 = vector.shape_cast %508 : vector<1x1x4x8xbf16> to vector<4x8xbf16>
    %c0_849 = arith.constant 0 : index
    %c13_850 = arith.constant 13 : index
    %c0_851 = arith.constant 0 : index
    %c0_852 = arith.constant 0 : index
    %510 = vector.load %arg2[%c0_849, %c13_850, %c0_851, %c0_852] : memref<1x18x5x8xbf16, #tpu.memory_space<vmem>>, vector<1x1x4x8xbf16>
    %511 = vector.shape_cast %510 : vector<1x1x4x8xbf16> to vector<4x8xbf16>
    %c0_853 = arith.constant 0 : index
    %c13_854 = arith.constant 13 : index
    %c0_855 = arith.constant 0 : index
    %c0_856 = arith.constant 0 : index
    %512 = vector.load %arg3[%c0_853, %c13_854, %c0_855, %c0_856] : memref<1x18x4x8xbf16, #tpu.memory_space<vmem>>, vector<1x1x4x8xbf16>
    %513 = vector.shape_cast %512 : vector<1x1x4x8xbf16> to vector<4x8xbf16>
    %c0_857 = arith.constant 0 : index
    %c13_858 = arith.constant 13 : index
    %c0_859 = arith.constant 0 : index
    %c0_860 = arith.constant 0 : index
    %514 = vector.load %arg4[%c0_857, %c13_858, %c0_859, %c0_860] : memref<1x18x4x8xbf16, #tpu.memory_space<vmem>>, vector<1x1x4x8xbf16>
    %515 = vector.shape_cast %514 : vector<1x1x4x8xbf16> to vector<4x8xbf16>
    %c0_861 = arith.constant 0 : index
    %c14 = arith.constant 14 : index
    %c0_862 = arith.constant 0 : index
    %c0_863 = arith.constant 0 : index
    %516 = vector.load %arg1[%c0_861, %c14, %c0_862, %c0_863] : memref<1x18x5x8xbf16, #tpu.memory_space<vmem>>, vector<1x1x4x8xbf16>
    %517 = vector.shape_cast %516 : vector<1x1x4x8xbf16> to vector<4x8xbf16>
    %c0_864 = arith.constant 0 : index
    %c14_865 = arith.constant 14 : index
    %c0_866 = arith.constant 0 : index
    %c0_867 = arith.constant 0 : index
    %518 = vector.load %arg2[%c0_864, %c14_865, %c0_866, %c0_867] : memref<1x18x5x8xbf16, #tpu.memory_space<vmem>>, vector<1x1x4x8xbf16>
    %519 = vector.shape_cast %518 : vector<1x1x4x8xbf16> to vector<4x8xbf16>
    %c0_868 = arith.constant 0 : index
    %c14_869 = arith.constant 14 : index
    %c0_870 = arith.constant 0 : index
    %c0_871 = arith.constant 0 : index
    %520 = vector.load %arg3[%c0_868, %c14_869, %c0_870, %c0_871] : memref<1x18x4x8xbf16, #tpu.memory_space<vmem>>, vector<1x1x4x8xbf16>
    %521 = vector.shape_cast %520 : vector<1x1x4x8xbf16> to vector<4x8xbf16>
    %c0_872 = arith.constant 0 : index
    %c14_873 = arith.constant 14 : index
    %c0_874 = arith.constant 0 : index
    %c0_875 = arith.constant 0 : index
    %522 = vector.load %arg4[%c0_872, %c14_873, %c0_874, %c0_875] : memref<1x18x4x8xbf16, #tpu.memory_space<vmem>>, vector<1x1x4x8xbf16>
    %523 = vector.shape_cast %522 : vector<1x1x4x8xbf16> to vector<4x8xbf16>
    %c0_876 = arith.constant 0 : index
    %c15 = arith.constant 15 : index
    %c0_877 = arith.constant 0 : index
    %c0_878 = arith.constant 0 : index
    %524 = vector.load %arg1[%c0_876, %c15, %c0_877, %c0_878] : memref<1x18x5x8xbf16, #tpu.memory_space<vmem>>, vector<1x1x4x8xbf16>
    %525 = vector.shape_cast %524 : vector<1x1x4x8xbf16> to vector<4x8xbf16>
    %c0_879 = arith.constant 0 : index
    %c15_880 = arith.constant 15 : index
    %c0_881 = arith.constant 0 : index
    %c0_882 = arith.constant 0 : index
    %526 = vector.load %arg2[%c0_879, %c15_880, %c0_881, %c0_882] : memref<1x18x5x8xbf16, #tpu.memory_space<vmem>>, vector<1x1x4x8xbf16>
    %527 = vector.shape_cast %526 : vector<1x1x4x8xbf16> to vector<4x8xbf16>
    %c0_883 = arith.constant 0 : index
    %c15_884 = arith.constant 15 : index
    %c0_885 = arith.constant 0 : index
    %c0_886 = arith.constant 0 : index
    %528 = vector.load %arg3[%c0_883, %c15_884, %c0_885, %c0_886] : memref<1x18x4x8xbf16, #tpu.memory_space<vmem>>, vector<1x1x4x8xbf16>
    %529 = vector.shape_cast %528 : vector<1x1x4x8xbf16> to vector<4x8xbf16>
    %c0_887 = arith.constant 0 : index
    %c15_888 = arith.constant 15 : index
    %c0_889 = arith.constant 0 : index
    %c0_890 = arith.constant 0 : index
    %530 = vector.load %arg4[%c0_887, %c15_888, %c0_889, %c0_890] : memref<1x18x4x8xbf16, #tpu.memory_space<vmem>>, vector<1x1x4x8xbf16>
    %531 = vector.shape_cast %530 : vector<1x1x4x8xbf16> to vector<4x8xbf16>
    %532 = tpu.concatenate %501, %503, %505, %507, %509, %511, %513, %515, %517, %519, %521, %523, %525, %527, %529, %531 in 1 : vector<4x8xbf16>, vector<4x8xbf16>, vector<4x8xbf16>, vector<4x8xbf16>, vector<4x8xbf16>, vector<4x8xbf16>, vector<4x8xbf16>, vector<4x8xbf16>, vector<4x8xbf16>, vector<4x8xbf16>, vector<4x8xbf16>, vector<4x8xbf16>, vector<4x8xbf16>, vector<4x8xbf16>, vector<4x8xbf16>, vector<4x8xbf16> -> vector<4x128xbf16>
    %cst_891 = arith.constant dense<0.000000e+00> : vector<4x8xf32>
    %533 = tpu.matmul %532, %0, %cst_891 {dimension_numbers = #tpu.dot_dimension_numbers<[1], [0], [0], [1], [0, 0, 1, 1], [], []>} : vector<4x128xbf16>, vector<128x8xbf16>, vector<4x8xf32> -> vector<4x8xf32>
    %534 = vector.broadcast %1 : vector<1x8xf32> to vector<4x8xf32>
    %535 = arith.addf %533, %534 : vector<4x8xf32>
    %cst_892 = arith.constant 0.000000e+00 : f32
    %536 = vector.broadcast %cst_892 : f32 to vector<4x8xf32>
    %537 = arith.maximumf %535, %536 : vector<4x8xf32>
    %c7_893 = arith.constant 7 : index
    %c0_894 = arith.constant 0 : index
    %c0_895 = arith.constant 0 : index
    %538 = vector.load %arg11[%c7_893, %c0_894, %c0_895] : memref<10x5x8xf32, #tpu.memory_space<vmem>>, vector<1x4x8xf32>
    %539 = vector.shape_cast %538 : vector<1x4x8xf32> to vector<4x8xf32>
    %540 = vector.shape_cast %537 : vector<4x8xf32> to vector<1x4x8xf32>
    tpu.vector_store %arg11[%c7_893, %c0_894, %c0_895], %540 {strides = array<i32>} : memref<10x5x8xf32, #tpu.memory_space<vmem>>, vector<1x4x8xf32>,
    %c0_896 = arith.constant 0 : index
    %c12_897 = arith.constant 12 : index
    %c0_898 = arith.constant 0 : index
    %c0_899 = arith.constant 0 : index
    %541 = vector.load %arg3[%c0_896, %c12_897, %c0_898, %c0_899] : memref<1x18x4x8xbf16, #tpu.memory_space<vmem>>, vector<1x1x4x8xbf16>
    %542 = vector.shape_cast %541 : vector<1x1x4x8xbf16> to vector<4x8xbf16>
    %c0_900 = arith.constant 0 : index
    %c12_901 = arith.constant 12 : index
    %c0_902 = arith.constant 0 : index
    %c0_903 = arith.constant 0 : index
    %543 = vector.load %arg4[%c0_900, %c12_901, %c0_902, %c0_903] : memref<1x18x4x8xbf16, #tpu.memory_space<vmem>>, vector<1x1x4x8xbf16>
    %544 = vector.shape_cast %543 : vector<1x1x4x8xbf16> to vector<4x8xbf16>
    %c0_904 = arith.constant 0 : index
    %c12_905 = arith.constant 12 : index
    %c1_906 = arith.constant 1 : index
    %c0_907 = arith.constant 0 : index
    %545 = vector.load %arg1[%c0_904, %c12_905, %c1_906, %c0_907] : memref<1x18x5x8xbf16, #tpu.memory_space<vmem>>, vector<1x1x4x8xbf16>
    %546 = vector.shape_cast %545 : vector<1x1x4x8xbf16> to vector<4x8xbf16>
    %c0_908 = arith.constant 0 : index
    %c12_909 = arith.constant 12 : index
    %c1_910 = arith.constant 1 : index
    %c0_911 = arith.constant 0 : index
    %547 = vector.load %arg2[%c0_908, %c12_909, %c1_910, %c0_911] : memref<1x18x5x8xbf16, #tpu.memory_space<vmem>>, vector<1x1x4x8xbf16>
    %548 = vector.shape_cast %547 : vector<1x1x4x8xbf16> to vector<4x8xbf16>
    %c0_912 = arith.constant 0 : index
    %c13_913 = arith.constant 13 : index
    %c0_914 = arith.constant 0 : index
    %c0_915 = arith.constant 0 : index
    %549 = vector.load %arg3[%c0_912, %c13_913, %c0_914, %c0_915] : memref<1x18x4x8xbf16, #tpu.memory_space<vmem>>, vector<1x1x4x8xbf16>
    %550 = vector.shape_cast %549 : vector<1x1x4x8xbf16> to vector<4x8xbf16>
    %c0_916 = arith.constant 0 : index
    %c13_917 = arith.constant 13 : index
    %c0_918 = arith.constant 0 : index
    %c0_919 = arith.constant 0 : index
    %551 = vector.load %arg4[%c0_916, %c13_917, %c0_918, %c0_919] : memref<1x18x4x8xbf16, #tpu.memory_space<vmem>>, vector<1x1x4x8xbf16>
    %552 = vector.shape_cast %551 : vector<1x1x4x8xbf16> to vector<4x8xbf16>
    %c0_920 = arith.constant 0 : index
    %c13_921 = arith.constant 13 : index
    %c1_922 = arith.constant 1 : index
    %c0_923 = arith.constant 0 : index
    %553 = vector.load %arg1[%c0_920, %c13_921, %c1_922, %c0_923] : memref<1x18x5x8xbf16, #tpu.memory_space<vmem>>, vector<1x1x4x8xbf16>
    %554 = vector.shape_cast %553 : vector<1x1x4x8xbf16> to vector<4x8xbf16>
    %c0_924 = arith.constant 0 : index
    %c13_925 = arith.constant 13 : index
    %c1_926 = arith.constant 1 : index
    %c0_927 = arith.constant 0 : index
    %555 = vector.load %arg2[%c0_924, %c13_925, %c1_926, %c0_927] : memref<1x18x5x8xbf16, #tpu.memory_space<vmem>>, vector<1x1x4x8xbf16>
    %556 = vector.shape_cast %555 : vector<1x1x4x8xbf16> to vector<4x8xbf16>
    %c0_928 = arith.constant 0 : index
    %c14_929 = arith.constant 14 : index
    %c0_930 = arith.constant 0 : index
    %c0_931 = arith.constant 0 : index
    %557 = vector.load %arg3[%c0_928, %c14_929, %c0_930, %c0_931] : memref<1x18x4x8xbf16, #tpu.memory_space<vmem>>, vector<1x1x4x8xbf16>
    %558 = vector.shape_cast %557 : vector<1x1x4x8xbf16> to vector<4x8xbf16>
    %c0_932 = arith.constant 0 : index
    %c14_933 = arith.constant 14 : index
    %c0_934 = arith.constant 0 : index
    %c0_935 = arith.constant 0 : index
    %559 = vector.load %arg4[%c0_932, %c14_933, %c0_934, %c0_935] : memref<1x18x4x8xbf16, #tpu.memory_space<vmem>>, vector<1x1x4x8xbf16>
    %560 = vector.shape_cast %559 : vector<1x1x4x8xbf16> to vector<4x8xbf16>
    %c0_936 = arith.constant 0 : index
    %c14_937 = arith.constant 14 : index
    %c1_938 = arith.constant 1 : index
    %c0_939 = arith.constant 0 : index
    %561 = vector.load %arg1[%c0_936, %c14_937, %c1_938, %c0_939] : memref<1x18x5x8xbf16, #tpu.memory_space<vmem>>, vector<1x1x4x8xbf16>
    %562 = vector.shape_cast %561 : vector<1x1x4x8xbf16> to vector<4x8xbf16>
    %c0_940 = arith.constant 0 : index
    %c14_941 = arith.constant 14 : index
    %c1_942 = arith.constant 1 : index
    %c0_943 = arith.constant 0 : index
    %563 = vector.load %arg2[%c0_940, %c14_941, %c1_942, %c0_943] : memref<1x18x5x8xbf16, #tpu.memory_space<vmem>>, vector<1x1x4x8xbf16>
    %564 = vector.shape_cast %563 : vector<1x1x4x8xbf16> to vector<4x8xbf16>
    %c0_944 = arith.constant 0 : index
    %c15_945 = arith.constant 15 : index
    %c0_946 = arith.constant 0 : index
    %c0_947 = arith.constant 0 : index
    %565 = vector.load %arg3[%c0_944, %c15_945, %c0_946, %c0_947] : memref<1x18x4x8xbf16, #tpu.memory_space<vmem>>, vector<1x1x4x8xbf16>
    %566 = vector.shape_cast %565 : vector<1x1x4x8xbf16> to vector<4x8xbf16>
    %c0_948 = arith.constant 0 : index
    %c15_949 = arith.constant 15 : index
    %c0_950 = arith.constant 0 : index
    %c0_951 = arith.constant 0 : index
    %567 = vector.load %arg4[%c0_948, %c15_949, %c0_950, %c0_951] : memref<1x18x4x8xbf16, #tpu.memory_space<vmem>>, vector<1x1x4x8xbf16>
    %568 = vector.shape_cast %567 : vector<1x1x4x8xbf16> to vector<4x8xbf16>
    %c0_952 = arith.constant 0 : index
    %c15_953 = arith.constant 15 : index
    %c1_954 = arith.constant 1 : index
    %c0_955 = arith.constant 0 : index
    %569 = vector.load %arg1[%c0_952, %c15_953, %c1_954, %c0_955] : memref<1x18x5x8xbf16, #tpu.memory_space<vmem>>, vector<1x1x4x8xbf16>
    %570 = vector.shape_cast %569 : vector<1x1x4x8xbf16> to vector<4x8xbf16>
    %c0_956 = arith.constant 0 : index
    %c15_957 = arith.constant 15 : index
    %c1_958 = arith.constant 1 : index
    %c0_959 = arith.constant 0 : index
    %571 = vector.load %arg2[%c0_956, %c15_957, %c1_958, %c0_959] : memref<1x18x5x8xbf16, #tpu.memory_space<vmem>>, vector<1x1x4x8xbf16>
    %572 = vector.shape_cast %571 : vector<1x1x4x8xbf16> to vector<4x8xbf16>
    %573 = tpu.concatenate %542, %544, %546, %548, %550, %552, %554, %556, %558, %560, %562, %564, %566, %568, %570, %572 in 1 : vector<4x8xbf16>, vector<4x8xbf16>, vector<4x8xbf16>, vector<4x8xbf16>, vector<4x8xbf16>, vector<4x8xbf16>, vector<4x8xbf16>, vector<4x8xbf16>, vector<4x8xbf16>, vector<4x8xbf16>, vector<4x8xbf16>, vector<4x8xbf16>, vector<4x8xbf16>, vector<4x8xbf16>, vector<4x8xbf16>, vector<4x8xbf16> -> vector<4x128xbf16>
    %cst_960 = arith.constant dense<0.000000e+00> : vector<4x8xf32>
    %574 = tpu.matmul %573, %0, %cst_960 {dimension_numbers = #tpu.dot_dimension_numbers<[1], [0], [0], [1], [0, 0, 1, 1], [], []>} : vector<4x128xbf16>, vector<128x8xbf16>, vector<4x8xf32> -> vector<4x8xf32>
    %575 = vector.broadcast %1 : vector<1x8xf32> to vector<4x8xf32>
    %576 = arith.addf %574, %575 : vector<4x8xf32>
    %cst_961 = arith.constant 0.000000e+00 : f32
    %577 = vector.broadcast %cst_961 : f32 to vector<4x8xf32>
    %578 = arith.maximumf %576, %577 : vector<4x8xf32>
    %c7_962 = arith.constant 7 : index
    %c1_963 = arith.constant 1 : index
    %c0_964 = arith.constant 0 : index
    %579 = vector.load %arg10[%c7_962, %c1_963, %c0_964] : memref<10x5x8xf32, #tpu.memory_space<vmem>>, vector<1x4x8xf32>
    %580 = vector.shape_cast %579 : vector<1x4x8xf32> to vector<4x8xf32>
    %581 = vector.shape_cast %578 : vector<4x8xf32> to vector<1x4x8xf32>
    tpu.vector_store %arg10[%c7_962, %c1_963, %c0_964], %581 {strides = array<i32>} : memref<10x5x8xf32, #tpu.memory_space<vmem>>, vector<1x4x8xf32>,
    %c0_965 = arith.constant 0 : index
    %c14_966 = arith.constant 14 : index
    %c0_967 = arith.constant 0 : index
    %c0_968 = arith.constant 0 : index
    %582 = vector.load %arg1[%c0_965, %c14_966, %c0_967, %c0_968] : memref<1x18x5x8xbf16, #tpu.memory_space<vmem>>, vector<1x1x4x8xbf16>
    %583 = vector.shape_cast %582 : vector<1x1x4x8xbf16> to vector<4x8xbf16>
    %c0_969 = arith.constant 0 : index
    %c14_970 = arith.constant 14 : index
    %c0_971 = arith.constant 0 : index
    %c0_972 = arith.constant 0 : index
    %584 = vector.load %arg2[%c0_969, %c14_970, %c0_971, %c0_972] : memref<1x18x5x8xbf16, #tpu.memory_space<vmem>>, vector<1x1x4x8xbf16>
    %585 = vector.shape_cast %584 : vector<1x1x4x8xbf16> to vector<4x8xbf16>
    %c0_973 = arith.constant 0 : index
    %c14_974 = arith.constant 14 : index
    %c0_975 = arith.constant 0 : index
    %c0_976 = arith.constant 0 : index
    %586 = vector.load %arg3[%c0_973, %c14_974, %c0_975, %c0_976] : memref<1x18x4x8xbf16, #tpu.memory_space<vmem>>, vector<1x1x4x8xbf16>
    %587 = vector.shape_cast %586 : vector<1x1x4x8xbf16> to vector<4x8xbf16>
    %c0_977 = arith.constant 0 : index
    %c14_978 = arith.constant 14 : index
    %c0_979 = arith.constant 0 : index
    %c0_980 = arith.constant 0 : index
    %588 = vector.load %arg4[%c0_977, %c14_978, %c0_979, %c0_980] : memref<1x18x4x8xbf16, #tpu.memory_space<vmem>>, vector<1x1x4x8xbf16>
    %589 = vector.shape_cast %588 : vector<1x1x4x8xbf16> to vector<4x8xbf16>
    %c0_981 = arith.constant 0 : index
    %c15_982 = arith.constant 15 : index
    %c0_983 = arith.constant 0 : index
    %c0_984 = arith.constant 0 : index
    %590 = vector.load %arg1[%c0_981, %c15_982, %c0_983, %c0_984] : memref<1x18x5x8xbf16, #tpu.memory_space<vmem>>, vector<1x1x4x8xbf16>
    %591 = vector.shape_cast %590 : vector<1x1x4x8xbf16> to vector<4x8xbf16>
    %c0_985 = arith.constant 0 : index
    %c15_986 = arith.constant 15 : index
    %c0_987 = arith.constant 0 : index
    %c0_988 = arith.constant 0 : index
    %592 = vector.load %arg2[%c0_985, %c15_986, %c0_987, %c0_988] : memref<1x18x5x8xbf16, #tpu.memory_space<vmem>>, vector<1x1x4x8xbf16>
    %593 = vector.shape_cast %592 : vector<1x1x4x8xbf16> to vector<4x8xbf16>
    %c0_989 = arith.constant 0 : index
    %c15_990 = arith.constant 15 : index
    %c0_991 = arith.constant 0 : index
    %c0_992 = arith.constant 0 : index
    %594 = vector.load %arg3[%c0_989, %c15_990, %c0_991, %c0_992] : memref<1x18x4x8xbf16, #tpu.memory_space<vmem>>, vector<1x1x4x8xbf16>
    %595 = vector.shape_cast %594 : vector<1x1x4x8xbf16> to vector<4x8xbf16>
    %c0_993 = arith.constant 0 : index
    %c15_994 = arith.constant 15 : index
    %c0_995 = arith.constant 0 : index
    %c0_996 = arith.constant 0 : index
    %596 = vector.load %arg4[%c0_993, %c15_994, %c0_995, %c0_996] : memref<1x18x4x8xbf16, #tpu.memory_space<vmem>>, vector<1x1x4x8xbf16>
    %597 = vector.shape_cast %596 : vector<1x1x4x8xbf16> to vector<4x8xbf16>
    %c0_997 = arith.constant 0 : index
    %c16 = arith.constant 16 : index
    %c0_998 = arith.constant 0 : index
    %c0_999 = arith.constant 0 : index
    %598 = vector.load %arg1[%c0_997, %c16, %c0_998, %c0_999] : memref<1x18x5x8xbf16, #tpu.memory_space<vmem>>, vector<1x1x4x8xbf16>
    %599 = vector.shape_cast %598 : vector<1x1x4x8xbf16> to vector<4x8xbf16>
    %c0_1000 = arith.constant 0 : index
    %c16_1001 = arith.constant 16 : index
    %c0_1002 = arith.constant 0 : index
    %c0_1003 = arith.constant 0 : index
    %600 = vector.load %arg2[%c0_1000, %c16_1001, %c0_1002, %c0_1003] : memref<1x18x5x8xbf16, #tpu.memory_space<vmem>>, vector<1x1x4x8xbf16>
    %601 = vector.shape_cast %600 : vector<1x1x4x8xbf16> to vector<4x8xbf16>
    %c0_1004 = arith.constant 0 : index
    %c16_1005 = arith.constant 16 : index
    %c0_1006 = arith.constant 0 : index
    %c0_1007 = arith.constant 0 : index
    %602 = vector.load %arg3[%c0_1004, %c16_1005, %c0_1006, %c0_1007] : memref<1x18x4x8xbf16, #tpu.memory_space<vmem>>, vector<1x1x4x8xbf16>
    %603 = vector.shape_cast %602 : vector<1x1x4x8xbf16> to vector<4x8xbf16>
    %c0_1008 = arith.constant 0 : index
    %c16_1009 = arith.constant 16 : index
    %c0_1010 = arith.constant 0 : index
    %c0_1011 = arith.constant 0 : index
    %604 = vector.load %arg4[%c0_1008, %c16_1009, %c0_1010, %c0_1011] : memref<1x18x4x8xbf16, #tpu.memory_space<vmem>>, vector<1x1x4x8xbf16>
    %605 = vector.shape_cast %604 : vector<1x1x4x8xbf16> to vector<4x8xbf16>
    %c0_1012 = arith.constant 0 : index
    %c17 = arith.constant 17 : index
    %c0_1013 = arith.constant 0 : index
    %c0_1014 = arith.constant 0 : index
    %606 = vector.load %arg1[%c0_1012, %c17, %c0_1013, %c0_1014] : memref<1x18x5x8xbf16, #tpu.memory_space<vmem>>, vector<1x1x4x8xbf16>
    %607 = vector.shape_cast %606 : vector<1x1x4x8xbf16> to vector<4x8xbf16>
    %c0_1015 = arith.constant 0 : index
    %c17_1016 = arith.constant 17 : index
    %c0_1017 = arith.constant 0 : index
    %c0_1018 = arith.constant 0 : index
    %608 = vector.load %arg2[%c0_1015, %c17_1016, %c0_1017, %c0_1018] : memref<1x18x5x8xbf16, #tpu.memory_space<vmem>>, vector<1x1x4x8xbf16>
    %609 = vector.shape_cast %608 : vector<1x1x4x8xbf16> to vector<4x8xbf16>
    %c0_1019 = arith.constant 0 : index
    %c17_1020 = arith.constant 17 : index
    %c0_1021 = arith.constant 0 : index
    %c0_1022 = arith.constant 0 : index
    %610 = vector.load %arg3[%c0_1019, %c17_1020, %c0_1021, %c0_1022] : memref<1x18x4x8xbf16, #tpu.memory_space<vmem>>, vector<1x1x4x8xbf16>
    %611 = vector.shape_cast %610 : vector<1x1x4x8xbf16> to vector<4x8xbf16>
    %c0_1023 = arith.constant 0 : index
    %c17_1024 = arith.constant 17 : index
    %c0_1025 = arith.constant 0 : index
    %c0_1026 = arith.constant 0 : index
    %612 = vector.load %arg4[%c0_1023, %c17_1024, %c0_1025, %c0_1026] : memref<1x18x4x8xbf16, #tpu.memory_space<vmem>>, vector<1x1x4x8xbf16>
    %613 = vector.shape_cast %612 : vector<1x1x4x8xbf16> to vector<4x8xbf16>
    %614 = tpu.concatenate %583, %585, %587, %589, %591, %593, %595, %597, %599, %601, %603, %605, %607, %609, %611, %613 in 1 : vector<4x8xbf16>, vector<4x8xbf16>, vector<4x8xbf16>, vector<4x8xbf16>, vector<4x8xbf16>, vector<4x8xbf16>, vector<4x8xbf16>, vector<4x8xbf16>, vector<4x8xbf16>, vector<4x8xbf16>, vector<4x8xbf16>, vector<4x8xbf16>, vector<4x8xbf16>, vector<4x8xbf16>, vector<4x8xbf16>, vector<4x8xbf16> -> vector<4x128xbf16>
    %cst_1027 = arith.constant dense<0.000000e+00> : vector<4x8xf32>
    %615 = tpu.matmul %614, %0, %cst_1027 {dimension_numbers = #tpu.dot_dimension_numbers<[1], [0], [0], [1], [0, 0, 1, 1], [], []>} : vector<4x128xbf16>, vector<128x8xbf16>, vector<4x8xf32> -> vector<4x8xf32>
    %616 = vector.broadcast %1 : vector<1x8xf32> to vector<4x8xf32>
    %617 = arith.addf %615, %616 : vector<4x8xf32>
    %cst_1028 = arith.constant 0.000000e+00 : f32
    %618 = vector.broadcast %cst_1028 : f32 to vector<4x8xf32>
    %619 = arith.maximumf %617, %618 : vector<4x8xf32>
    %c8_1029 = arith.constant 8 : index
    %c0_1030 = arith.constant 0 : index
    %c0_1031 = arith.constant 0 : index
    %620 = vector.load %arg11[%c8_1029, %c0_1030, %c0_1031] : memref<10x5x8xf32, #tpu.memory_space<vmem>>, vector<1x4x8xf32>
    %621 = vector.shape_cast %620 : vector<1x4x8xf32> to vector<4x8xf32>
    %622 = vector.shape_cast %619 : vector<4x8xf32> to vector<1x4x8xf32>
    tpu.vector_store %arg11[%c8_1029, %c0_1030, %c0_1031], %622 {strides = array<i32>} : memref<10x5x8xf32, #tpu.memory_space<vmem>>, vector<1x4x8xf32>,
    %c0_1032 = arith.constant 0 : index
    %c14_1033 = arith.constant 14 : index
    %c0_1034 = arith.constant 0 : index
    %c0_1035 = arith.constant 0 : index
    %623 = vector.load %arg3[%c0_1032, %c14_1033, %c0_1034, %c0_1035] : memref<1x18x4x8xbf16, #tpu.memory_space<vmem>>, vector<1x1x4x8xbf16>
    %624 = vector.shape_cast %623 : vector<1x1x4x8xbf16> to vector<4x8xbf16>
    %c0_1036 = arith.constant 0 : index
    %c14_1037 = arith.constant 14 : index
    %c0_1038 = arith.constant 0 : index
    %c0_1039 = arith.constant 0 : index
    %625 = vector.load %arg4[%c0_1036, %c14_1037, %c0_1038, %c0_1039] : memref<1x18x4x8xbf16, #tpu.memory_space<vmem>>, vector<1x1x4x8xbf16>
    %626 = vector.shape_cast %625 : vector<1x1x4x8xbf16> to vector<4x8xbf16>
    %c0_1040 = arith.constant 0 : index
    %c14_1041 = arith.constant 14 : index
    %c1_1042 = arith.constant 1 : index
    %c0_1043 = arith.constant 0 : index
    %627 = vector.load %arg1[%c0_1040, %c14_1041, %c1_1042, %c0_1043] : memref<1x18x5x8xbf16, #tpu.memory_space<vmem>>, vector<1x1x4x8xbf16>
    %628 = vector.shape_cast %627 : vector<1x1x4x8xbf16> to vector<4x8xbf16>
    %c0_1044 = arith.constant 0 : index
    %c14_1045 = arith.constant 14 : index
    %c1_1046 = arith.constant 1 : index
    %c0_1047 = arith.constant 0 : index
    %629 = vector.load %arg2[%c0_1044, %c14_1045, %c1_1046, %c0_1047] : memref<1x18x5x8xbf16, #tpu.memory_space<vmem>>, vector<1x1x4x8xbf16>
    %630 = vector.shape_cast %629 : vector<1x1x4x8xbf16> to vector<4x8xbf16>
    %c0_1048 = arith.constant 0 : index
    %c15_1049 = arith.constant 15 : index
    %c0_1050 = arith.constant 0 : index
    %c0_1051 = arith.constant 0 : index
    %631 = vector.load %arg3[%c0_1048, %c15_1049, %c0_1050, %c0_1051] : memref<1x18x4x8xbf16, #tpu.memory_space<vmem>>, vector<1x1x4x8xbf16>
    %632 = vector.shape_cast %631 : vector<1x1x4x8xbf16> to vector<4x8xbf16>
    %c0_1052 = arith.constant 0 : index
    %c15_1053 = arith.constant 15 : index
    %c0_1054 = arith.constant 0 : index
    %c0_1055 = arith.constant 0 : index
    %633 = vector.load %arg4[%c0_1052, %c15_1053, %c0_1054, %c0_1055] : memref<1x18x4x8xbf16, #tpu.memory_space<vmem>>, vector<1x1x4x8xbf16>
    %634 = vector.shape_cast %633 : vector<1x1x4x8xbf16> to vector<4x8xbf16>
    %c0_1056 = arith.constant 0 : index
    %c15_1057 = arith.constant 15 : index
    %c1_1058 = arith.constant 1 : index
    %c0_1059 = arith.constant 0 : index
    %635 = vector.load %arg1[%c0_1056, %c15_1057, %c1_1058, %c0_1059] : memref<1x18x5x8xbf16, #tpu.memory_space<vmem>>, vector<1x1x4x8xbf16>
    %636 = vector.shape_cast %635 : vector<1x1x4x8xbf16> to vector<4x8xbf16>
    %c0_1060 = arith.constant 0 : index
    %c15_1061 = arith.constant 15 : index
    %c1_1062 = arith.constant 1 : index
    %c0_1063 = arith.constant 0 : index
    %637 = vector.load %arg2[%c0_1060, %c15_1061, %c1_1062, %c0_1063] : memref<1x18x5x8xbf16, #tpu.memory_space<vmem>>, vector<1x1x4x8xbf16>
    %638 = vector.shape_cast %637 : vector<1x1x4x8xbf16> to vector<4x8xbf16>
    %c0_1064 = arith.constant 0 : index
    %c16_1065 = arith.constant 16 : index
    %c0_1066 = arith.constant 0 : index
    %c0_1067 = arith.constant 0 : index
    %639 = vector.load %arg3[%c0_1064, %c16_1065, %c0_1066, %c0_1067] : memref<1x18x4x8xbf16, #tpu.memory_space<vmem>>, vector<1x1x4x8xbf16>
    %640 = vector.shape_cast %639 : vector<1x1x4x8xbf16> to vector<4x8xbf16>
    %c0_1068 = arith.constant 0 : index
    %c16_1069 = arith.constant 16 : index
    %c0_1070 = arith.constant 0 : index
    %c0_1071 = arith.constant 0 : index
    %641 = vector.load %arg4[%c0_1068, %c16_1069, %c0_1070, %c0_1071] : memref<1x18x4x8xbf16, #tpu.memory_space<vmem>>, vector<1x1x4x8xbf16>
    %642 = vector.shape_cast %641 : vector<1x1x4x8xbf16> to vector<4x8xbf16>
    %c0_1072 = arith.constant 0 : index
    %c16_1073 = arith.constant 16 : index
    %c1_1074 = arith.constant 1 : index
    %c0_1075 = arith.constant 0 : index
    %643 = vector.load %arg1[%c0_1072, %c16_1073, %c1_1074, %c0_1075] : memref<1x18x5x8xbf16, #tpu.memory_space<vmem>>, vector<1x1x4x8xbf16>
    %644 = vector.shape_cast %643 : vector<1x1x4x8xbf16> to vector<4x8xbf16>
    %c0_1076 = arith.constant 0 : index
    %c16_1077 = arith.constant 16 : index
    %c1_1078 = arith.constant 1 : index
    %c0_1079 = arith.constant 0 : index
    %645 = vector.load %arg2[%c0_1076, %c16_1077, %c1_1078, %c0_1079] : memref<1x18x5x8xbf16, #tpu.memory_space<vmem>>, vector<1x1x4x8xbf16>
    %646 = vector.shape_cast %645 : vector<1x1x4x8xbf16> to vector<4x8xbf16>
    %c0_1080 = arith.constant 0 : index
    %c17_1081 = arith.constant 17 : index
    %c0_1082 = arith.constant 0 : index
    %c0_1083 = arith.constant 0 : index
    %647 = vector.load %arg3[%c0_1080, %c17_1081, %c0_1082, %c0_1083] : memref<1x18x4x8xbf16, #tpu.memory_space<vmem>>, vector<1x1x4x8xbf16>
    %648 = vector.shape_cast %647 : vector<1x1x4x8xbf16> to vector<4x8xbf16>
    %c0_1084 = arith.constant 0 : index
    %c17_1085 = arith.constant 17 : index
    %c0_1086 = arith.constant 0 : index
    %c0_1087 = arith.constant 0 : index
    %649 = vector.load %arg4[%c0_1084, %c17_1085, %c0_1086, %c0_1087] : memref<1x18x4x8xbf16, #tpu.memory_space<vmem>>, vector<1x1x4x8xbf16>
    %650 = vector.shape_cast %649 : vector<1x1x4x8xbf16> to vector<4x8xbf16>
    %c0_1088 = arith.constant 0 : index
    %c17_1089 = arith.constant 17 : index
    %c1_1090 = arith.constant 1 : index
    %c0_1091 = arith.constant 0 : index
    %651 = vector.load %arg1[%c0_1088, %c17_1089, %c1_1090, %c0_1091] : memref<1x18x5x8xbf16, #tpu.memory_space<vmem>>, vector<1x1x4x8xbf16>
    %652 = vector.shape_cast %651 : vector<1x1x4x8xbf16> to vector<4x8xbf16>
    %c0_1092 = arith.constant 0 : index
    %c17_1093 = arith.constant 17 : index
    %c1_1094 = arith.constant 1 : index
    %c0_1095 = arith.constant 0 : index
    %653 = vector.load %arg2[%c0_1092, %c17_1093, %c1_1094, %c0_1095] : memref<1x18x5x8xbf16, #tpu.memory_space<vmem>>, vector<1x1x4x8xbf16>
    %654 = vector.shape_cast %653 : vector<1x1x4x8xbf16> to vector<4x8xbf16>
    %655 = tpu.concatenate %624, %626, %628, %630, %632, %634, %636, %638, %640, %642, %644, %646, %648, %650, %652, %654 in 1 : vector<4x8xbf16>, vector<4x8xbf16>, vector<4x8xbf16>, vector<4x8xbf16>, vector<4x8xbf16>, vector<4x8xbf16>, vector<4x8xbf16>, vector<4x8xbf16>, vector<4x8xbf16>, vector<4x8xbf16>, vector<4x8xbf16>, vector<4x8xbf16>, vector<4x8xbf16>, vector<4x8xbf16>, vector<4x8xbf16>, vector<4x8xbf16> -> vector<4x128xbf16>
    %cst_1096 = arith.constant dense<0.000000e+00> : vector<4x8xf32>
    %656 = tpu.matmul %655, %0, %cst_1096 {dimension_numbers = #tpu.dot_dimension_numbers<[1], [0], [0], [1], [0, 0, 1, 1], [], []>} : vector<4x128xbf16>, vector<128x8xbf16>, vector<4x8xf32> -> vector<4x8xf32>
    %657 = vector.broadcast %1 : vector<1x8xf32> to vector<4x8xf32>
    %658 = arith.addf %656, %657 : vector<4x8xf32>
    %cst_1097 = arith.constant 0.000000e+00 : f32
    %659 = vector.broadcast %cst_1097 : f32 to vector<4x8xf32>
    %660 = arith.maximumf %658, %659 : vector<4x8xf32>
    %c8_1098 = arith.constant 8 : index
    %c1_1099 = arith.constant 1 : index
    %c0_1100 = arith.constant 0 : index
    %661 = vector.load %arg10[%c8_1098, %c1_1099, %c0_1100] : memref<10x5x8xf32, #tpu.memory_space<vmem>>, vector<1x4x8xf32>
    %662 = vector.shape_cast %661 : vector<1x4x8xf32> to vector<4x8xf32>
    %663 = vector.shape_cast %660 : vector<4x8xf32> to vector<1x4x8xf32>
    tpu.vector_store %arg10[%c8_1098, %c1_1099, %c0_1100], %663 {strides = array<i32>} : memref<10x5x8xf32, #tpu.memory_space<vmem>>, vector<1x4x8xf32>,
    %c0_1101 = arith.constant 0 : index
    %c0_1102 = arith.constant 0 : index
    %c0_1103 = arith.constant 0 : index
    %664 = vector.load %arg10[%c0_1101, %c0_1102, %c0_1103] : memref<10x5x8xf32, #tpu.memory_space<vmem>>, vector<1x4x8xf32>
    %665 = vector.shape_cast %664 : vector<1x4x8xf32> to vector<4x8xf32>
    %c0_1104 = arith.constant 0 : index
    %c0_1105 = arith.constant 0 : index
    %c0_1106 = arith.constant 0 : index
    %666 = vector.load %arg11[%c0_1104, %c0_1105, %c0_1106] : memref<10x5x8xf32, #tpu.memory_space<vmem>>, vector<1x4x8xf32>
    %667 = vector.shape_cast %666 : vector<1x4x8xf32> to vector<4x8xf32>
    %c0_1107 = arith.constant 0 : index
    %c1_1108 = arith.constant 1 : index
    %c0_1109 = arith.constant 0 : index
    %668 = vector.load %arg10[%c0_1107, %c1_1108, %c0_1109] : memref<10x5x8xf32, #tpu.memory_space<vmem>>, vector<1x4x8xf32>
    %669 = vector.shape_cast %668 : vector<1x4x8xf32> to vector<4x8xf32>
    %c0_1110 = arith.constant 0 : index
    %c1_1111 = arith.constant 1 : index
    %c0_1112 = arith.constant 0 : index
    %670 = vector.load %arg11[%c0_1110, %c1_1111, %c0_1112] : memref<10x5x8xf32, #tpu.memory_space<vmem>>, vector<1x4x8xf32>
    %671 = vector.shape_cast %670 : vector<1x4x8xf32> to vector<4x8xf32>
    %c1_1113 = arith.constant 1 : index
    %c0_1114 = arith.constant 0 : index
    %c0_1115 = arith.constant 0 : index
    %672 = vector.load %arg10[%c1_1113, %c0_1114, %c0_1115] : memref<10x5x8xf32, #tpu.memory_space<vmem>>, vector<1x4x8xf32>
    %673 = vector.shape_cast %672 : vector<1x4x8xf32> to vector<4x8xf32>
    %c1_1116 = arith.constant 1 : index
    %c0_1117 = arith.constant 0 : index
    %c0_1118 = arith.constant 0 : index
    %674 = vector.load %arg11[%c1_1116, %c0_1117, %c0_1118] : memref<10x5x8xf32, #tpu.memory_space<vmem>>, vector<1x4x8xf32>
    %675 = vector.shape_cast %674 : vector<1x4x8xf32> to vector<4x8xf32>
    %c1_1119 = arith.constant 1 : index
    %c1_1120 = arith.constant 1 : index
    %c0_1121 = arith.constant 0 : index
    %676 = vector.load %arg10[%c1_1119, %c1_1120, %c0_1121] : memref<10x5x8xf32, #tpu.memory_space<vmem>>, vector<1x4x8xf32>
    %677 = vector.shape_cast %676 : vector<1x4x8xf32> to vector<4x8xf32>
    %c1_1122 = arith.constant 1 : index
    %c1_1123 = arith.constant 1 : index
    %c0_1124 = arith.constant 0 : index
    %678 = vector.load %arg11[%c1_1122, %c1_1123, %c0_1124] : memref<10x5x8xf32, #tpu.memory_space<vmem>>, vector<1x4x8xf32>
    %679 = vector.shape_cast %678 : vector<1x4x8xf32> to vector<4x8xf32>
    %c2_1125 = arith.constant 2 : index
    %c0_1126 = arith.constant 0 : index
    %c0_1127 = arith.constant 0 : index
    %680 = vector.load %arg10[%c2_1125, %c0_1126, %c0_1127] : memref<10x5x8xf32, #tpu.memory_space<vmem>>, vector<1x4x8xf32>
    %681 = vector.shape_cast %680 : vector<1x4x8xf32> to vector<4x8xf32>
    %c2_1128 = arith.constant 2 : index
    %c0_1129 = arith.constant 0 : index
    %c0_1130 = arith.constant 0 : index
    %682 = vector.load %arg11[%c2_1128, %c0_1129, %c0_1130] : memref<10x5x8xf32, #tpu.memory_space<vmem>>, vector<1x4x8xf32>
    %683 = vector.shape_cast %682 : vector<1x4x8xf32> to vector<4x8xf32>
    %c2_1131 = arith.constant 2 : index
    %c1_1132 = arith.constant 1 : index
    %c0_1133 = arith.constant 0 : index
    %684 = vector.load %arg10[%c2_1131, %c1_1132, %c0_1133] : memref<10x5x8xf32, #tpu.memory_space<vmem>>, vector<1x4x8xf32>
    %685 = vector.shape_cast %684 : vector<1x4x8xf32> to vector<4x8xf32>
    %c2_1134 = arith.constant 2 : index
    %c1_1135 = arith.constant 1 : index
    %c0_1136 = arith.constant 0 : index
    %686 = vector.load %arg11[%c2_1134, %c1_1135, %c0_1136] : memref<10x5x8xf32, #tpu.memory_space<vmem>>, vector<1x4x8xf32>
    %687 = vector.shape_cast %686 : vector<1x4x8xf32> to vector<4x8xf32>
    %c3_1137 = arith.constant 3 : index
    %c0_1138 = arith.constant 0 : index
    %c0_1139 = arith.constant 0 : index
    %688 = vector.load %arg10[%c3_1137, %c0_1138, %c0_1139] : memref<10x5x8xf32, #tpu.memory_space<vmem>>, vector<1x4x8xf32>
    %689 = vector.shape_cast %688 : vector<1x4x8xf32> to vector<4x8xf32>
    %c3_1140 = arith.constant 3 : index
    %c0_1141 = arith.constant 0 : index
    %c0_1142 = arith.constant 0 : index
    %690 = vector.load %arg11[%c3_1140, %c0_1141, %c0_1142] : memref<10x5x8xf32, #tpu.memory_space<vmem>>, vector<1x4x8xf32>
    %691 = vector.shape_cast %690 : vector<1x4x8xf32> to vector<4x8xf32>
    %c3_1143 = arith.constant 3 : index
    %c1_1144 = arith.constant 1 : index
    %c0_1145 = arith.constant 0 : index
    %692 = vector.load %arg10[%c3_1143, %c1_1144, %c0_1145] : memref<10x5x8xf32, #tpu.memory_space<vmem>>, vector<1x4x8xf32>
    %693 = vector.shape_cast %692 : vector<1x4x8xf32> to vector<4x8xf32>
    %c3_1146 = arith.constant 3 : index
    %c1_1147 = arith.constant 1 : index
    %c0_1148 = arith.constant 0 : index
    %694 = vector.load %arg11[%c3_1146, %c1_1147, %c0_1148] : memref<10x5x8xf32, #tpu.memory_space<vmem>>, vector<1x4x8xf32>
    %695 = vector.shape_cast %694 : vector<1x4x8xf32> to vector<4x8xf32>
    %696 = tpu.concatenate %665, %667, %669, %671, %673, %675, %677, %679, %681, %683, %685, %687, %689, %691, %693, %695 in 1 : vector<4x8xf32>, vector<4x8xf32>, vector<4x8xf32>, vector<4x8xf32>, vector<4x8xf32>, vector<4x8xf32>, vector<4x8xf32>, vector<4x8xf32>, vector<4x8xf32>, vector<4x8xf32>, vector<4x8xf32>, vector<4x8xf32>, vector<4x8xf32>, vector<4x8xf32>, vector<4x8xf32>, vector<4x8xf32> -> vector<4x128xf32>
    %697 = arith.truncf %696 : vector<4x128xf32> to vector<4x128xbf16>
    %cst_1149 = arith.constant dense<0.000000e+00> : vector<4x16xf32>
    %698 = tpu.matmul %697, %2, %cst_1149 {dimension_numbers = #tpu.dot_dimension_numbers<[1], [0], [0], [1], [0, 0, 1, 1], [], []>} : vector<4x128xbf16>, vector<128x16xbf16>, vector<4x16xf32> -> vector<4x16xf32>
    %699 = vector.broadcast %3 : vector<1x16xf32> to vector<4x16xf32>
    %700 = arith.addf %698, %699 : vector<4x16xf32>
    %cst_1150 = arith.constant 0.000000e+00 : f32
    %701 = vector.broadcast %cst_1150 : f32 to vector<4x16xf32>
    %702 = arith.maximumf %700, %701 : vector<4x16xf32>
    %c0_1151 = arith.constant 0 : index
    %c0_1152 = arith.constant 0 : index
    %c0_1153 = arith.constant 0 : index
    %c0_1154 = arith.constant 0 : index
    %703 = vector.load %arg9[%c0_1151, %c0_1152, %c0_1153, %c0_1154] : memref<1x4x4x16xf32, #tpu.memory_space<vmem>>, vector<1x1x4x16xf32>
    %704 = vector.shape_cast %703 : vector<1x1x4x16xf32> to vector<4x16xf32>
    %705 = vector.shape_cast %702 : vector<4x16xf32> to vector<1x1x4x16xf32>
    tpu.vector_store %arg9[%c0_1151, %c0_1152, %c0_1153, %c0_1154], %705 {strides = array<i32>} : memref<1x4x4x16xf32, #tpu.memory_space<vmem>>, vector<1x1x4x16xf32>,
    %c2_1155 = arith.constant 2 : index
    %c0_1156 = arith.constant 0 : index
    %c0_1157 = arith.constant 0 : index
    %706 = vector.load %arg10[%c2_1155, %c0_1156, %c0_1157] : memref<10x5x8xf32, #tpu.memory_space<vmem>>, vector<1x4x8xf32>
    %707 = vector.shape_cast %706 : vector<1x4x8xf32> to vector<4x8xf32>
    %c2_1158 = arith.constant 2 : index
    %c0_1159 = arith.constant 0 : index
    %c0_1160 = arith.constant 0 : index
    %708 = vector.load %arg11[%c2_1158, %c0_1159, %c0_1160] : memref<10x5x8xf32, #tpu.memory_space<vmem>>, vector<1x4x8xf32>
    %709 = vector.shape_cast %708 : vector<1x4x8xf32> to vector<4x8xf32>
    %c2_1161 = arith.constant 2 : index
    %c1_1162 = arith.constant 1 : index
    %c0_1163 = arith.constant 0 : index
    %710 = vector.load %arg10[%c2_1161, %c1_1162, %c0_1163] : memref<10x5x8xf32, #tpu.memory_space<vmem>>, vector<1x4x8xf32>
    %711 = vector.shape_cast %710 : vector<1x4x8xf32> to vector<4x8xf32>
    %c2_1164 = arith.constant 2 : index
    %c1_1165 = arith.constant 1 : index
    %c0_1166 = arith.constant 0 : index
    %712 = vector.load %arg11[%c2_1164, %c1_1165, %c0_1166] : memref<10x5x8xf32, #tpu.memory_space<vmem>>, vector<1x4x8xf32>
    %713 = vector.shape_cast %712 : vector<1x4x8xf32> to vector<4x8xf32>
    %c3_1167 = arith.constant 3 : index
    %c0_1168 = arith.constant 0 : index
    %c0_1169 = arith.constant 0 : index
    %714 = vector.load %arg10[%c3_1167, %c0_1168, %c0_1169] : memref<10x5x8xf32, #tpu.memory_space<vmem>>, vector<1x4x8xf32>
    %715 = vector.shape_cast %714 : vector<1x4x8xf32> to vector<4x8xf32>
    %c3_1170 = arith.constant 3 : index
    %c0_1171 = arith.constant 0 : index
    %c0_1172 = arith.constant 0 : index
    %716 = vector.load %arg11[%c3_1170, %c0_1171, %c0_1172] : memref<10x5x8xf32, #tpu.memory_space<vmem>>, vector<1x4x8xf32>
    %717 = vector.shape_cast %716 : vector<1x4x8xf32> to vector<4x8xf32>
    %c3_1173 = arith.constant 3 : index
    %c1_1174 = arith.constant 1 : index
    %c0_1175 = arith.constant 0 : index
    %718 = vector.load %arg10[%c3_1173, %c1_1174, %c0_1175] : memref<10x5x8xf32, #tpu.memory_space<vmem>>, vector<1x4x8xf32>
    %719 = vector.shape_cast %718 : vector<1x4x8xf32> to vector<4x8xf32>
    %c3_1176 = arith.constant 3 : index
    %c1_1177 = arith.constant 1 : index
    %c0_1178 = arith.constant 0 : index
    %720 = vector.load %arg11[%c3_1176, %c1_1177, %c0_1178] : memref<10x5x8xf32, #tpu.memory_space<vmem>>, vector<1x4x8xf32>
    %721 = vector.shape_cast %720 : vector<1x4x8xf32> to vector<4x8xf32>
    %c4_1179 = arith.constant 4 : index
    %c0_1180 = arith.constant 0 : index
    %c0_1181 = arith.constant 0 : index
    %722 = vector.load %arg10[%c4_1179, %c0_1180, %c0_1181] : memref<10x5x8xf32, #tpu.memory_space<vmem>>, vector<1x4x8xf32>
    %723 = vector.shape_cast %722 : vector<1x4x8xf32> to vector<4x8xf32>
    %c4_1182 = arith.constant 4 : index
    %c0_1183 = arith.constant 0 : index
    %c0_1184 = arith.constant 0 : index
    %724 = vector.load %arg11[%c4_1182, %c0_1183, %c0_1184] : memref<10x5x8xf32, #tpu.memory_space<vmem>>, vector<1x4x8xf32>
    %725 = vector.shape_cast %724 : vector<1x4x8xf32> to vector<4x8xf32>
    %c4_1185 = arith.constant 4 : index
    %c1_1186 = arith.constant 1 : index
    %c0_1187 = arith.constant 0 : index
    %726 = vector.load %arg10[%c4_1185, %c1_1186, %c0_1187] : memref<10x5x8xf32, #tpu.memory_space<vmem>>, vector<1x4x8xf32>
    %727 = vector.shape_cast %726 : vector<1x4x8xf32> to vector<4x8xf32>
    %c4_1188 = arith.constant 4 : index
    %c1_1189 = arith.constant 1 : index
    %c0_1190 = arith.constant 0 : index
    %728 = vector.load %arg11[%c4_1188, %c1_1189, %c0_1190] : memref<10x5x8xf32, #tpu.memory_space<vmem>>, vector<1x4x8xf32>
    %729 = vector.shape_cast %728 : vector<1x4x8xf32> to vector<4x8xf32>
    %c5_1191 = arith.constant 5 : index
    %c0_1192 = arith.constant 0 : index
    %c0_1193 = arith.constant 0 : index
    %730 = vector.load %arg10[%c5_1191, %c0_1192, %c0_1193] : memref<10x5x8xf32, #tpu.memory_space<vmem>>, vector<1x4x8xf32>
    %731 = vector.shape_cast %730 : vector<1x4x8xf32> to vector<4x8xf32>
    %c5_1194 = arith.constant 5 : index
    %c0_1195 = arith.constant 0 : index
    %c0_1196 = arith.constant 0 : index
    %732 = vector.load %arg11[%c5_1194, %c0_1195, %c0_1196] : memref<10x5x8xf32, #tpu.memory_space<vmem>>, vector<1x4x8xf32>
    %733 = vector.shape_cast %732 : vector<1x4x8xf32> to vector<4x8xf32>
    %c5_1197 = arith.constant 5 : index
    %c1_1198 = arith.constant 1 : index
    %c0_1199 = arith.constant 0 : index
    %734 = vector.load %arg10[%c5_1197, %c1_1198, %c0_1199] : memref<10x5x8xf32, #tpu.memory_space<vmem>>, vector<1x4x8xf32>
    %735 = vector.shape_cast %734 : vector<1x4x8xf32> to vector<4x8xf32>
    %c5_1200 = arith.constant 5 : index
    %c1_1201 = arith.constant 1 : index
    %c0_1202 = arith.constant 0 : index
    %736 = vector.load %arg11[%c5_1200, %c1_1201, %c0_1202] : memref<10x5x8xf32, #tpu.memory_space<vmem>>, vector<1x4x8xf32>
    %737 = vector.shape_cast %736 : vector<1x4x8xf32> to vector<4x8xf32>
    %738 = tpu.concatenate %707, %709, %711, %713, %715, %717, %719, %721, %723, %725, %727, %729, %731, %733, %735, %737 in 1 : vector<4x8xf32>, vector<4x8xf32>, vector<4x8xf32>, vector<4x8xf32>, vector<4x8xf32>, vector<4x8xf32>, vector<4x8xf32>, vector<4x8xf32>, vector<4x8xf32>, vector<4x8xf32>, vector<4x8xf32>, vector<4x8xf32>, vector<4x8xf32>, vector<4x8xf32>, vector<4x8xf32>, vector<4x8xf32> -> vector<4x128xf32>
    %739 = arith.truncf %738 : vector<4x128xf32> to vector<4x128xbf16>
    %cst_1203 = arith.constant dense<0.000000e+00> : vector<4x16xf32>
    %740 = tpu.matmul %739, %2, %cst_1203 {dimension_numbers = #tpu.dot_dimension_numbers<[1], [0], [0], [1], [0, 0, 1, 1], [], []>} : vector<4x128xbf16>, vector<128x16xbf16>, vector<4x16xf32> -> vector<4x16xf32>
    %741 = vector.broadcast %3 : vector<1x16xf32> to vector<4x16xf32>
    %742 = arith.addf %740, %741 : vector<4x16xf32>
    %cst_1204 = arith.constant 0.000000e+00 : f32
    %743 = vector.broadcast %cst_1204 : f32 to vector<4x16xf32>
    %744 = arith.maximumf %742, %743 : vector<4x16xf32>
    %c0_1205 = arith.constant 0 : index
    %c1_1206 = arith.constant 1 : index
    %c0_1207 = arith.constant 0 : index
    %c0_1208 = arith.constant 0 : index
    %745 = vector.load %arg9[%c0_1205, %c1_1206, %c0_1207, %c0_1208] : memref<1x4x4x16xf32, #tpu.memory_space<vmem>>, vector<1x1x4x16xf32>
    %746 = vector.shape_cast %745 : vector<1x1x4x16xf32> to vector<4x16xf32>
    %747 = vector.shape_cast %744 : vector<4x16xf32> to vector<1x1x4x16xf32>
    tpu.vector_store %arg9[%c0_1205, %c1_1206, %c0_1207, %c0_1208], %747 {strides = array<i32>} : memref<1x4x4x16xf32, #tpu.memory_space<vmem>>, vector<1x1x4x16xf32>,
    %c4_1209 = arith.constant 4 : index
    %c0_1210 = arith.constant 0 : index
    %c0_1211 = arith.constant 0 : index
    %748 = vector.load %arg10[%c4_1209, %c0_1210, %c0_1211] : memref<10x5x8xf32, #tpu.memory_space<vmem>>, vector<1x4x8xf32>
    %749 = vector.shape_cast %748 : vector<1x4x8xf32> to vector<4x8xf32>
    %c4_1212 = arith.constant 4 : index
    %c0_1213 = arith.constant 0 : index
    %c0_1214 = arith.constant 0 : index
    %750 = vector.load %arg11[%c4_1212, %c0_1213, %c0_1214] : memref<10x5x8xf32, #tpu.memory_space<vmem>>, vector<1x4x8xf32>
    %751 = vector.shape_cast %750 : vector<1x4x8xf32> to vector<4x8xf32>
    %c4_1215 = arith.constant 4 : index
    %c1_1216 = arith.constant 1 : index
    %c0_1217 = arith.constant 0 : index
    %752 = vector.load %arg10[%c4_1215, %c1_1216, %c0_1217] : memref<10x5x8xf32, #tpu.memory_space<vmem>>, vector<1x4x8xf32>
    %753 = vector.shape_cast %752 : vector<1x4x8xf32> to vector<4x8xf32>
    %c4_1218 = arith.constant 4 : index
    %c1_1219 = arith.constant 1 : index
    %c0_1220 = arith.constant 0 : index
    %754 = vector.load %arg11[%c4_1218, %c1_1219, %c0_1220] : memref<10x5x8xf32, #tpu.memory_space<vmem>>, vector<1x4x8xf32>
    %755 = vector.shape_cast %754 : vector<1x4x8xf32> to vector<4x8xf32>
    %c5_1221 = arith.constant 5 : index
    %c0_1222 = arith.constant 0 : index
    %c0_1223 = arith.constant 0 : index
    %756 = vector.load %arg10[%c5_1221, %c0_1222, %c0_1223] : memref<10x5x8xf32, #tpu.memory_space<vmem>>, vector<1x4x8xf32>
    %757 = vector.shape_cast %756 : vector<1x4x8xf32> to vector<4x8xf32>
    %c5_1224 = arith.constant 5 : index
    %c0_1225 = arith.constant 0 : index
    %c0_1226 = arith.constant 0 : index
    %758 = vector.load %arg11[%c5_1224, %c0_1225, %c0_1226] : memref<10x5x8xf32, #tpu.memory_space<vmem>>, vector<1x4x8xf32>
    %759 = vector.shape_cast %758 : vector<1x4x8xf32> to vector<4x8xf32>
    %c5_1227 = arith.constant 5 : index
    %c1_1228 = arith.constant 1 : index
    %c0_1229 = arith.constant 0 : index
    %760 = vector.load %arg10[%c5_1227, %c1_1228, %c0_1229] : memref<10x5x8xf32, #tpu.memory_space<vmem>>, vector<1x4x8xf32>
    %761 = vector.shape_cast %760 : vector<1x4x8xf32> to vector<4x8xf32>
    %c5_1230 = arith.constant 5 : index
    %c1_1231 = arith.constant 1 : index
    %c0_1232 = arith.constant 0 : index
    %762 = vector.load %arg11[%c5_1230, %c1_1231, %c0_1232] : memref<10x5x8xf32, #tpu.memory_space<vmem>>, vector<1x4x8xf32>
    %763 = vector.shape_cast %762 : vector<1x4x8xf32> to vector<4x8xf32>
    %c6_1233 = arith.constant 6 : index
    %c0_1234 = arith.constant 0 : index
    %c0_1235 = arith.constant 0 : index
    %764 = vector.load %arg10[%c6_1233, %c0_1234, %c0_1235] : memref<10x5x8xf32, #tpu.memory_space<vmem>>, vector<1x4x8xf32>
    %765 = vector.shape_cast %764 : vector<1x4x8xf32> to vector<4x8xf32>
    %c6_1236 = arith.constant 6 : index
    %c0_1237 = arith.constant 0 : index
    %c0_1238 = arith.constant 0 : index
    %766 = vector.load %arg11[%c6_1236, %c0_1237, %c0_1238] : memref<10x5x8xf32, #tpu.memory_space<vmem>>, vector<1x4x8xf32>
    %767 = vector.shape_cast %766 : vector<1x4x8xf32> to vector<4x8xf32>
    %c6_1239 = arith.constant 6 : index
    %c1_1240 = arith.constant 1 : index
    %c0_1241 = arith.constant 0 : index
    %768 = vector.load %arg10[%c6_1239, %c1_1240, %c0_1241] : memref<10x5x8xf32, #tpu.memory_space<vmem>>, vector<1x4x8xf32>
    %769 = vector.shape_cast %768 : vector<1x4x8xf32> to vector<4x8xf32>
    %c6_1242 = arith.constant 6 : index
    %c1_1243 = arith.constant 1 : index
    %c0_1244 = arith.constant 0 : index
    %770 = vector.load %arg11[%c6_1242, %c1_1243, %c0_1244] : memref<10x5x8xf32, #tpu.memory_space<vmem>>, vector<1x4x8xf32>
    %771 = vector.shape_cast %770 : vector<1x4x8xf32> to vector<4x8xf32>
    %c7_1245 = arith.constant 7 : index
    %c0_1246 = arith.constant 0 : index
    %c0_1247 = arith.constant 0 : index
    %772 = vector.load %arg10[%c7_1245, %c0_1246, %c0_1247] : memref<10x5x8xf32, #tpu.memory_space<vmem>>, vector<1x4x8xf32>
    %773 = vector.shape_cast %772 : vector<1x4x8xf32> to vector<4x8xf32>
    %c7_1248 = arith.constant 7 : index
    %c0_1249 = arith.constant 0 : index
    %c0_1250 = arith.constant 0 : index
    %774 = vector.load %arg11[%c7_1248, %c0_1249, %c0_1250] : memref<10x5x8xf32, #tpu.memory_space<vmem>>, vector<1x4x8xf32>
    %775 = vector.shape_cast %774 : vector<1x4x8xf32> to vector<4x8xf32>
    %c7_1251 = arith.constant 7 : index
    %c1_1252 = arith.constant 1 : index
    %c0_1253 = arith.constant 0 : index
    %776 = vector.load %arg10[%c7_1251, %c1_1252, %c0_1253] : memref<10x5x8xf32, #tpu.memory_space<vmem>>, vector<1x4x8xf32>
    %777 = vector.shape_cast %776 : vector<1x4x8xf32> to vector<4x8xf32>
    %c7_1254 = arith.constant 7 : index
    %c1_1255 = arith.constant 1 : index
    %c0_1256 = arith.constant 0 : index
    %778 = vector.load %arg11[%c7_1254, %c1_1255, %c0_1256] : memref<10x5x8xf32, #tpu.memory_space<vmem>>, vector<1x4x8xf32>
    %779 = vector.shape_cast %778 : vector<1x4x8xf32> to vector<4x8xf32>
    %780 = tpu.concatenate %749, %751, %753, %755, %757, %759, %761, %763, %765, %767, %769, %771, %773, %775, %777, %779 in 1 : vector<4x8xf32>, vector<4x8xf32>, vector<4x8xf32>, vector<4x8xf32>, vector<4x8xf32>, vector<4x8xf32>, vector<4x8xf32>, vector<4x8xf32>, vector<4x8xf32>, vector<4x8xf32>, vector<4x8xf32>, vector<4x8xf32>, vector<4x8xf32>, vector<4x8xf32>, vector<4x8xf32>, vector<4x8xf32> -> vector<4x128xf32>
    %781 = arith.truncf %780 : vector<4x128xf32> to vector<4x128xbf16>
    %cst_1257 = arith.constant dense<0.000000e+00> : vector<4x16xf32>
    %782 = tpu.matmul %781, %2, %cst_1257 {dimension_numbers = #tpu.dot_dimension_numbers<[1], [0], [0], [1], [0, 0, 1, 1], [], []>} : vector<4x128xbf16>, vector<128x16xbf16>, vector<4x16xf32> -> vector<4x16xf32>
    %783 = vector.broadcast %3 : vector<1x16xf32> to vector<4x16xf32>
    %784 = arith.addf %782, %783 : vector<4x16xf32>
    %cst_1258 = arith.constant 0.000000e+00 : f32
    %785 = vector.broadcast %cst_1258 : f32 to vector<4x16xf32>
    %786 = arith.maximumf %784, %785 : vector<4x16xf32>
    %c0_1259 = arith.constant 0 : index
    %c2_1260 = arith.constant 2 : index
    %c0_1261 = arith.constant 0 : index
    %c0_1262 = arith.constant 0 : index
    %787 = vector.load %arg9[%c0_1259, %c2_1260, %c0_1261, %c0_1262] : memref<1x4x4x16xf32, #tpu.memory_space<vmem>>, vector<1x1x4x16xf32>
    %788 = vector.shape_cast %787 : vector<1x1x4x16xf32> to vector<4x16xf32>
    %789 = vector.shape_cast %786 : vector<4x16xf32> to vector<1x1x4x16xf32>
    tpu.vector_store %arg9[%c0_1259, %c2_1260, %c0_1261, %c0_1262], %789 {strides = array<i32>} : memref<1x4x4x16xf32, #tpu.memory_space<vmem>>, vector<1x1x4x16xf32>,
    %c6_1263 = arith.constant 6 : index
    %c0_1264 = arith.constant 0 : index
    %c0_1265 = arith.constant 0 : index
    %790 = vector.load %arg10[%c6_1263, %c0_1264, %c0_1265] : memref<10x5x8xf32, #tpu.memory_space<vmem>>, vector<1x4x8xf32>
    %791 = vector.shape_cast %790 : vector<1x4x8xf32> to vector<4x8xf32>
    %c6_1266 = arith.constant 6 : index
    %c0_1267 = arith.constant 0 : index
    %c0_1268 = arith.constant 0 : index
    %792 = vector.load %arg11[%c6_1266, %c0_1267, %c0_1268] : memref<10x5x8xf32, #tpu.memory_space<vmem>>, vector<1x4x8xf32>
    %793 = vector.shape_cast %792 : vector<1x4x8xf32> to vector<4x8xf32>
    %c6_1269 = arith.constant 6 : index
    %c1_1270 = arith.constant 1 : index
    %c0_1271 = arith.constant 0 : index
    %794 = vector.load %arg10[%c6_1269, %c1_1270, %c0_1271] : memref<10x5x8xf32, #tpu.memory_space<vmem>>, vector<1x4x8xf32>
    %795 = vector.shape_cast %794 : vector<1x4x8xf32> to vector<4x8xf32>
    %c6_1272 = arith.constant 6 : index
    %c1_1273 = arith.constant 1 : index
    %c0_1274 = arith.constant 0 : index
    %796 = vector.load %arg11[%c6_1272, %c1_1273, %c0_1274] : memref<10x5x8xf32, #tpu.memory_space<vmem>>, vector<1x4x8xf32>
    %797 = vector.shape_cast %796 : vector<1x4x8xf32> to vector<4x8xf32>
    %c7_1275 = arith.constant 7 : index
    %c0_1276 = arith.constant 0 : index
    %c0_1277 = arith.constant 0 : index
    %798 = vector.load %arg10[%c7_1275, %c0_1276, %c0_1277] : memref<10x5x8xf32, #tpu.memory_space<vmem>>, vector<1x4x8xf32>
    %799 = vector.shape_cast %798 : vector<1x4x8xf32> to vector<4x8xf32>
    %c7_1278 = arith.constant 7 : index
    %c0_1279 = arith.constant 0 : index
    %c0_1280 = arith.constant 0 : index
    %800 = vector.load %arg11[%c7_1278, %c0_1279, %c0_1280] : memref<10x5x8xf32, #tpu.memory_space<vmem>>, vector<1x4x8xf32>
    %801 = vector.shape_cast %800 : vector<1x4x8xf32> to vector<4x8xf32>
    %c7_1281 = arith.constant 7 : index
    %c1_1282 = arith.constant 1 : index
    %c0_1283 = arith.constant 0 : index
    %802 = vector.load %arg10[%c7_1281, %c1_1282, %c0_1283] : memref<10x5x8xf32, #tpu.memory_space<vmem>>, vector<1x4x8xf32>
    %803 = vector.shape_cast %802 : vector<1x4x8xf32> to vector<4x8xf32>
    %c7_1284 = arith.constant 7 : index
    %c1_1285 = arith.constant 1 : index
    %c0_1286 = arith.constant 0 : index
    %804 = vector.load %arg11[%c7_1284, %c1_1285, %c0_1286] : memref<10x5x8xf32, #tpu.memory_space<vmem>>, vector<1x4x8xf32>
    %805 = vector.shape_cast %804 : vector<1x4x8xf32> to vector<4x8xf32>
    %c8_1287 = arith.constant 8 : index
    %c0_1288 = arith.constant 0 : index
    %c0_1289 = arith.constant 0 : index
    %806 = vector.load %arg10[%c8_1287, %c0_1288, %c0_1289] : memref<10x5x8xf32, #tpu.memory_space<vmem>>, vector<1x4x8xf32>
    %807 = vector.shape_cast %806 : vector<1x4x8xf32> to vector<4x8xf32>
    %c8_1290 = arith.constant 8 : index
    %c0_1291 = arith.constant 0 : index
    %c0_1292 = arith.constant 0 : index
    %808 = vector.load %arg11[%c8_1290, %c0_1291, %c0_1292] : memref<10x5x8xf32, #tpu.memory_space<vmem>>, vector<1x4x8xf32>
    %809 = vector.shape_cast %808 : vector<1x4x8xf32> to vector<4x8xf32>
    %c8_1293 = arith.constant 8 : index
    %c1_1294 = arith.constant 1 : index
    %c0_1295 = arith.constant 0 : index
    %810 = vector.load %arg10[%c8_1293, %c1_1294, %c0_1295] : memref<10x5x8xf32, #tpu.memory_space<vmem>>, vector<1x4x8xf32>
    %811 = vector.shape_cast %810 : vector<1x4x8xf32> to vector<4x8xf32>
    %c8_1296 = arith.constant 8 : index
    %c1_1297 = arith.constant 1 : index
    %c0_1298 = arith.constant 0 : index
    %812 = vector.load %arg11[%c8_1296, %c1_1297, %c0_1298] : memref<10x5x8xf32, #tpu.memory_space<vmem>>, vector<1x4x8xf32>
    %813 = vector.shape_cast %812 : vector<1x4x8xf32> to vector<4x8xf32>
    %c9_1299 = arith.constant 9 : index
    %c0_1300 = arith.constant 0 : index
    %c0_1301 = arith.constant 0 : index
    %814 = vector.load %arg10[%c9_1299, %c0_1300, %c0_1301] : memref<10x5x8xf32, #tpu.memory_space<vmem>>, vector<1x4x8xf32>
    %815 = vector.shape_cast %814 : vector<1x4x8xf32> to vector<4x8xf32>
    %c9_1302 = arith.constant 9 : index
    %c0_1303 = arith.constant 0 : index
    %c0_1304 = arith.constant 0 : index
    %816 = vector.load %arg11[%c9_1302, %c0_1303, %c0_1304] : memref<10x5x8xf32, #tpu.memory_space<vmem>>, vector<1x4x8xf32>
    %817 = vector.shape_cast %816 : vector<1x4x8xf32> to vector<4x8xf32>
    %c9_1305 = arith.constant 9 : index
    %c1_1306 = arith.constant 1 : index
    %c0_1307 = arith.constant 0 : index
    %818 = vector.load %arg10[%c9_1305, %c1_1306, %c0_1307] : memref<10x5x8xf32, #tpu.memory_space<vmem>>, vector<1x4x8xf32>
    %819 = vector.shape_cast %818 : vector<1x4x8xf32> to vector<4x8xf32>
    %c9_1308 = arith.constant 9 : index
    %c1_1309 = arith.constant 1 : index
    %c0_1310 = arith.constant 0 : index
    %820 = vector.load %arg11[%c9_1308, %c1_1309, %c0_1310] : memref<10x5x8xf32, #tpu.memory_space<vmem>>, vector<1x4x8xf32>
    %821 = vector.shape_cast %820 : vector<1x4x8xf32> to vector<4x8xf32>
    %822 = tpu.concatenate %791, %793, %795, %797, %799, %801, %803, %805, %807, %809, %811, %813, %815, %817, %819, %821 in 1 : vector<4x8xf32>, vector<4x8xf32>, vector<4x8xf32>, vector<4x8xf32>, vector<4x8xf32>, vector<4x8xf32>, vector<4x8xf32>, vector<4x8xf32>, vector<4x8xf32>, vector<4x8xf32>, vector<4x8xf32>, vector<4x8xf32>, vector<4x8xf32>, vector<4x8xf32>, vector<4x8xf32>, vector<4x8xf32> -> vector<4x128xf32>
    %823 = arith.truncf %822 : vector<4x128xf32> to vector<4x128xbf16>
    %cst_1311 = arith.constant dense<0.000000e+00> : vector<4x16xf32>
    %824 = tpu.matmul %823, %2, %cst_1311 {dimension_numbers = #tpu.dot_dimension_numbers<[1], [0], [0], [1], [0, 0, 1, 1], [], []>} : vector<4x128xbf16>, vector<128x16xbf16>, vector<4x16xf32> -> vector<4x16xf32>
    %825 = vector.broadcast %3 : vector<1x16xf32> to vector<4x16xf32>
    %826 = arith.addf %824, %825 : vector<4x16xf32>
    %cst_1312 = arith.constant 0.000000e+00 : f32
    %827 = vector.broadcast %cst_1312 : f32 to vector<4x16xf32>
    %828 = arith.maximumf %826, %827 : vector<4x16xf32>
    %c0_1313 = arith.constant 0 : index
    %c3_1314 = arith.constant 3 : index
    %c0_1315 = arith.constant 0 : index
    %c0_1316 = arith.constant 0 : index
    %829 = vector.load %arg9[%c0_1313, %c3_1314, %c0_1315, %c0_1316] : memref<1x4x4x16xf32, #tpu.memory_space<vmem>>, vector<1x1x4x16xf32>
    %830 = vector.shape_cast %829 : vector<1x1x4x16xf32> to vector<4x16xf32>
    %831 = vector.shape_cast %828 : vector<4x16xf32> to vector<1x1x4x16xf32>
    tpu.vector_store %arg9[%c0_1313, %c3_1314, %c0_1315, %c0_1316], %831 {strides = array<i32>} : memref<1x4x4x16xf32, #tpu.memory_space<vmem>>, vector<1x1x4x16xf32>,
    return
  }
  func.func @transform_0(%arg0: i32) -> (i32, i32, i32, i32) {
    %c0_i32 = arith.constant 0 : i32
    %c0_i32_0 = arith.constant 0 : i32
    %c0_i32_1 = arith.constant 0 : i32
    %c0_i32_2 = arith.constant 0 : i32
    return %arg0, %c0_i32, %c0_i32_0, %c0_i32_1 : i32, i32, i32, i32
  }
  func.func @transform_1(%arg0: i32) -> (i32, i32, i32, i32) {
    %c0_i32 = arith.constant 0 : i32
    %c0_i32_0 = arith.constant 0 : i32
    %c0_i32_1 = arith.constant 0 : i32
    %c0_i32_2 = arith.constant 0 : i32
    return %arg0, %c0_i32, %c0_i32_0, %c0_i32_1 : i32, i32, i32, i32
  }
  func.func @transform_2(%arg0: i32) -> (i32, i32, i32, i32) {
    %c0_i32 = arith.constant 0 : i32
    %c0_i32_0 = arith.constant 0 : i32
    %c0_i32_1 = arith.constant 0 : i32
    %c0_i32_2 = arith.constant 0 : i32
    return %arg0, %c0_i32, %c0_i32_0, %c0_i32_1 : i32, i32, i32, i32
  }
  func.func @transform_3(%arg0: i32) -> (i32, i32, i32, i32) {
    %c0_i32 = arith.constant 0 : i32
    %c0_i32_0 = arith.constant 0 : i32
    %c0_i32_1 = arith.constant 0 : i32
    %c0_i32_2 = arith.constant 0 : i32
    return %arg0, %c0_i32, %c0_i32_0, %c0_i32_1 : i32, i32, i32, i32
  }
  func.func @transform_4(%arg0: i32) -> (i32, i32) {
    %c0_i32 = arith.constant 0 : i32
    %c0_i32_0 = arith.constant 0 : i32
    %c0_i32_1 = arith.constant 0 : i32
    return %c0_i32, %c0_i32_0 : i32, i32
  }
  func.func @transform_5(%arg0: i32) -> (i32, i32) {
    %c0_i32 = arith.constant 0 : i32
    %c0_i32_0 = arith.constant 0 : i32
    %c0_i32_1 = arith.constant 0 : i32
    return %c0_i32, %c0_i32_0 : i32, i32
  }
  func.func @transform_6(%arg0: i32) -> (i32, i32) {
    %c0_i32 = arith.constant 0 : i32
    %c0_i32_0 = arith.constant 0 : i32
    %c0_i32_1 = arith.constant 0 : i32
    return %c0_i32, %c0_i32_0 : i32, i32
  }
  func.func @transform_7(%arg0: i32) -> (i32, i32) {
    %c0_i32 = arith.constant 0 : i32
    %c0_i32_0 = arith.constant 0 : i32
    %c0_i32_1 = arith.constant 0 : i32
    return %c0_i32, %c0_i32_0 : i32, i32
  }
  func.func @transform_8(%arg0: i32) -> (i32, i32, i32, i32) {
    %c0_i32 = arith.constant 0 : i32
    %c0_i32_0 = arith.constant 0 : i32
    %c0_i32_1 = arith.constant 0 : i32
    %c0_i32_2 = arith.constant 0 : i32
    return %arg0, %c0_i32, %c0_i32_0, %c0_i32_1 : i32, i32, i32, i32
  }
}

</mosaic_0001>

<llo_original>
// kernel: _lambda_.1
$region0: #{_lambda_.1}
  #allocation0 [shape = 'u32[]', space=smem, size = 0x4, offset = 0x4, fixed_abs, tag = 'smem constant byte address 0x4 - core index']
  #allocation1 [shape = 'u32[72,128]{1,0:T(1,128)}', space=vmem, size = 0x9000, scoped, tag = 'internal scratch']
  #allocation2 [shape = 'f32[10,5,8]{2,1,0:T(8,128)}', space=vmem, size = 0xa000, scoped, tag = 'scratch operand']
  #allocation3 [shape = 'f32[10,5,8]{2,1,0:T(8,128)}', space=vmem, size = 0xa000, scoped, tag = 'scratch operand']
  %s0 = inlined_call_operand.vmem [shape: bf16[2,18,5,8], index: 0, kind: input, shape index: {}]
  %s1 = inlined_call_operand.vmem [shape: bf16[2,18,5,8], index: 1, kind: input, shape index: {}]
  %s2 = inlined_call_operand.vmem [shape: bf16[2,18,4,8], index: 2, kind: input, shape index: {}]
  %s3 = inlined_call_operand.vmem [shape: bf16[2,18,4,8], index: 3, kind: input, shape index: {}]
  %s4 = inlined_call_operand.vmem [shape: bf16[128,8], index: 4, kind: input, shape index: {}]
  %s5 = inlined_call_operand.vmem [shape: f32[1,8], index: 5, kind: input, shape index: {}]
  %s6 = inlined_call_operand.vmem [shape: bf16[128,16], index: 6, kind: input, shape index: {}]
  %s7 = inlined_call_operand.vmem [shape: f32[1,16], index: 7, kind: input, shape index: {}]
  %s8 = inlined_call_operand.hbm [shape: f32[2,4,4,16], index: 8, kind: output, shape index: {}]
  %s9 = sld [smem:[#allocation0]]
  $region65: #{_lambda_.1} parent=0
    _
  %s11 = ssub.s32 1, %s9
  %s12 = scalar_select 0, %s11, %s9
  $region1: #{_lambda_.1} parent=0
    #allocation4 [shape = 'u8[16384]{0}', space=vmem, size = 0x4000, scoped, tag = 'output window, operand 0']
    #allocation5 [shape = 's32[2]{0}', space=sflag, size = 0x8, scoped, tag = 'scoped memory for _lambda_.1']
    %13 = vsyncpa [#allocation5], 0
    %s14 = scalar_lea.sflag [#allocation5], 1
    %15 = vsyncpa %s14, 0
    loop: start=0, step=1, limit=4
    $region2: #{_lambda_.1} parent=1 // loop_pre_header
      _
    $region3: #{_lambda_.1} parent=1 // loop_header
      %s17 = sphi 0, %s21
      %p18 = scmp.ge.s32.totalorder %s17, 4
      %s27 = sphi 0, %s29
      %s30 = sphi 0, %s27
      %s31 = sphi 0, %s30
      %s47 = sphi 0, %s31
      %s53 = sphi 0, %s55
      %s56 = sphi 0, %s53
      %s57 = sphi 0, %s56
      %s73 = sphi 0, %s57
      %s79 = sphi 0, %s81
      %s82 = sphi 0, %s79
      %s83 = sphi 0, %s82
      %s99 = sphi 0, %s83
      %s105 = sphi 0, %s107
      %s108 = sphi 0, %s105
      %s109 = sphi 0, %s108
      %s125 = sphi 0, %s109
      %s129 = sphi 0, %s129
      %s131 = sphi 0, %s129
      %s132 = sphi 0, %s131
      %s146 = sphi 0, %s132
      %s150 = sphi 0, %s150
      %s152 = sphi 0, %s150
      %s153 = sphi 0, %s152
      %s167 = sphi 0, %s153
      %s171 = sphi 0, %s171
      %s173 = sphi 0, %s171
      %s174 = sphi 0, %s173
      %s188 = sphi 0, %s174
      %s192 = sphi 0, %s192
      %s194 = sphi 0, %s192
      %s195 = sphi 0, %s194
      %s209 = sphi 0, %s195
      %s215 = sphi 0, %s217
      %s218 = sphi 0, %s215
      %s219 = sphi 0, %s218
      %s235 = sphi 0, %s219
    $region4: #{_lambda_.1} parent=1 // loop_header_branch
      %20 = sbr.rel (%p18) target = $region8
    $region5: #{_lambda_.1} parent=1 // loop_body
      %s22 = ssub.s32 %s17, 1
      %s23 = ssub.s32 %s17, 2
      %s24 = sadd.s32 %s17, 1
      %s25 = ssub.s32 %s17, %s24
      %p26 = scmp.eq.s32.totalorder %s25, 0
      %s28 = sadd.s32 %s27, 1
      %s29 = scalar_select %p26, %s27, %s28
      %p32 = pneg %p26
      %p33 = scmp.eq.s32.totalorder %s17, 1
      %p34 = por %p32, %p33
      %p35 = scmp.ne.s32.totalorder %s27, %s30
      %p36 = scmp.eq.s32.totalorder %s17, 0
      %p37 = por %p35, %p36
      %p38 = scmp.ne.s32.totalorder %s27, %s30
      %p39 = scmp.eq.s32.totalorder %s22, 1
      %p40 = por %p38, %p39
      %p41 = scmp.ne.s32.totalorder %s30, %s31
      %p42 = scmp.eq.s32.totalorder %s22, 0
      %p43 = por %p41, %p42
      %p44 = scmp.ne.s32.totalorder %s30, %s31
      %p45 = scmp.eq.s32.totalorder %s23, 1
      %p46 = por %p44, %p45
      %p48 = scmp.ne.s32.totalorder %s31, %s47
      %p49 = scmp.eq.s32.totalorder %s23, 0
      %p50 = por %p48, %p49
      %s51 = ssub.s32 %s17, %s24
      %p52 = scmp.eq.s32.totalorder %s51, 0
      %s54 = sadd.s32 %s53, 1
      %s55 = scalar_select %p52, %s53, %s54
      %p58 = pneg %p52
      %p59 = scmp.eq.s32.totalorder %s17, 1
      %p60 = por %p58, %p59
      %p61 = scmp.ne.s32.totalorder %s53, %s56
      %p62 = scmp.eq.s32.totalorder %s17, 0
      %p63 = por %p61, %p62
      %p64 = scmp.ne.s32.totalorder %s53, %s56
      %p65 = scmp.eq.s32.totalorder %s22, 1
      %p66 = por %p64, %p65
      %p67 = scmp.ne.s32.totalorder %s56, %s57
      %p68 = scmp.eq.s32.totalorder %s22, 0
      %p69 = por %p67, %p68
      %p70 = scmp.ne.s32.totalorder %s56, %s57
      %p71 = scmp.eq.s32.totalorder %s23, 1
      %p72 = por %p70, %p71
      %p74 = scmp.ne.s32.totalorder %s57, %s73
      %p75 = scmp.eq.s32.totalorder %s23, 0
      %p76 = por %p74, %p75
      %s77 = ssub.s32 %s17, %s24
      %p78 = scmp.eq.s32.totalorder %s77, 0
      %s80 = sadd.s32 %s79, 1
      %s81 = scalar_select %p78, %s79, %s80
      %p84 = pneg %p78
      %p85 = scmp.eq.s32.totalorder %s17, 1
      %p86 = por %p84, %p85
      %p87 = scmp.ne.s32.totalorder %s79, %s82
      %p88 = scmp.eq.s32.totalorder %s17, 0
      %p89 = por %p87, %p88
      %p90 = scmp.ne.s32.totalorder %s79, %s82
      %p91 = scmp.eq.s32.totalorder %s22, 1
      %p92 = por %p90, %p91
      %p93 = scmp.ne.s32.totalorder %s82, %s83
      %p94 = scmp.eq.s32.totalorder %s22, 0
      %p95 = por %p93, %p94
      %p96 = scmp.ne.s32.totalorder %s82, %s83
      %p97 = scmp.eq.s32.totalorder %s23, 1
      %p98 = por %p96, %p97
      %p100 = scmp.ne.s32.totalorder %s83, %s99
      %p101 = scmp.eq.s32.totalorder %s23, 0
      %p102 = por %p100, %p101
      %s103 = ssub.s32 %s17, %s24
      %p104 = scmp.eq.s32.totalorder %s103, 0
      %s106 = sadd.s32 %s105, 1
      %s107 = scalar_select %p104, %s105, %s106
      %p110 = pneg %p104
      %p111 = scmp.eq.s32.totalorder %s17, 1
      %p112 = por %p110, %p111
      %p113 = scmp.ne.s32.totalorder %s105, %s108
      %p114 = scmp.eq.s32.totalorder %s17, 0
      %p115 = por %p113, %p114
      %p116 = scmp.ne.s32.totalorder %s105, %s108
      %p117 = scmp.eq.s32.totalorder %s22, 1
      %p118 = por %p116, %p117
      %p119 = scmp.ne.s32.totalorder %s108, %s109
      %p120 = scmp.eq.s32.totalorder %s22, 0
      %p121 = por %p119, %p120
      %p122 = scmp.ne.s32.totalorder %s108, %s109
      %p123 = scmp.eq.s32.totalorder %s23, 1
      %p124 = por %p122, %p123
      %p126 = scmp.ne.s32.totalorder %s109, %s125
      %p127 = scmp.eq.s32.totalorder %s23, 0
      %p128 = por %p126, %p127
      %s130 = sadd.s32 %s129, 1
      %p133 = scmp.eq.s32.totalorder %s17, 1
      %p134 = scmp.ne.s32.totalorder %s129, %s131
      %p135 = scmp.eq.s32.totalorder %s17, 0
      %p136 = por %p134, %p135
      %p137 = scmp.ne.s32.totalorder %s129, %s131
      %p138 = scmp.eq.s32.totalorder %s22, 1
      %p139 = por %p137, %p138
      %p140 = scmp.ne.s32.totalorder %s131, %s132
      %p141 = scmp.eq.s32.totalorder %s22, 0
      %p142 = por %p140, %p141
      %p143 = scmp.ne.s32.totalorder %s131, %s132
      %p144 = scmp.eq.s32.totalorder %s23, 1
      %p145 = por %p143, %p144
      %p147 = scmp.ne.s32.totalorder %s132, %s146
      %p148 = scmp.eq.s32.totalorder %s23, 0
      %p149 = por %p147, %p148
      %s151 = sadd.s32 %s150, 1
      %p154 = scmp.eq.s32.totalorder %s17, 1
      %p155 = scmp.ne.s32.totalorder %s150, %s152
      %p156 = scmp.eq.s32.totalorder %s17, 0
      %p157 = por %p155, %p156
      %p158 = scmp.ne.s32.totalorder %s150, %s152
      %p159 = scmp.eq.s32.totalorder %s22, 1
      %p160 = por %p158, %p159
      %p161 = scmp.ne.s32.totalorder %s152, %s153
      %p162 = scmp.eq.s32.totalorder %s22, 0
      %p163 = por %p161, %p162
      %p164 = scmp.ne.s32.totalorder %s152, %s153
      %p165 = scmp.eq.s32.totalorder %s23, 1
      %p166 = por %p164, %p165
      %p168 = scmp.ne.s32.totalorder %s153, %s167
      %p169 = scmp.eq.s32.totalorder %s23, 0
      %p170 = por %p168, %p169
      %s172 = sadd.s32 %s171, 1
      %p175 = scmp.eq.s32.totalorder %s17, 1
      %p176 = scmp.ne.s32.totalorder %s171, %s173
      %p177 = scmp.eq.s32.totalorder %s17, 0
      %p178 = por %p176, %p177
      %p179 = scmp.ne.s32.totalorder %s171, %s173
      %p180 = scmp.eq.s32.totalorder %s22, 1
      %p181 = por %p179, %p180
      %p182 = scmp.ne.s32.totalorder %s173, %s174
      %p183 = scmp.eq.s32.totalorder %s22, 0
      %p184 = por %p182, %p183
      %p185 = scmp.ne.s32.totalorder %s173, %s174
      %p186 = scmp.eq.s32.totalorder %s23, 1
      %p187 = por %p185, %p186
      %p189 = scmp.ne.s32.totalorder %s174, %s188
      %p190 = scmp.eq.s32.totalorder %s23, 0
      %p191 = por %p189, %p190
      %s193 = sadd.s32 %s192, 1
      %p196 = scmp.eq.s32.totalorder %s17, 1
      %p197 = scmp.ne.s32.totalorder %s192, %s194
      %p198 = scmp.eq.s32.totalorder %s17, 0
      %p199 = por %p197, %p198
      %p200 = scmp.ne.s32.totalorder %s192, %s194
      %p201 = scmp.eq.s32.totalorder %s22, 1
      %p202 = por %p200, %p201
      %p203 = scmp.ne.s32.totalorder %s194, %s195
      %p204 = scmp.eq.s32.totalorder %s22, 0
      %p205 = por %p203, %p204
      %p206 = scmp.ne.s32.totalorder %s194, %s195
      %p207 = scmp.eq.s32.totalorder %s23, 1
      %p208 = por %p206, %p207
      %p210 = scmp.ne.s32.totalorder %s195, %s209
      %p211 = scmp.eq.s32.totalorder %s23, 0
      %p212 = por %p210, %p211
      %s213 = ssub.s32 %s17, %s24
      %p214 = scmp.eq.s32.totalorder %s213, 0
      %s216 = sadd.s32 %s215, 1
      %s217 = scalar_select %p214, %s215, %s216
      %p220 = pneg %p214
      %p221 = scmp.eq.s32.totalorder %s17, 1
      %p222 = por %p220, %p221
      %p223 = scmp.ne.s32.totalorder %s215, %s218
      %p224 = scmp.eq.s32.totalorder %s17, 0
      %p225 = por %p223, %p224
      %p226 = scmp.ne.s32.totalorder %s215, %s218
      %p227 = scmp.eq.s32.totalorder %s22, 1
      %p228 = por %p226, %p227
      %p229 = scmp.ne.s32.totalorder %s218, %s219
      %p230 = scmp.eq.s32.totalorder %s22, 0
      %p231 = por %p229, %p230
      %p232 = scmp.ne.s32.totalorder %s218, %s219
      %p233 = scmp.eq.s32.totalorder %s23, 1
      %p234 = por %p232, %p233
      %p236 = scmp.ne.s32.totalorder %s219, %s235
      %p237 = scmp.eq.s32.totalorder %s23, 0
      %p238 = por %p236, %p237
      %p239 = scmp.le.s32.totalorder 1, %s17
      %p240 = scmp.lt.s32.totalorder %s17, 3
      %p241 = pnand %p239, %p240
      %p242 = pneg %p241
      // Predicated region
      $region9: #{_lambda_.1} parent=5 // pred_check
        _
      $region10: #{_lambda_.1} parent=5 // pred_check_branch
        %244 = sbr.rel (%p241) target = $region12
      $region11: #{_lambda_.1} parent=5 // pred_region
        %s245 = ssub.s32 %s17, 1
        // Predicated region
        $region13: #{_lambda_.1} parent=11 // pred_check
          %p246 = pneg %p142
        $region14: #{_lambda_.1} parent=11 // pred_check_branch
          %248 = sbr.rel (%p246) target = $region16
        $region15: #{_lambda_.1} parent=11 // pred_region
          _
        $region16: #{_lambda_.1} parent=11 // pred_fallthru
          _
        // Predicated region
        $region17: #{_lambda_.1} parent=11 // pred_check
          %p249 = pneg %p163
        $region18: #{_lambda_.1} parent=11 // pred_check_branch
          %251 = sbr.rel (%p249) target = $region20
        $region19: #{_lambda_.1} parent=11 // pred_region
          _
        $region20: #{_lambda_.1} parent=11 // pred_fallthru
          _
        // Predicated region
        $region21: #{_lambda_.1} parent=11 // pred_check
          %p252 = pneg %p184
        $region22: #{_lambda_.1} parent=11 // pred_check_branch
          %254 = sbr.rel (%p252) target = $region24
        $region23: #{_lambda_.1} parent=11 // pred_region
          _
        $region24: #{_lambda_.1} parent=11 // pred_fallthru
          _
        // Predicated region
        $region25: #{_lambda_.1} parent=11 // pred_check
          %p255 = pneg %p205
        $region26: #{_lambda_.1} parent=11 // pred_check_branch
          %257 = sbr.rel (%p255) target = $region28
        $region27: #{_lambda_.1} parent=11 // pred_region
          _
        $region28: #{_lambda_.1} parent=11 // pred_fallthru
          _
      $region12: #{_lambda_.1} parent=5 // pred_fallthru
        _
      %p258 = scmp.lt.s32.totalorder %s17, 2
      // Predicated region
      $region29: #{_lambda_.1} parent=5 // pred_check
        %p259 = pneg %p258
      $region30: #{_lambda_.1} parent=5 // pred_check_branch
        %261 = sbr.rel (%p259) target = $region32
      $region31: #{_lambda_.1} parent=5 // pred_region
        // Predicated region
        $region33: #{_lambda_.1} parent=31 // pred_check
          %p262 = pneg %p37
        $region34: #{_lambda_.1} parent=31 // pred_check_branch
          %264 = sbr.rel (%p262) target = $region36
        $region35: #{_lambda_.1} parent=31 // pred_region
          %p265 = scmp.lt.s32.totalorder %s17, 1
          %s266 = scalar_select %p265, %s17, 1
          %s267 = smul.addr %s266, 18
          %s268 = smul.addr %s267, 4
          %s269 = scalar_lea.vmem %s0, %s268
        $region36: #{_lambda_.1} parent=31 // pred_fallthru
          _
        // Predicated region
        $region37: #{_lambda_.1} parent=31 // pred_check
          %p270 = pneg %p63
        $region38: #{_lambda_.1} parent=31 // pred_check_branch
          %272 = sbr.rel (%p270) target = $region40
        $region39: #{_lambda_.1} parent=31 // pred_region
          %p273 = scmp.lt.s32.totalorder %s17, 1
          %s274 = scalar_select %p273, %s17, 1
          %s275 = smul.addr %s274, 18
          %s276 = smul.addr %s275, 4
          %s277 = scalar_lea.vmem %s1, %s276
        $region40: #{_lambda_.1} parent=31 // pred_fallthru
          _
        // Predicated region
        $region41: #{_lambda_.1} parent=31 // pred_check
          %p278 = pneg %p89
        $region42: #{_lambda_.1} parent=31 // pred_check_branch
          %280 = sbr.rel (%p278) target = $region44
        $region43: #{_lambda_.1} parent=31 // pred_region
          %p281 = scmp.lt.s32.totalorder %s17, 1
          %s282 = scalar_select %p281, %s17, 1
          %s283 = smul.addr %s282, 18
          %s284 = smul.addr %s283, 2
          %s285 = scalar_lea.vmem %s2, %s284
        $region44: #{_lambda_.1} parent=31 // pred_fallthru
          _
        // Predicated region
        $region45: #{_lambda_.1} parent=31 // pred_check
          %p286 = pneg %p115
        $region46: #{_lambda_.1} parent=31 // pred_check_branch
          %288 = sbr.rel (%p286) target = $region48
        $region47: #{_lambda_.1} parent=31 // pred_region
          %p289 = scmp.lt.s32.totalorder %s17, 1
          %s290 = scalar_select %p289, %s17, 1
          %s291 = smul.addr %s290, 18
          %s292 = smul.addr %s291, 2
          %s293 = scalar_lea.vmem %s3, %s292
        $region48: #{_lambda_.1} parent=31 // pred_fallthru
          _
      $region32: #{_lambda_.1} parent=5 // pred_fallthru
        _
      %p294 = scmp.le.s32.totalorder 1, %s17
      %p295 = scmp.lt.s32.totalorder %s17, 3
      %p296 = pnand %p294, %p295
      %p297 = pneg %p296
      // Predicated region
      $region49: #{_lambda_.1} parent=5 // pred_check
        _
      $region50: #{_lambda_.1} parent=5 // pred_check_branch
        %299 = sbr.rel (%p296) target = $region52
      $region51: #{_lambda_.1} parent=5 // pred_region
        %s300 = ssub.s32 %s17, 1
        %p301 = scmp.lt.s32.totalorder %s22, 1
        %s302 = scalar_select %p301, %s22, 1
        %s303 = smul.addr %s302, 18
        %s304 = smul.addr %s303, 4
        %s305 = scalar_lea.vmem %s0, %s304
        %p306 = pneg %p43
        %p307 = pneg %p40
        %p308 = scmp.lt.s32.totalorder %s22, 1
        %s309 = scalar_select %p308, %s22, 1
        %s310 = smul.addr %s309, 18
        %s311 = smul.addr %s310, 4
        %s312 = scalar_lea.vmem %s1, %s311
        %p313 = pneg %p69
        %p314 = pneg %p66
        %p315 = scmp.lt.s32.totalorder %s22, 1
        %s316 = scalar_select %p315, %s22, 1
        %s317 = smul.addr %s316, 18
        %s318 = smul.addr %s317, 2
        %s319 = scalar_lea.vmem %s2, %s318
        %p320 = pneg %p95
        %p321 = pneg %p92
        %p322 = scmp.lt.s32.totalorder %s22, 1
        %s323 = scalar_select %p322, %s22, 1
        %s324 = smul.addr %s323, 18
        %s325 = smul.addr %s324, 2
        %s326 = scalar_lea.vmem %s3, %s325
        %p327 = pneg %p121
        %p328 = pneg %p118
        %p329 = pneg %p142
        %p330 = pneg %p139
        %p331 = pneg %p163
        %p332 = pneg %p160
        %p333 = pneg %p184
        %p334 = pneg %p181
        %p335 = pneg %p205
        %p336 = pneg %p202
        %p337 = pneg %p231
        %p338 = pneg %p228
        %s339 = sand.u32 %s218, 1
        %s340 = scalar_lea.sflag [#allocation5], %s339
        %s341 = sand.u32 %s218, 1
        %s342 = smul.addr %s341, 16
        %s343 = scalar_lea.vmem [#allocation4], %s342
        %p344 = scmp.lt.s32.totalorder %s22, 1
        %s345 = scalar_select %p344, %s22, 1
        %s346 = smul.addr %s345, 18
        %s347 = smul.addr %s346, 4
        %s348 = scalar_lea.vmem %s0, %s347
        %p349 = scmp.lt.s32.totalorder %s22, 1
        %s350 = scalar_select %p349, %s22, 1
        %s351 = smul.addr %s350, 18
        %s352 = smul.addr %s351, 4
        %s353 = scalar_lea.vmem %s1, %s352
        %p354 = scmp.lt.s32.totalorder %s22, 1
        %s355 = scalar_select %p354, %s22, 1
        %s356 = smul.addr %s355, 18
        %s357 = smul.addr %s356, 2
        %s358 = scalar_lea.vmem %s2, %s357
        %p359 = scmp.lt.s32.totalorder %s22, 1
        %s360 = scalar_select %p359, %s22, 1
        %s361 = smul.addr %s360, 18
        %s362 = smul.addr %s361, 2
        %s363 = scalar_lea.vmem %s3, %s362
        %v364 = vld [vmem:[%s4] sm:$0xf]
        %v365 = vld [vmem:[%s4 + $0x4] sm:$0xf]
        %v366 = vld [vmem:[%s4 + $0x8] sm:$0xf]
        %v367 = vld [vmem:[%s4 + $0xc] sm:$0xf]
        %v368 = vld [vmem:[%s4 + $0x10] sm:$0xf]
        %v369 = vld [vmem:[%s4 + $0x14] sm:$0xf]
        %v370 = vld [vmem:[%s4 + $0x18] sm:$0xf]
        %v371 = vld [vmem:[%s4 + $0x1c] sm:$0xf]
        %v372 = vld [vmem:[%s4 + $0x20] sm:$0xf]
        %v373 = vld [vmem:[%s4 + $0x24] sm:$0xf]
        %v374 = vld [vmem:[%s4 + $0x28] sm:$0xf]
        %v375 = vld [vmem:[%s4 + $0x2c] sm:$0xf]
        %v376 = vld [vmem:[%s4 + $0x30] sm:$0xf]
        %v377 = vld [vmem:[%s4 + $0x34] sm:$0xf]
        %v378 = vld [vmem:[%s4 + $0x38] sm:$0xf]
        %v379 = vld [vmem:[%s4 + $0x3c] sm:$0xf]
        %v380 = vld [vmem:[%s5] sm:$0x1]
        %v381 = vld [vmem:[%s6] sm:$0xf]
        %v382 = vld [vmem:[%s6 + $0x4] sm:$0xf]
        %v383 = vld [vmem:[%s6 + $0x8] sm:$0xf]
        %v384 = vld [vmem:[%s6 + $0xc] sm:$0xf]
        %v385 = vld [vmem:[%s6 + $0x10] sm:$0xf]
        %v386 = vld [vmem:[%s6 + $0x14] sm:$0xf]
        %v387 = vld [vmem:[%s6 + $0x18] sm:$0xf]
        %v388 = vld [vmem:[%s6 + $0x1c] sm:$0xf]
        %v389 = vld [vmem:[%s6 + $0x20] sm:$0xf]
        %v390 = vld [vmem:[%s6 + $0x24] sm:$0xf]
        %v391 = vld [vmem:[%s6 + $0x28] sm:$0xf]
        %v392 = vld [vmem:[%s6 + $0x2c] sm:$0xf]
        %v393 = vld [vmem:[%s6 + $0x30] sm:$0xf]
        %v394 = vld [vmem:[%s6 + $0x34] sm:$0xf]
        %v395 = vld [vmem:[%s6 + $0x38] sm:$0xf]
        %v396 = vld [vmem:[%s6 + $0x3c] sm:$0xf]
        %v397 = vld [vmem:[%s7] sm:$0x1]
        %vm398 = vcmask 61440
        %399 = vst.msk [vmem:[#allocation2] sm:$0x1f] %vm398, 0.0
        %400 = vst.msk [vmem:[#allocation2 + $0x8] sm:$0x1f] %vm398, 0.0
        %401 = vst.msk [vmem:[#allocation2 + $0x10] sm:$0x1f] %vm398, 0.0
        %402 = vst.msk [vmem:[#allocation2 + $0x18] sm:$0x1f] %vm398, 0.0
        %403 = vst.msk [vmem:[#allocation2 + $0x20] sm:$0x1f] %vm398, 0.0
        %404 = vst.msk [vmem:[#allocation2 + $0x28] sm:$0x1f] %vm398, 0.0
        %405 = vst.msk [vmem:[#allocation2 + $0x30] sm:$0x1f] %vm398, 0.0
        %406 = vst.msk [vmem:[#allocation2 + $0x38] sm:$0x1f] %vm398, 0.0
        %407 = vst.msk [vmem:[#allocation2 + $0x40] sm:$0x1f] %vm398, 0.0
        %408 = vst.msk [vmem:[#allocation2 + $0x48] sm:$0x1f] %vm398, 0.0
        %409 = vst.msk [vmem:[#allocation3] sm:$0x1f] %vm398, 0.0
        %410 = vst.msk [vmem:[#allocation3 + $0x8] sm:$0x1f] %vm398, 0.0
        %411 = vst.msk [vmem:[#allocation3 + $0x10] sm:$0x1f] %vm398, 0.0
        %412 = vst.msk [vmem:[#allocation3 + $0x18] sm:$0x1f] %vm398, 0.0
        %413 = vst.msk [vmem:[#allocation3 + $0x20] sm:$0x1f] %vm398, 0.0
        %414 = vst.msk [vmem:[#allocation3 + $0x28] sm:$0x1f] %vm398, 0.0
        %415 = vst.msk [vmem:[#allocation3 + $0x30] sm:$0x1f] %vm398, 0.0
        %416 = vst.msk [vmem:[#allocation3 + $0x38] sm:$0x1f] %vm398, 0.0
        %417 = vst.msk [vmem:[#allocation3 + $0x40] sm:$0x1f] %vm398, 0.0
        %418 = vst.msk [vmem:[#allocation3 + $0x48] sm:$0x1f] %vm398, 0.0
        %v419 = vld [vmem:[%s348] sm:$0x3]
        %v420 = vld [vmem:[%s353] sm:$0x3]
        %v421 = vld [vmem:[%s358] sm:$0x3]
        %v422 = vld [vmem:[%s363] sm:$0x3]
        %s423 = scalar_lea.vmem %s348, 4
        %v424 = vld [vmem:[%s423] sm:$0x3]
        %s425 = scalar_lea.vmem %s353, 4
        %v426 = vld [vmem:[%s425] sm:$0x3]
        %s427 = scalar_lea.vmem %s358, 2
        %v428 = vld [vmem:[%s427] sm:$0x3]
        %s429 = scalar_lea.vmem %s363, 2
        %v430 = vld [vmem:[%s429] sm:$0x3]
        %s431 = scalar_lea.vmem %s348, 8
        %v432 = vld [vmem:[%s431] sm:$0x3]
        %s433 = scalar_lea.vmem %s353, 8
        %v434 = vld [vmem:[%s433] sm:$0x3]
        %s435 = scalar_lea.vmem %s358, 4
        %v436 = vld [vmem:[%s435] sm:$0x3]
        %s437 = scalar_lea.vmem %s363, 4
        %v438 = vld [vmem:[%s437] sm:$0x3]
        %s439 = scalar_lea.vmem %s348, 12
        %v440 = vld [vmem:[%s439] sm:$0x3]
        %s441 = scalar_lea.vmem %s353, 12
        %v442 = vld [vmem:[%s441] sm:$0x3]
        %s443 = scalar_lea.vmem %s358, 6
        %v444 = vld [vmem:[%s443] sm:$0x3]
        %s445 = scalar_lea.vmem %s363, 6
        %v446 = vld [vmem:[%s445] sm:$0x3]
        %v448 = vunpack.c.l.b16 %v420
        %v449 = vpack.c.b16 %v448, %v448
        %450 = vrot.lane.b32.xlu0 %v449, 8
        %v451 = vpop.permute.xlu0 %450
        %453 = vst [vmem:[#allocation1] ss:$4 sm:$0xff] %v421
        %v454 = vld.sshfl [vmem:[#allocation1] sm:$0xff pattern:$0x73625140]
        %456 = vrot.lane.b32.xlu0 %v454, 16
        %v457 = vpop.permute.xlu0 %456
        %459 = vst [vmem:[#allocation1] ss:$4 sm:$0xff] %v422
        %v460 = vld.sshfl [vmem:[#allocation1] sm:$0xff pattern:$0x73625140]
        %462 = vrot.lane.b32.xlu0 %v460, 24
        %v463 = vpop.permute.xlu0 %462
        %v465 = vunpack.c.l.b16 %v424
        %v466 = vpack.c.b16 %v465, %v465
        %467 = vrot.lane.b32.xlu0 %v466, 32
        %v468 = vpop.permute.xlu0 %467
        %v470 = vunpack.c.l.b16 %v426
        %v471 = vpack.c.b16 %v470, %v470
        %472 = vrot.lane.b32.xlu0 %v471, 40
        %v473 = vpop.permute.xlu0 %472
        %475 = vst [vmem:[#allocation1] ss:$4 sm:$0xff] %v428
        %v476 = vld.sshfl [vmem:[#allocation1] sm:$0xff pattern:$0x73625140]
        %478 = vrot.lane.b32.xlu0 %v476, 48
        %v479 = vpop.permute.xlu0 %478
        %481 = vst [vmem:[#allocation1] ss:$4 sm:$0xff] %v430
        %v482 = vld.sshfl [vmem:[#allocation1] sm:$0xff pattern:$0x73625140]
        %484 = vrot.lane.b32.xlu0 %v482, 56
        %v485 = vpop.permute.xlu0 %484
        %v487 = vunpack.c.l.b16 %v432
        %v488 = vpack.c.b16 %v487, %v487
        %489 = vrot.lane.b32.xlu0 %v488, 64
        %v490 = vpop.permute.xlu0 %489
        %v492 = vunpack.c.l.b16 %v434
        %v493 = vpack.c.b16 %v492, %v492
        %494 = vrot.lane.b32.xlu0 %v493, 72
        %v495 = vpop.permute.xlu0 %494
        %497 = vst [vmem:[#allocation1] ss:$4 sm:$0xff] %v436
        %v498 = vld.sshfl [vmem:[#allocation1] sm:$0xff pattern:$0x73625140]
        %500 = vrot.lane.b32.xlu0 %v498, 80
        %v501 = vpop.permute.xlu0 %500
        %503 = vst [vmem:[#allocation1] ss:$4 sm:$0xff] %v438
        %v504 = vld.sshfl [vmem:[#allocation1] sm:$0xff pattern:$0x73625140]
        %506 = vrot.lane.b32.xlu0 %v504, 88
        %v507 = vpop.permute.xlu0 %506
        %v509 = vunpack.c.l.b16 %v440
        %v510 = vpack.c.b16 %v509, %v509
        %511 = vrot.lane.b32.xlu0 %v510, 96
        %v512 = vpop.permute.xlu0 %511
        %v514 = vunpack.c.l.b16 %v442
        %v515 = vpack.c.b16 %v514, %v514
        %516 = vrot.lane.b32.xlu0 %v515, 104
        %v517 = vpop.permute.xlu0 %516
        %519 = vst [vmem:[#allocation1] ss:$4 sm:$0xff] %v444
        %v520 = vld.sshfl [vmem:[#allocation1] sm:$0xff pattern:$0x73625140]
        %522 = vrot.lane.b32.xlu0 %v520, 112
        %v523 = vpop.permute.xlu0 %522
        %525 = vst [vmem:[#allocation1] ss:$4 sm:$0xff] %v446
        %v526 = vld.sshfl [vmem:[#allocation1] sm:$0xff pattern:$0x73625140]
        %528 = vrot.lane.b32.xlu0 %v526, 120
        %v529 = vpop.permute.xlu0 %528
        %vm530 = vcmask 64512
        %v533 = vsel %vm530, %v419, %v451
        %vm534 = vcmask 130048
        %v536 = vsel %vm534, %v533, %v457
        %vm537 = vcmask 195584
        %v539 = vsel %vm537, %v536, %v463
        %vm540 = vcmask 261120
        %v542 = vsel %vm540, %v539, %v468
        %vm543 = vcmask 326656
        %v545 = vsel %vm543, %v542, %v473
        %vm546 = vcmask 392192
        %v548 = vsel %vm546, %v545, %v479
        %vm549 = vcmask 457728
        %v551 = vsel %vm549, %v548, %v485
        %vm552 = vcmask 523264
        %v554 = vsel %vm552, %v551, %v490
        %vm555 = vcmask 588800
        %v557 = vsel %vm555, %v554, %v495
        %vm558 = vcmask 654336
        %v560 = vsel %vm558, %v557, %v501
        %vm561 = vcmask 719872
        %v563 = vsel %vm561, %v560, %v507
        %vm564 = vcmask 785408
        %v566 = vsel %vm564, %v563, %v512
        %vm567 = vcmask 850944
        %v569 = vsel %vm567, %v566, %v517
        %vm570 = vcmask 916480
        %v572 = vsel %vm570, %v569, %v523
        %vm573 = vcmask 982016
        %v575 = vsel %vm573, %v572, %v529
        %v578 = vperm.slane %v380, 0
        %v596 = vunpack.c.l.b16 %v364
        %v597 = vunpack.c.l.b16 %v365
        %v598 = vunpack.c.l.b16 %v366
        %v599 = vunpack.c.l.b16 %v367
        %v600 = vunpack.c.l.b16 %v368
        %v601 = vunpack.c.l.b16 %v369
        %v602 = vunpack.c.l.b16 %v370
        %v603 = vunpack.c.l.b16 %v371
        %v604 = vunpack.c.l.b16 %v372
        %v605 = vunpack.c.l.b16 %v373
        %v606 = vunpack.c.l.b16 %v374
        %v607 = vunpack.c.l.b16 %v375
        %v608 = vunpack.c.l.b16 %v376
        %v609 = vunpack.c.l.b16 %v377
        %v610 = vunpack.c.l.b16 %v378
        %v611 = vunpack.c.l.b16 %v379
        %v612 = vpack.c.b16 %v597, %v596
        %v613 = vpack.c.b16 %v599, %v598
        %v614 = vpack.c.b16 %v601, %v600
        %v615 = vpack.c.b16 %v603, %v602
        %v616 = vpack.c.b16 %v605, %v604
        %v617 = vpack.c.b16 %v607, %v606
        %v618 = vpack.c.b16 %v609, %v608
        %v619 = vpack.c.b16 %v611, %v610
        %628 = vmatpush.bf16.msra.mxu0 %v619
        %629 = vmatpush.bf16.msra.mxu0 %v618
        %630 = vmatpush.bf16.msra.mxu0 %v617
        %631 = vmatpush.bf16.msra.mxu0 %v616
        %632 = vmatpush.bf16.msra.mxu0 %v615
        %633 = vmatpush.bf16.msra.mxu0 %v614
        %634 = vmatpush.bf16.msra.mxu0 %v613
        %635 = vmatpush.bf16.msra.mxu0 %v612
        %636 = vmatmul.bf16.gmra.mxu0 %v575
        %v637 = vpop.f32.mrf.mxu0
        %v638 = vadd.f32 %v578, %v637
        %v639 = vpop.f32.mrf.mxu0
        %640 = vdwg.mxu0
        %v641 = vmax.f32 %v638, 0.0
        %s642 = scalar_lea.vmem [#allocation3], 8
        %vm643 = vcmask 60416
        %644 = vst.msk [vmem:[%s642] sm:$0xf] %vm643, %v641
        %v645 = vld [vmem:[%s358] sm:$0x3]
        %v646 = vld [vmem:[%s363] sm:$0x3]
        %v647 = vld [vmem:[%s348] sm:$0x7]
        %v648 = vld [vmem:[%s353] sm:$0x7]
        %v649 = vld [vmem:[%s427] sm:$0x3]
        %v650 = vld [vmem:[%s429] sm:$0x3]
        %v651 = vld [vmem:[%s423] sm:$0x7]
        %v652 = vld [vmem:[%s425] sm:$0x7]
        %v653 = vld [vmem:[%s435] sm:$0x3]
        %v654 = vld [vmem:[%s437] sm:$0x3]
        %v655 = vld [vmem:[%s431] sm:$0x7]
        %v656 = vld [vmem:[%s433] sm:$0x7]
        %v657 = vld [vmem:[%s443] sm:$0x3]
        %v658 = vld [vmem:[%s445] sm:$0x3]
        %v659 = vld [vmem:[%s439] sm:$0x7]
        %v660 = vld [vmem:[%s441] sm:$0x7]
        %662 = vst [vmem:[#allocation1] ss:$4 sm:$0xff] %v646
        %v663 = vld.sshfl [vmem:[#allocation1] sm:$0xff pattern:$0x73625140]
        %665 = vrot.lane.b32.xlu0 %v663, 8
        %v666 = vpop.permute.xlu0 %665
        %v668 = vunpack.c.l.b16 %v647
        %v669 = vpack.c.b16 %v668, %v668
        %v671 = vshrl.u32 %v669, 16
        %v673 = vshll.u32 %v669, 16
        %v675 = vrot.slane %v673, 1
        %v676 = vor.u32 %v671, %v675
        %677 = vrot.lane.b32.xlu0 %v676, 16
        %v678 = vpop.permute.xlu0 %677
        %v680 = vunpack.c.l.b16 %v648
        %v681 = vpack.c.b16 %v680, %v680
        %v683 = vshrl.u32 %v681, 16
        %v685 = vshll.u32 %v681, 16
        %v687 = vrot.slane %v685, 1
        %v688 = vor.u32 %v683, %v687
        %689 = vrot.lane.b32.xlu0 %v688, 24
        %v690 = vpop.permute.xlu0 %689
        %692 = vst [vmem:[#allocation1] ss:$4 sm:$0xff] %v649
        %v693 = vld.sshfl [vmem:[#allocation1] sm:$0xff pattern:$0x73625140]
        %695 = vrot.lane.b32.xlu0 %v693, 32
        %v696 = vpop.permute.xlu0 %695
        %698 = vst [vmem:[#allocation1] ss:$4 sm:$0xff] %v650
        %v699 = vld.sshfl [vmem:[#allocation1] sm:$0xff pattern:$0x73625140]
        %701 = vrot.lane.b32.xlu0 %v699, 40
        %v702 = vpop.permute.xlu0 %701
        %v704 = vunpack.c.l.b16 %v651
        %v705 = vpack.c.b16 %v704, %v704
        %v707 = vshrl.u32 %v705, 16
        %v709 = vshll.u32 %v705, 16
        %v711 = vrot.slane %v709, 1
        %v712 = vor.u32 %v707, %v711
        %713 = vrot.lane.b32.xlu0 %v712, 48
        %v714 = vpop.permute.xlu0 %713
        %v716 = vunpack.c.l.b16 %v652
        %v717 = vpack.c.b16 %v716, %v716
        %v719 = vshrl.u32 %v717, 16
        %v721 = vshll.u32 %v717, 16
        %v723 = vrot.slane %v721, 1
        %v724 = vor.u32 %v719, %v723
        %725 = vrot.lane.b32.xlu0 %v724, 56
        %v726 = vpop.permute.xlu0 %725
        %728 = vst [vmem:[#allocation1] ss:$4 sm:$0xff] %v653
        %v729 = vld.sshfl [vmem:[#allocation1] sm:$0xff pattern:$0x73625140]
        %731 = vrot.lane.b32.xlu0 %v729, 64
        %v732 = vpop.permute.xlu0 %731
        %734 = vst [vmem:[#allocation1] ss:$4 sm:$0xff] %v654
        %v735 = vld.sshfl [vmem:[#allocation1] sm:$0xff pattern:$0x73625140]
        %737 = vrot.lane.b32.xlu0 %v735, 72
        %v738 = vpop.permute.xlu0 %737
        %v740 = vunpack.c.l.b16 %v655
        %v741 = vpack.c.b16 %v740, %v740
        %v743 = vshrl.u32 %v741, 16
        %v745 = vshll.u32 %v741, 16
        %v747 = vrot.slane %v745, 1
        %v748 = vor.u32 %v743, %v747
        %749 = vrot.lane.b32.xlu0 %v748, 80
        %v750 = vpop.permute.xlu0 %749
        %v752 = vunpack.c.l.b16 %v656
        %v753 = vpack.c.b16 %v752, %v752
        %v755 = vshrl.u32 %v753, 16
        %v757 = vshll.u32 %v753, 16
        %v759 = vrot.slane %v757, 1
        %v760 = vor.u32 %v755, %v759
        %761 = vrot.lane.b32.xlu0 %v760, 88
        %v762 = vpop.permute.xlu0 %761
        %764 = vst [vmem:[#allocation1] ss:$4 sm:$0xff] %v657
        %v765 = vld.sshfl [vmem:[#allocation1] sm:$0xff pattern:$0x73625140]
        %767 = vrot.lane.b32.xlu0 %v765, 96
        %v768 = vpop.permute.xlu0 %767
        %770 = vst [vmem:[#allocation1] ss:$4 sm:$0xff] %v658
        %v771 = vld.sshfl [vmem:[#allocation1] sm:$0xff pattern:$0x73625140]
        %773 = vrot.lane.b32.xlu0 %v771, 104
        %v774 = vpop.permute.xlu0 %773
        %v776 = vunpack.c.l.b16 %v659
        %v777 = vpack.c.b16 %v776, %v776
        %v779 = vshrl.u32 %v777, 16
        %v781 = vshll.u32 %v777, 16
        %v783 = vrot.slane %v781, 1
        %v784 = vor.u32 %v779, %v783
        %785 = vrot.lane.b32.xlu0 %v784, 112
        %v786 = vpop.permute.xlu0 %785
        %v788 = vunpack.c.l.b16 %v660
        %v789 = vpack.c.b16 %v788, %v788
        %v791 = vshrl.u32 %v789, 16
        %v793 = vshll.u32 %v789, 16
        %v795 = vrot.slane %v793, 1
        %v796 = vor.u32 %v791, %v795
        %797 = vrot.lane.b32.xlu0 %v796, 120
        %v798 = vpop.permute.xlu0 %797
        %v801 = vsel %vm530, %v645, %v666
        %v803 = vsel %vm534, %v801, %v678
        %v805 = vsel %vm537, %v803, %v690
        %v807 = vsel %vm540, %v805, %v696
        %v809 = vsel %vm543, %v807, %v702
        %v811 = vsel %vm546, %v809, %v714
        %v813 = vsel %vm549, %v811, %v726
        %v815 = vsel %vm552, %v813, %v732
        %v817 = vsel %vm555, %v815, %v738
        %v819 = vsel %vm558, %v817, %v750
        %v821 = vsel %vm561, %v819, %v762
        %v823 = vsel %vm564, %v821, %v768
        %v825 = vsel %vm567, %v823, %v774
        %v827 = vsel %vm570, %v825, %v786
        %v829 = vsel %vm573, %v827, %v798
        %831 = vmatpush.bf16.msra.mxu0 %v619
        %832 = vmatpush.bf16.msra.mxu0 %v618
        %833 = vmatpush.bf16.msra.mxu0 %v617
        %834 = vmatpush.bf16.msra.mxu0 %v616
        %835 = vmatpush.bf16.msra.mxu0 %v615
        %836 = vmatpush.bf16.msra.mxu0 %v614
        %837 = vmatpush.bf16.msra.mxu0 %v613
        %838 = vmatpush.bf16.msra.mxu0 %v612
        %839 = vmatmul.bf16.gmra.mxu0 %v829
        %v840 = vpop.f32.mrf.mxu0
        %v841 = vadd.f32 %v578, %v840
        %v842 = vpop.f32.mrf.mxu0
        %843 = vdwg.mxu0
        %v844 = vmax.f32 %v841, 0.0
        %s845 = scalar_lea.vmem [#allocation2], 8
        %846 = vst.msk [vmem:[%s845 + $0x1] sm:$0xf] %vm643, %v844
        %v847 = vld [vmem:[%s431] sm:$0x3]
        %v848 = vld [vmem:[%s433] sm:$0x3]
        %v849 = vld [vmem:[%s435] sm:$0x3]
        %v850 = vld [vmem:[%s437] sm:$0x3]
        %v851 = vld [vmem:[%s439] sm:$0x3]
        %v852 = vld [vmem:[%s441] sm:$0x3]
        %v853 = vld [vmem:[%s443] sm:$0x3]
        %v854 = vld [vmem:[%s445] sm:$0x3]
        %s855 = scalar_lea.vmem %s348, 16
        %v856 = vld [vmem:[%s855] sm:$0x3]
        %s857 = scalar_lea.vmem %s353, 16
        %v858 = vld [vmem:[%s857] sm:$0x3]
        %s859 = scalar_lea.vmem %s358, 8
        %v860 = vld [vmem:[%s859] sm:$0x3]
        %s861 = scalar_lea.vmem %s363, 8
        %v862 = vld [vmem:[%s861] sm:$0x3]
        %s863 = scalar_lea.vmem %s348, 20
        %v864 = vld [vmem:[%s863] sm:$0x3]
        %s865 = scalar_lea.vmem %s353, 20
        %v866 = vld [vmem:[%s865] sm:$0x3]
        %s867 = scalar_lea.vmem %s358, 10
        %v868 = vld [vmem:[%s867] sm:$0x3]
        %s869 = scalar_lea.vmem %s363, 10
        %v870 = vld [vmem:[%s869] sm:$0x3]
        %v872 = vunpack.c.l.b16 %v848
        %v873 = vpack.c.b16 %v872, %v872
        %874 = vrot.lane.b32.xlu0 %v873, 8
        %v875 = vpop.permute.xlu0 %874
        %877 = vst [vmem:[#allocation1] ss:$4 sm:$0xff] %v849
        %v878 = vld.sshfl [vmem:[#allocation1] sm:$0xff pattern:$0x73625140]
        %880 = vrot.lane.b32.xlu0 %v878, 16
        %v881 = vpop.permute.xlu0 %880
        %883 = vst [vmem:[#allocation1] ss:$4 sm:$0xff] %v850
        %v884 = vld.sshfl [vmem:[#allocation1] sm:$0xff pattern:$0x73625140]
        %886 = vrot.lane.b32.xlu0 %v884, 24
        %v887 = vpop.permute.xlu0 %886
        %v889 = vunpack.c.l.b16 %v851
        %v890 = vpack.c.b16 %v889, %v889
        %891 = vrot.lane.b32.xlu0 %v890, 32
        %v892 = vpop.permute.xlu0 %891
        %v894 = vunpack.c.l.b16 %v852
        %v895 = vpack.c.b16 %v894, %v894
        %896 = vrot.lane.b32.xlu0 %v895, 40
        %v897 = vpop.permute.xlu0 %896
        %899 = vst [vmem:[#allocation1] ss:$4 sm:$0xff] %v853
        %v900 = vld.sshfl [vmem:[#allocation1] sm:$0xff pattern:$0x73625140]
        %902 = vrot.lane.b32.xlu0 %v900, 48
        %v903 = vpop.permute.xlu0 %902
        %905 = vst [vmem:[#allocation1] ss:$4 sm:$0xff] %v854
        %v906 = vld.sshfl [vmem:[#allocation1] sm:$0xff pattern:$0x73625140]
        %908 = vrot.lane.b32.xlu0 %v906, 56
        %v909 = vpop.permute.xlu0 %908
        %v911 = vunpack.c.l.b16 %v856
        %v912 = vpack.c.b16 %v911, %v911
        %913 = vrot.lane.b32.xlu0 %v912, 64
        %v914 = vpop.permute.xlu0 %913
        %v916 = vunpack.c.l.b16 %v858
        %v917 = vpack.c.b16 %v916, %v916
        %918 = vrot.lane.b32.xlu0 %v917, 72
        %v919 = vpop.permute.xlu0 %918
        %921 = vst [vmem:[#allocation1] ss:$4 sm:$0xff] %v860
        %v922 = vld.sshfl [vmem:[#allocation1] sm:$0xff pattern:$0x73625140]
        %924 = vrot.lane.b32.xlu0 %v922, 80
        %v925 = vpop.permute.xlu0 %924
        %927 = vst [vmem:[#allocation1] ss:$4 sm:$0xff] %v862
        %v928 = vld.sshfl [vmem:[#allocation1] sm:$0xff pattern:$0x73625140]
        %930 = vrot.lane.b32.xlu0 %v928, 88
        %v931 = vpop.permute.xlu0 %930
        %v933 = vunpack.c.l.b16 %v864
        %v934 = vpack.c.b16 %v933, %v933
        %935 = vrot.lane.b32.xlu0 %v934, 96
        %v936 = vpop.permute.xlu0 %935
        %v938 = vunpack.c.l.b16 %v866
        %v939 = vpack.c.b16 %v938, %v938
        %940 = vrot.lane.b32.xlu0 %v939, 104
        %v941 = vpop.permute.xlu0 %940
        %943 = vst [vmem:[#allocation1] ss:$4 sm:$0xff] %v868
        %v944 = vld.sshfl [vmem:[#allocation1] sm:$0xff pattern:$0x73625140]
        %946 = vrot.lane.b32.xlu0 %v944, 112
        %v947 = vpop.permute.xlu0 %946
        %949 = vst [vmem:[#allocation1] ss:$4 sm:$0xff] %v870
        %v950 = vld.sshfl [vmem:[#allocation1] sm:$0xff pattern:$0x73625140]
        %952 = vrot.lane.b32.xlu0 %v950, 120
        %v953 = vpop.permute.xlu0 %952
        %v956 = vsel %vm530, %v847, %v875
        %v958 = vsel %vm534, %v956, %v881
        %v960 = vsel %vm537, %v958, %v887
        %v962 = vsel %vm540, %v960, %v892
        %v964 = vsel %vm543, %v962, %v897
        %v966 = vsel %vm546, %v964, %v903
        %v968 = vsel %vm549, %v966, %v909
        %v970 = vsel %vm552, %v968, %v914
        %v972 = vsel %vm555, %v970, %v919
        %v974 = vsel %vm558, %v972, %v925
        %v976 = vsel %vm561, %v974, %v931
        %v978 = vsel %vm564, %v976, %v936
        %v980 = vsel %vm567, %v978, %v941
        %v982 = vsel %vm570, %v980, %v947
        %v984 = vsel %vm573, %v982, %v953
        %986 = vmatpush.bf16.msra.mxu0 %v619
        %987 = vmatpush.bf16.msra.mxu0 %v618
        %988 = vmatpush.bf16.msra.mxu0 %v617
        %989 = vmatpush.bf16.msra.mxu0 %v616
        %990 = vmatpush.bf16.msra.mxu0 %v615
        %991 = vmatpush.bf16.msra.mxu0 %v614
        %992 = vmatpush.bf16.msra.mxu0 %v613
        %993 = vmatpush.bf16.msra.mxu0 %v612
        %994 = vmatmul.bf16.gmra.mxu0 %v984
        %v995 = vpop.f32.mrf.mxu0
        %v996 = vadd.f32 %v578, %v995
        %v997 = vpop.f32.mrf.mxu0
        %998 = vdwg.mxu0
        %v999 = vmax.f32 %v996, 0.0
        %s1000 = scalar_lea.vmem [#allocation3], 16
        %1001 = vst.msk [vmem:[%s1000] sm:$0xf] %vm643, %v999
        %v1002 = vld [vmem:[%s435] sm:$0x3]
        %v1003 = vld [vmem:[%s437] sm:$0x3]
        %v1004 = vld [vmem:[%s431] sm:$0x7]
        %v1005 = vld [vmem:[%s433] sm:$0x7]
        %v1006 = vld [vmem:[%s443] sm:$0x3]
        %v1007 = vld [vmem:[%s445] sm:$0x3]
        %v1008 = vld [vmem:[%s439] sm:$0x7]
        %v1009 = vld [vmem:[%s441] sm:$0x7]
        %v1010 = vld [vmem:[%s859] sm:$0x3]
        %v1011 = vld [vmem:[%s861] sm:$0x3]
        %v1012 = vld [vmem:[%s855] sm:$0x7]
        %v1013 = vld [vmem:[%s857] sm:$0x7]
        %v1014 = vld [vmem:[%s867] sm:$0x3]
        %v1015 = vld [vmem:[%s869] sm:$0x3]
        %v1016 = vld [vmem:[%s863] sm:$0x7]
        %v1017 = vld [vmem:[%s865] sm:$0x7]
        %1019 = vst [vmem:[#allocation1] ss:$4 sm:$0xff] %v1003
        %v1020 = vld.sshfl [vmem:[#allocation1] sm:$0xff pattern:$0x73625140]
        %1022 = vrot.lane.b32.xlu0 %v1020, 8
        %v1023 = vpop.permute.xlu0 %1022
        %v1025 = vunpack.c.l.b16 %v1004
        %v1026 = vpack.c.b16 %v1025, %v1025
        %v1028 = vshrl.u32 %v1026, 16
        %v1030 = vshll.u32 %v1026, 16
        %v1032 = vrot.slane %v1030, 1
        %v1033 = vor.u32 %v1028, %v1032
        %1034 = vrot.lane.b32.xlu0 %v1033, 16
        %v1035 = vpop.permute.xlu0 %1034
        %v1037 = vunpack.c.l.b16 %v1005
        %v1038 = vpack.c.b16 %v1037, %v1037
        %v1040 = vshrl.u32 %v1038, 16
        %v1042 = vshll.u32 %v1038, 16
        %v1044 = vrot.slane %v1042, 1
        %v1045 = vor.u32 %v1040, %v1044
        %1046 = vrot.lane.b32.xlu0 %v1045, 24
        %v1047 = vpop.permute.xlu0 %1046
        %1049 = vst [vmem:[#allocation1] ss:$4 sm:$0xff] %v1006
        %v1050 = vld.sshfl [vmem:[#allocation1] sm:$0xff pattern:$0x73625140]
        %1052 = vrot.lane.b32.xlu0 %v1050, 32
        %v1053 = vpop.permute.xlu0 %1052
        %1055 = vst [vmem:[#allocation1] ss:$4 sm:$0xff] %v1007
        %v1056 = vld.sshfl [vmem:[#allocation1] sm:$0xff pattern:$0x73625140]
        %1058 = vrot.lane.b32.xlu0 %v1056, 40
        %v1059 = vpop.permute.xlu0 %1058
        %v1061 = vunpack.c.l.b16 %v1008
        %v1062 = vpack.c.b16 %v1061, %v1061
        %v1064 = vshrl.u32 %v1062, 16
        %v1066 = vshll.u32 %v1062, 16
        %v1068 = vrot.slane %v1066, 1
        %v1069 = vor.u32 %v1064, %v1068
        %1070 = vrot.lane.b32.xlu0 %v1069, 48
        %v1071 = vpop.permute.xlu0 %1070
        %v1073 = vunpack.c.l.b16 %v1009
        %v1074 = vpack.c.b16 %v1073, %v1073
        %v1076 = vshrl.u32 %v1074, 16
        %v1078 = vshll.u32 %v1074, 16
        %v1080 = vrot.slane %v1078, 1
        %v1081 = vor.u32 %v1076, %v1080
        %1082 = vrot.lane.b32.xlu0 %v1081, 56
        %v1083 = vpop.permute.xlu0 %1082
        %1085 = vst [vmem:[#allocation1] ss:$4 sm:$0xff] %v1010
        %v1086 = vld.sshfl [vmem:[#allocation1] sm:$0xff pattern:$0x73625140]
        %1088 = vrot.lane.b32.xlu0 %v1086, 64
        %v1089 = vpop.permute.xlu0 %1088
        %1091 = vst [vmem:[#allocation1] ss:$4 sm:$0xff] %v1011
        %v1092 = vld.sshfl [vmem:[#allocation1] sm:$0xff pattern:$0x73625140]
        %1094 = vrot.lane.b32.xlu0 %v1092, 72
        %v1095 = vpop.permute.xlu0 %1094
        %v1097 = vunpack.c.l.b16 %v1012
        %v1098 = vpack.c.b16 %v1097, %v1097
        %v1100 = vshrl.u32 %v1098, 16
        %v1102 = vshll.u32 %v1098, 16
        %v1104 = vrot.slane %v1102, 1
        %v1105 = vor.u32 %v1100, %v1104
        %1106 = vrot.lane.b32.xlu0 %v1105, 80
        %v1107 = vpop.permute.xlu0 %1106
        %v1109 = vunpack.c.l.b16 %v1013
        %v1110 = vpack.c.b16 %v1109, %v1109
        %v1112 = vshrl.u32 %v1110, 16
        %v1114 = vshll.u32 %v1110, 16
        %v1116 = vrot.slane %v1114, 1
        %v1117 = vor.u32 %v1112, %v1116
        %1118 = vrot.lane.b32.xlu0 %v1117, 88
        %v1119 = vpop.permute.xlu0 %1118
        %1121 = vst [vmem:[#allocation1] ss:$4 sm:$0xff] %v1014
        %v1122 = vld.sshfl [vmem:[#allocation1] sm:$0xff pattern:$0x73625140]
        %1124 = vrot.lane.b32.xlu0 %v1122, 96
        %v1125 = vpop.permute.xlu0 %1124
        %1127 = vst [vmem:[#allocation1] ss:$4 sm:$0xff] %v1015
        %v1128 = vld.sshfl [vmem:[#allocation1] sm:$0xff pattern:$0x73625140]
        %1130 = vrot.lane.b32.xlu0 %v1128, 104
        %v1131 = vpop.permute.xlu0 %1130
        %v1133 = vunpack.c.l.b16 %v1016
        %v1134 = vpack.c.b16 %v1133, %v1133
        %v1136 = vshrl.u32 %v1134, 16
        %v1138 = vshll.u32 %v1134, 16
        %v1140 = vrot.slane %v1138, 1
        %v1141 = vor.u32 %v1136, %v1140
        %1142 = vrot.lane.b32.xlu0 %v1141, 112
        %v1143 = vpop.permute.xlu0 %1142
        %v1145 = vunpack.c.l.b16 %v1017
        %v1146 = vpack.c.b16 %v1145, %v1145
        %v1148 = vshrl.u32 %v1146, 16
        %v1150 = vshll.u32 %v1146, 16
        %v1152 = vrot.slane %v1150, 1
        %v1153 = vor.u32 %v1148, %v1152
        %1154 = vrot.lane.b32.xlu0 %v1153, 120
        %v1155 = vpop.permute.xlu0 %1154
        %v1158 = vsel %vm530, %v1002, %v1023
        %v1160 = vsel %vm534, %v1158, %v1035
        %v1162 = vsel %vm537, %v1160, %v1047
        %v1164 = vsel %vm540, %v1162, %v1053
        %v1166 = vsel %vm543, %v1164, %v1059
        %v1168 = vsel %vm546, %v1166, %v1071
        %v1170 = vsel %vm549, %v1168, %v1083
        %v1172 = vsel %vm552, %v1170, %v1089
        %v1174 = vsel %vm555, %v1172, %v1095
        %v1176 = vsel %vm558, %v1174, %v1107
        %v1178 = vsel %vm561, %v1176, %v1119
        %v1180 = vsel %vm564, %v1178, %v1125
        %v1182 = vsel %vm567, %v1180, %v1131
        %v1184 = vsel %vm570, %v1182, %v1143
        %v1186 = vsel %vm573, %v1184, %v1155
        %1188 = vmatpush.bf16.msra.mxu0 %v619
        %1189 = vmatpush.bf16.msra.mxu0 %v618
        %1190 = vmatpush.bf16.msra.mxu0 %v617
        %1191 = vmatpush.bf16.msra.mxu0 %v616
        %1192 = vmatpush.bf16.msra.mxu0 %v615
        %1193 = vmatpush.bf16.msra.mxu0 %v614
        %1194 = vmatpush.bf16.msra.mxu0 %v613
        %1195 = vmatpush.bf16.msra.mxu0 %v612
        %1196 = vmatmul.bf16.gmra.mxu0 %v1186
        %v1197 = vpop.f32.mrf.mxu0
        %v1198 = vadd.f32 %v578, %v1197
        %v1199 = vpop.f32.mrf.mxu0
        %1200 = vdwg.mxu0
        %v1201 = vmax.f32 %v1198, 0.0
        %s1202 = scalar_lea.vmem [#allocation2], 16
        %1203 = vst.msk [vmem:[%s1202 + $0x1] sm:$0xf] %vm643, %v1201
        %v1204 = vld [vmem:[%s855] sm:$0x3]
        %v1205 = vld [vmem:[%s857] sm:$0x3]
        %v1206 = vld [vmem:[%s859] sm:$0x3]
        %v1207 = vld [vmem:[%s861] sm:$0x3]
        %v1208 = vld [vmem:[%s863] sm:$0x3]
        %v1209 = vld [vmem:[%s865] sm:$0x3]
        %v1210 = vld [vmem:[%s867] sm:$0x3]
        %v1211 = vld [vmem:[%s869] sm:$0x3]
        %s1212 = scalar_lea.vmem %s348, 24
        %v1213 = vld [vmem:[%s1212] sm:$0x3]
        %s1214 = scalar_lea.vmem %s353, 24
        %v1215 = vld [vmem:[%s1214] sm:$0x3]
        %s1216 = scalar_lea.vmem %s358, 12
        %v1217 = vld [vmem:[%s1216] sm:$0x3]
        %s1218 = scalar_lea.vmem %s363, 12
        %v1219 = vld [vmem:[%s1218] sm:$0x3]
        %s1220 = scalar_lea.vmem %s348, 28
        %v1221 = vld [vmem:[%s1220] sm:$0x3]
        %s1222 = scalar_lea.vmem %s353, 28
        %v1223 = vld [vmem:[%s1222] sm:$0x3]
        %s1224 = scalar_lea.vmem %s358, 14
        %v1225 = vld [vmem:[%s1224] sm:$0x3]
        %s1226 = scalar_lea.vmem %s363, 14
        %v1227 = vld [vmem:[%s1226] sm:$0x3]
        %v1229 = vunpack.c.l.b16 %v1205
        %v1230 = vpack.c.b16 %v1229, %v1229
        %1231 = vrot.lane.b32.xlu0 %v1230, 8
        %v1232 = vpop.permute.xlu0 %1231
        %1234 = vst [vmem:[#allocation1] ss:$4 sm:$0xff] %v1206
        %v1235 = vld.sshfl [vmem:[#allocation1] sm:$0xff pattern:$0x73625140]
        %1237 = vrot.lane.b32.xlu0 %v1235, 16
        %v1238 = vpop.permute.xlu0 %1237
        %1240 = vst [vmem:[#allocation1] ss:$4 sm:$0xff] %v1207
        %v1241 = vld.sshfl [vmem:[#allocation1] sm:$0xff pattern:$0x73625140]
        %1243 = vrot.lane.b32.xlu0 %v1241, 24
        %v1244 = vpop.permute.xlu0 %1243
        %v1246 = vunpack.c.l.b16 %v1208
        %v1247 = vpack.c.b16 %v1246, %v1246
        %1248 = vrot.lane.b32.xlu0 %v1247, 32
        %v1249 = vpop.permute.xlu0 %1248
        %v1251 = vunpack.c.l.b16 %v1209
        %v1252 = vpack.c.b16 %v1251, %v1251
        %1253 = vrot.lane.b32.xlu0 %v1252, 40
        %v1254 = vpop.permute.xlu0 %1253
        %1256 = vst [vmem:[#allocation1] ss:$4 sm:$0xff] %v1210
        %v1257 = vld.sshfl [vmem:[#allocation1] sm:$0xff pattern:$0x73625140]
        %1259 = vrot.lane.b32.xlu0 %v1257, 48
        %v1260 = vpop.permute.xlu0 %1259
        %1262 = vst [vmem:[#allocation1] ss:$4 sm:$0xff] %v1211
        %v1263 = vld.sshfl [vmem:[#allocation1] sm:$0xff pattern:$0x73625140]
        %1265 = vrot.lane.b32.xlu0 %v1263, 56
        %v1266 = vpop.permute.xlu0 %1265
        %v1268 = vunpack.c.l.b16 %v1213
        %v1269 = vpack.c.b16 %v1268, %v1268
        %1270 = vrot.lane.b32.xlu0 %v1269, 64
        %v1271 = vpop.permute.xlu0 %1270
        %v1273 = vunpack.c.l.b16 %v1215
        %v1274 = vpack.c.b16 %v1273, %v1273
        %1275 = vrot.lane.b32.xlu0 %v1274, 72
        %v1276 = vpop.permute.xlu0 %1275
        %1278 = vst [vmem:[#allocation1] ss:$4 sm:$0xff] %v1217
        %v1279 = vld.sshfl [vmem:[#allocation1] sm:$0xff pattern:$0x73625140]
        %1281 = vrot.lane.b32.xlu0 %v1279, 80
        %v1282 = vpop.permute.xlu0 %1281
        %1284 = vst [vmem:[#allocation1] ss:$4 sm:$0xff] %v1219
        %v1285 = vld.sshfl [vmem:[#allocation1] sm:$0xff pattern:$0x73625140]
        %1287 = vrot.lane.b32.xlu0 %v1285, 88
        %v1288 = vpop.permute.xlu0 %1287
        %v1290 = vunpack.c.l.b16 %v1221
        %v1291 = vpack.c.b16 %v1290, %v1290
        %1292 = vrot.lane.b32.xlu0 %v1291, 96
        %v1293 = vpop.permute.xlu0 %1292
        %v1295 = vunpack.c.l.b16 %v1223
        %v1296 = vpack.c.b16 %v1295, %v1295
        %1297 = vrot.lane.b32.xlu0 %v1296, 104
        %v1298 = vpop.permute.xlu0 %1297
        %1300 = vst [vmem:[#allocation1] ss:$4 sm:$0xff] %v1225
        %v1301 = vld.sshfl [vmem:[#allocation1] sm:$0xff pattern:$0x73625140]
        %1303 = vrot.lane.b32.xlu0 %v1301, 112
        %v1304 = vpop.permute.xlu0 %1303
        %1306 = vst [vmem:[#allocation1] ss:$4 sm:$0xff] %v1227
        %v1307 = vld.sshfl [vmem:[#allocation1] sm:$0xff pattern:$0x73625140]
        %1309 = vrot.lane.b32.xlu0 %v1307, 120
        %v1310 = vpop.permute.xlu0 %1309
        %v1313 = vsel %vm530, %v1204, %v1232
        %v1315 = vsel %vm534, %v1313, %v1238
        %v1317 = vsel %vm537, %v1315, %v1244
        %v1319 = vsel %vm540, %v1317, %v1249
        %v1321 = vsel %vm543, %v1319, %v1254
        %v1323 = vsel %vm546, %v1321, %v1260
        %v1325 = vsel %vm549, %v1323, %v1266
        %v1327 = vsel %vm552, %v1325, %v1271
        %v1329 = vsel %vm555, %v1327, %v1276
        %v1331 = vsel %vm558, %v1329, %v1282
        %v1333 = vsel %vm561, %v1331, %v1288
        %v1335 = vsel %vm564, %v1333, %v1293
        %v1337 = vsel %vm567, %v1335, %v1298
        %v1339 = vsel %vm570, %v1337, %v1304
        %v1341 = vsel %vm573, %v1339, %v1310
        %1343 = vmatpush.bf16.msra.mxu0 %v619
        %1344 = vmatpush.bf16.msra.mxu0 %v618
        %1345 = vmatpush.bf16.msra.mxu0 %v617
        %1346 = vmatpush.bf16.msra.mxu0 %v616
        %1347 = vmatpush.bf16.msra.mxu0 %v615
        %1348 = vmatpush.bf16.msra.mxu0 %v614
        %1349 = vmatpush.bf16.msra.mxu0 %v613
        %1350 = vmatpush.bf16.msra.mxu0 %v612
        %1351 = vmatmul.bf16.gmra.mxu0 %v1341
        %v1352 = vpop.f32.mrf.mxu0
        %v1353 = vadd.f32 %v578, %v1352
        %v1354 = vpop.f32.mrf.mxu0
        %1355 = vdwg.mxu0
        %v1356 = vmax.f32 %v1353, 0.0
        %s1357 = scalar_lea.vmem [#allocation3], 24
        %1358 = vst.msk [vmem:[%s1357] sm:$0xf] %vm643, %v1356
        %v1359 = vld [vmem:[%s859] sm:$0x3]
        %v1360 = vld [vmem:[%s861] sm:$0x3]
        %v1361 = vld [vmem:[%s855] sm:$0x7]
        %v1362 = vld [vmem:[%s857] sm:$0x7]
        %v1363 = vld [vmem:[%s867] sm:$0x3]
        %v1364 = vld [vmem:[%s869] sm:$0x3]
        %v1365 = vld [vmem:[%s863] sm:$0x7]
        %v1366 = vld [vmem:[%s865] sm:$0x7]
        %v1367 = vld [vmem:[%s1216] sm:$0x3]
        %v1368 = vld [vmem:[%s1218] sm:$0x3]
        %v1369 = vld [vmem:[%s1212] sm:$0x7]
        %v1370 = vld [vmem:[%s1214] sm:$0x7]
        %v1371 = vld [vmem:[%s1224] sm:$0x3]
        %v1372 = vld [vmem:[%s1226] sm:$0x3]
        %v1373 = vld [vmem:[%s1220] sm:$0x7]
        %v1374 = vld [vmem:[%s1222] sm:$0x7]
        %1376 = vst [vmem:[#allocation1] ss:$4 sm:$0xff] %v1360
        %v1377 = vld.sshfl [vmem:[#allocation1] sm:$0xff pattern:$0x73625140]
        %1379 = vrot.lane.b32.xlu0 %v1377, 8
        %v1380 = vpop.permute.xlu0 %1379
        %v1382 = vunpack.c.l.b16 %v1361
        %v1383 = vpack.c.b16 %v1382, %v1382
        %v1385 = vshrl.u32 %v1383, 16
        %v1387 = vshll.u32 %v1383, 16
        %v1389 = vrot.slane %v1387, 1
        %v1390 = vor.u32 %v1385, %v1389
        %1391 = vrot.lane.b32.xlu0 %v1390, 16
        %v1392 = vpop.permute.xlu0 %1391
        %v1394 = vunpack.c.l.b16 %v1362
        %v1395 = vpack.c.b16 %v1394, %v1394
        %v1397 = vshrl.u32 %v1395, 16
        %v1399 = vshll.u32 %v1395, 16
        %v1401 = vrot.slane %v1399, 1
        %v1402 = vor.u32 %v1397, %v1401
        %1403 = vrot.lane.b32.xlu0 %v1402, 24
        %v1404 = vpop.permute.xlu0 %1403
        %1406 = vst [vmem:[#allocation1] ss:$4 sm:$0xff] %v1363
        %v1407 = vld.sshfl [vmem:[#allocation1] sm:$0xff pattern:$0x73625140]
        %1409 = vrot.lane.b32.xlu0 %v1407, 32
        %v1410 = vpop.permute.xlu0 %1409
        %1412 = vst [vmem:[#allocation1] ss:$4 sm:$0xff] %v1364
        %v1413 = vld.sshfl [vmem:[#allocation1] sm:$0xff pattern:$0x73625140]
        %1415 = vrot.lane.b32.xlu0 %v1413, 40
        %v1416 = vpop.permute.xlu0 %1415
        %v1418 = vunpack.c.l.b16 %v1365
        %v1419 = vpack.c.b16 %v1418, %v1418
        %v1421 = vshrl.u32 %v1419, 16
        %v1423 = vshll.u32 %v1419, 16
        %v1425 = vrot.slane %v1423, 1
        %v1426 = vor.u32 %v1421, %v1425
        %1427 = vrot.lane.b32.xlu0 %v1426, 48
        %v1428 = vpop.permute.xlu0 %1427
        %v1430 = vunpack.c.l.b16 %v1366
        %v1431 = vpack.c.b16 %v1430, %v1430
        %v1433 = vshrl.u32 %v1431, 16
        %v1435 = vshll.u32 %v1431, 16
        %v1437 = vrot.slane %v1435, 1
        %v1438 = vor.u32 %v1433, %v1437
        %1439 = vrot.lane.b32.xlu0 %v1438, 56
        %v1440 = vpop.permute.xlu0 %1439
        %1442 = vst [vmem:[#allocation1] ss:$4 sm:$0xff] %v1367
        %v1443 = vld.sshfl [vmem:[#allocation1] sm:$0xff pattern:$0x73625140]
        %1445 = vrot.lane.b32.xlu0 %v1443, 64
        %v1446 = vpop.permute.xlu0 %1445
        %1448 = vst [vmem:[#allocation1] ss:$4 sm:$0xff] %v1368
        %v1449 = vld.sshfl [vmem:[#allocation1] sm:$0xff pattern:$0x73625140]
        %1451 = vrot.lane.b32.xlu0 %v1449, 72
        %v1452 = vpop.permute.xlu0 %1451
        %v1454 = vunpack.c.l.b16 %v1369
        %v1455 = vpack.c.b16 %v1454, %v1454
        %v1457 = vshrl.u32 %v1455, 16
        %v1459 = vshll.u32 %v1455, 16
        %v1461 = vrot.slane %v1459, 1
        %v1462 = vor.u32 %v1457, %v1461
        %1463 = vrot.lane.b32.xlu0 %v1462, 80
        %v1464 = vpop.permute.xlu0 %1463
        %v1466 = vunpack.c.l.b16 %v1370
        %v1467 = vpack.c.b16 %v1466, %v1466
        %v1469 = vshrl.u32 %v1467, 16
        %v1471 = vshll.u32 %v1467, 16
        %v1473 = vrot.slane %v1471, 1
        %v1474 = vor.u32 %v1469, %v1473
        %1475 = vrot.lane.b32.xlu0 %v1474, 88
        %v1476 = vpop.permute.xlu0 %1475
        %1478 = vst [vmem:[#allocation1] ss:$4 sm:$0xff] %v1371
        %v1479 = vld.sshfl [vmem:[#allocation1] sm:$0xff pattern:$0x73625140]
        %1481 = vrot.lane.b32.xlu0 %v1479, 96
        %v1482 = vpop.permute.xlu0 %1481
        %1484 = vst [vmem:[#allocation1] ss:$4 sm:$0xff] %v1372
        %v1485 = vld.sshfl [vmem:[#allocation1] sm:$0xff pattern:$0x73625140]
        %1487 = vrot.lane.b32.xlu0 %v1485, 104
        %v1488 = vpop.permute.xlu0 %1487
        %v1490 = vunpack.c.l.b16 %v1373
        %v1491 = vpack.c.b16 %v1490, %v1490
        %v1493 = vshrl.u32 %v1491, 16
        %v1495 = vshll.u32 %v1491, 16
        %v1497 = vrot.slane %v1495, 1
        %v1498 = vor.u32 %v1493, %v1497
        %1499 = vrot.lane.b32.xlu0 %v1498, 112
        %v1500 = vpop.permute.xlu0 %1499
        %v1502 = vunpack.c.l.b16 %v1374
        %v1503 = vpack.c.b16 %v1502, %v1502
        %v1505 = vshrl.u32 %v1503, 16
        %v1507 = vshll.u32 %v1503, 16
        %v1509 = vrot.slane %v1507, 1
        %v1510 = vor.u32 %v1505, %v1509
        %1511 = vrot.lane.b32.xlu0 %v1510, 120
        %v1512 = vpop.permute.xlu0 %1511
        %v1515 = vsel %vm530, %v1359, %v1380
        %v1517 = vsel %vm534, %v1515, %v1392
        %v1519 = vsel %vm537, %v1517, %v1404
        %v1521 = vsel %vm540, %v1519, %v1410
        %v1523 = vsel %vm543, %v1521, %v1416
        %v1525 = vsel %vm546, %v1523, %v1428
        %v1527 = vsel %vm549, %v1525, %v1440
        %v1529 = vsel %vm552, %v1527, %v1446
        %v1531 = vsel %vm555, %v1529, %v1452
        %v1533 = vsel %vm558, %v1531, %v1464
        %v1535 = vsel %vm561, %v1533, %v1476
        %v1537 = vsel %vm564, %v1535, %v1482
        %v1539 = vsel %vm567, %v1537, %v1488
        %v1541 = vsel %vm570, %v1539, %v1500
        %v1543 = vsel %vm573, %v1541, %v1512
        %1545 = vmatpush.bf16.msra.mxu0 %v619
        %1546 = vmatpush.bf16.msra.mxu0 %v618
        %1547 = vmatpush.bf16.msra.mxu0 %v617
        %1548 = vmatpush.bf16.msra.mxu0 %v616
        %1549 = vmatpush.bf16.msra.mxu0 %v615
        %1550 = vmatpush.bf16.msra.mxu0 %v614
        %1551 = vmatpush.bf16.msra.mxu0 %v613
        %1552 = vmatpush.bf16.msra.mxu0 %v612
        %1553 = vmatmul.bf16.gmra.mxu0 %v1543
        %v1554 = vpop.f32.mrf.mxu0
        %v1555 = vadd.f32 %v578, %v1554
        %v1556 = vpop.f32.mrf.mxu0
        %1557 = vdwg.mxu0
        %v1558 = vmax.f32 %v1555, 0.0
        %s1559 = scalar_lea.vmem [#allocation2], 24
        %1560 = vst.msk [vmem:[%s1559 + $0x1] sm:$0xf] %vm643, %v1558
        %v1561 = vld [vmem:[%s1212] sm:$0x3]
        %v1562 = vld [vmem:[%s1214] sm:$0x3]
        %v1563 = vld [vmem:[%s1216] sm:$0x3]
        %v1564 = vld [vmem:[%s1218] sm:$0x3]
        %v1565 = vld [vmem:[%s1220] sm:$0x3]
        %v1566 = vld [vmem:[%s1222] sm:$0x3]
        %v1567 = vld [vmem:[%s1224] sm:$0x3]
        %v1568 = vld [vmem:[%s1226] sm:$0x3]
        %s1569 = scalar_lea.vmem %s348, 32
        %v1570 = vld [vmem:[%s1569] sm:$0x3]
        %s1571 = scalar_lea.vmem %s353, 32
        %v1572 = vld [vmem:[%s1571] sm:$0x3]
        %s1573 = scalar_lea.vmem %s358, 16
        %v1574 = vld [vmem:[%s1573] sm:$0x3]
        %s1575 = scalar_lea.vmem %s363, 16
        %v1576 = vld [vmem:[%s1575] sm:$0x3]
        %s1577 = scalar_lea.vmem %s348, 36
        %v1578 = vld [vmem:[%s1577] sm:$0x3]
        %s1579 = scalar_lea.vmem %s353, 36
        %v1580 = vld [vmem:[%s1579] sm:$0x3]
        %s1581 = scalar_lea.vmem %s358, 18
        %v1582 = vld [vmem:[%s1581] sm:$0x3]
        %s1583 = scalar_lea.vmem %s363, 18
        %v1584 = vld [vmem:[%s1583] sm:$0x3]
        %v1586 = vunpack.c.l.b16 %v1562
        %v1587 = vpack.c.b16 %v1586, %v1586
        %1588 = vrot.lane.b32.xlu0 %v1587, 8
        %v1589 = vpop.permute.xlu0 %1588
        %1591 = vst [vmem:[#allocation1] ss:$4 sm:$0xff] %v1563
        %v1592 = vld.sshfl [vmem:[#allocation1] sm:$0xff pattern:$0x73625140]
        %1594 = vrot.lane.b32.xlu0 %v1592, 16
        %v1595 = vpop.permute.xlu0 %1594
        %1597 = vst [vmem:[#allocation1] ss:$4 sm:$0xff] %v1564
        %v1598 = vld.sshfl [vmem:[#allocation1] sm:$0xff pattern:$0x73625140]
        %1600 = vrot.lane.b32.xlu0 %v1598, 24
        %v1601 = vpop.permute.xlu0 %1600
        %v1603 = vunpack.c.l.b16 %v1565
        %v1604 = vpack.c.b16 %v1603, %v1603
        %1605 = vrot.lane.b32.xlu0 %v1604, 32
        %v1606 = vpop.permute.xlu0 %1605
        %v1608 = vunpack.c.l.b16 %v1566
        %v1609 = vpack.c.b16 %v1608, %v1608
        %1610 = vrot.lane.b32.xlu0 %v1609, 40
        %v1611 = vpop.permute.xlu0 %1610
        %1613 = vst [vmem:[#allocation1] ss:$4 sm:$0xff] %v1567
        %v1614 = vld.sshfl [vmem:[#allocation1] sm:$0xff pattern:$0x73625140]
        %1616 = vrot.lane.b32.xlu0 %v1614, 48
        %v1617 = vpop.permute.xlu0 %1616
        %1619 = vst [vmem:[#allocation1] ss:$4 sm:$0xff] %v1568
        %v1620 = vld.sshfl [vmem:[#allocation1] sm:$0xff pattern:$0x73625140]
        %1622 = vrot.lane.b32.xlu0 %v1620, 56
        %v1623 = vpop.permute.xlu0 %1622
        %v1625 = vunpack.c.l.b16 %v1570
        %v1626 = vpack.c.b16 %v1625, %v1625
        %1627 = vrot.lane.b32.xlu0 %v1626, 64
        %v1628 = vpop.permute.xlu0 %1627
        %v1630 = vunpack.c.l.b16 %v1572
        %v1631 = vpack.c.b16 %v1630, %v1630
        %1632 = vrot.lane.b32.xlu0 %v1631, 72
        %v1633 = vpop.permute.xlu0 %1632
        %1635 = vst [vmem:[#allocation1] ss:$4 sm:$0xff] %v1574
        %v1636 = vld.sshfl [vmem:[#allocation1] sm:$0xff pattern:$0x73625140]
        %1638 = vrot.lane.b32.xlu0 %v1636, 80
        %v1639 = vpop.permute.xlu0 %1638
        %1641 = vst [vmem:[#allocation1] ss:$4 sm:$0xff] %v1576
        %v1642 = vld.sshfl [vmem:[#allocation1] sm:$0xff pattern:$0x73625140]
        %1644 = vrot.lane.b32.xlu0 %v1642, 88
        %v1645 = vpop.permute.xlu0 %1644
        %v1647 = vunpack.c.l.b16 %v1578
        %v1648 = vpack.c.b16 %v1647, %v1647
        %1649 = vrot.lane.b32.xlu0 %v1648, 96
        %v1650 = vpop.permute.xlu0 %1649
        %v1652 = vunpack.c.l.b16 %v1580
        %v1653 = vpack.c.b16 %v1652, %v1652
        %1654 = vrot.lane.b32.xlu0 %v1653, 104
        %v1655 = vpop.permute.xlu0 %1654
        %1657 = vst [vmem:[#allocation1] ss:$4 sm:$0xff] %v1582
        %v1658 = vld.sshfl [vmem:[#allocation1] sm:$0xff pattern:$0x73625140]
        %1660 = vrot.lane.b32.xlu0 %v1658, 112
        %v1661 = vpop.permute.xlu0 %1660
        %1663 = vst [vmem:[#allocation1] ss:$4 sm:$0xff] %v1584
        %v1664 = vld.sshfl [vmem:[#allocation1] sm:$0xff pattern:$0x73625140]
        %1666 = vrot.lane.b32.xlu0 %v1664, 120
        %v1667 = vpop.permute.xlu0 %1666
        %v1670 = vsel %vm530, %v1561, %v1589
        %v1672 = vsel %vm534, %v1670, %v1595
        %v1674 = vsel %vm537, %v1672, %v1601
        %v1676 = vsel %vm540, %v1674, %v1606
        %v1678 = vsel %vm543, %v1676, %v1611
        %v1680 = vsel %vm546, %v1678, %v1617
        %v1682 = vsel %vm549, %v1680, %v1623
        %v1684 = vsel %vm552, %v1682, %v1628
        %v1686 = vsel %vm555, %v1684, %v1633
        %v1688 = vsel %vm558, %v1686, %v1639
        %v1690 = vsel %vm561, %v1688, %v1645
        %v1692 = vsel %vm564, %v1690, %v1650
        %v1694 = vsel %vm567, %v1692, %v1655
        %v1696 = vsel %vm570, %v1694, %v1661
        %v1698 = vsel %vm573, %v1696, %v1667
        %1700 = vmatpush.bf16.msra.mxu0 %v619
        %1701 = vmatpush.bf16.msra.mxu0 %v618
        %1702 = vmatpush.bf16.msra.mxu0 %v617
        %1703 = vmatpush.bf16.msra.mxu0 %v616
        %1704 = vmatpush.bf16.msra.mxu0 %v615
        %1705 = vmatpush.bf16.msra.mxu0 %v614
        %1706 = vmatpush.bf16.msra.mxu0 %v613
        %1707 = vmatpush.bf16.msra.mxu0 %v612
        %1708 = vmatmul.bf16.gmra.mxu0 %v1698
        %v1709 = vpop.f32.mrf.mxu0
        %v1710 = vadd.f32 %v578, %v1709
        %v1711 = vpop.f32.mrf.mxu0
        %1712 = vdwg.mxu0
        %v1713 = vmax.f32 %v1710, 0.0
        %s1714 = scalar_lea.vmem [#allocation3], 32
        %1715 = vst.msk [vmem:[%s1714] sm:$0xf] %vm643, %v1713
        %v1716 = vld [vmem:[%s1216] sm:$0x3]
        %v1717 = vld [vmem:[%s1218] sm:$0x3]
        %v1718 = vld [vmem:[%s1212] sm:$0x7]
        %v1719 = vld [vmem:[%s1214] sm:$0x7]
        %v1720 = vld [vmem:[%s1224] sm:$0x3]
        %v1721 = vld [vmem:[%s1226] sm:$0x3]
        %v1722 = vld [vmem:[%s1220] sm:$0x7]
        %v1723 = vld [vmem:[%s1222] sm:$0x7]
        %v1724 = vld [vmem:[%s1573] sm:$0x3]
        %v1725 = vld [vmem:[%s1575] sm:$0x3]
        %v1726 = vld [vmem:[%s1569] sm:$0x7]
        %v1727 = vld [vmem:[%s1571] sm:$0x7]
        %v1728 = vld [vmem:[%s1581] sm:$0x3]
        %v1729 = vld [vmem:[%s1583] sm:$0x3]
        %v1730 = vld [vmem:[%s1577] sm:$0x7]
        %v1731 = vld [vmem:[%s1579] sm:$0x7]
        %1733 = vst [vmem:[#allocation1] ss:$4 sm:$0xff] %v1717
        %v1734 = vld.sshfl [vmem:[#allocation1] sm:$0xff pattern:$0x73625140]
        %1736 = vrot.lane.b32.xlu0 %v1734, 8
        %v1737 = vpop.permute.xlu0 %1736
        %v1739 = vunpack.c.l.b16 %v1718
        %v1740 = vpack.c.b16 %v1739, %v1739
        %v1742 = vshrl.u32 %v1740, 16
        %v1744 = vshll.u32 %v1740, 16
        %v1746 = vrot.slane %v1744, 1
        %v1747 = vor.u32 %v1742, %v1746
        %1748 = vrot.lane.b32.xlu0 %v1747, 16
        %v1749 = vpop.permute.xlu0 %1748
        %v1751 = vunpack.c.l.b16 %v1719
        %v1752 = vpack.c.b16 %v1751, %v1751
        %v1754 = vshrl.u32 %v1752, 16
        %v1756 = vshll.u32 %v1752, 16
        %v1758 = vrot.slane %v1756, 1
        %v1759 = vor.u32 %v1754, %v1758
        %1760 = vrot.lane.b32.xlu0 %v1759, 24
        %v1761 = vpop.permute.xlu0 %1760
        %1763 = vst [vmem:[#allocation1] ss:$4 sm:$0xff] %v1720
        %v1764 = vld.sshfl [vmem:[#allocation1] sm:$0xff pattern:$0x73625140]
        %1766 = vrot.lane.b32.xlu0 %v1764, 32
        %v1767 = vpop.permute.xlu0 %1766
        %1769 = vst [vmem:[#allocation1] ss:$4 sm:$0xff] %v1721
        %v1770 = vld.sshfl [vmem:[#allocation1] sm:$0xff pattern:$0x73625140]
        %1772 = vrot.lane.b32.xlu0 %v1770, 40
        %v1773 = vpop.permute.xlu0 %1772
        %v1775 = vunpack.c.l.b16 %v1722
        %v1776 = vpack.c.b16 %v1775, %v1775
        %v1778 = vshrl.u32 %v1776, 16
        %v1780 = vshll.u32 %v1776, 16
        %v1782 = vrot.slane %v1780, 1
        %v1783 = vor.u32 %v1778, %v1782
        %1784 = vrot.lane.b32.xlu0 %v1783, 48
        %v1785 = vpop.permute.xlu0 %1784
        %v1787 = vunpack.c.l.b16 %v1723
        %v1788 = vpack.c.b16 %v1787, %v1787
        %v1790 = vshrl.u32 %v1788, 16
        %v1792 = vshll.u32 %v1788, 16
        %v1794 = vrot.slane %v1792, 1
        %v1795 = vor.u32 %v1790, %v1794
        %1796 = vrot.lane.b32.xlu0 %v1795, 56
        %v1797 = vpop.permute.xlu0 %1796
        %1799 = vst [vmem:[#allocation1] ss:$4 sm:$0xff] %v1724
        %v1800 = vld.sshfl [vmem:[#allocation1] sm:$0xff pattern:$0x73625140]
        %1802 = vrot.lane.b32.xlu0 %v1800, 64
        %v1803 = vpop.permute.xlu0 %1802
        %1805 = vst [vmem:[#allocation1] ss:$4 sm:$0xff] %v1725
        %v1806 = vld.sshfl [vmem:[#allocation1] sm:$0xff pattern:$0x73625140]
        %1808 = vrot.lane.b32.xlu0 %v1806, 72
        %v1809 = vpop.permute.xlu0 %1808
        %v1811 = vunpack.c.l.b16 %v1726
        %v1812 = vpack.c.b16 %v1811, %v1811
        %v1814 = vshrl.u32 %v1812, 16
        %v1816 = vshll.u32 %v1812, 16
        %v1818 = vrot.slane %v1816, 1
        %v1819 = vor.u32 %v1814, %v1818
        %1820 = vrot.lane.b32.xlu0 %v1819, 80
        %v1821 = vpop.permute.xlu0 %1820
        %v1823 = vunpack.c.l.b16 %v1727
        %v1824 = vpack.c.b16 %v1823, %v1823
        %v1826 = vshrl.u32 %v1824, 16
        %v1828 = vshll.u32 %v1824, 16
        %v1830 = vrot.slane %v1828, 1
        %v1831 = vor.u32 %v1826, %v1830
        %1832 = vrot.lane.b32.xlu0 %v1831, 88
        %v1833 = vpop.permute.xlu0 %1832
        %1835 = vst [vmem:[#allocation1] ss:$4 sm:$0xff] %v1728
        %v1836 = vld.sshfl [vmem:[#allocation1] sm:$0xff pattern:$0x73625140]
        %1838 = vrot.lane.b32.xlu0 %v1836, 96
        %v1839 = vpop.permute.xlu0 %1838
        %1841 = vst [vmem:[#allocation1] ss:$4 sm:$0xff] %v1729
        %v1842 = vld.sshfl [vmem:[#allocation1] sm:$0xff pattern:$0x73625140]
        %1844 = vrot.lane.b32.xlu0 %v1842, 104
        %v1845 = vpop.permute.xlu0 %1844
        %v1847 = vunpack.c.l.b16 %v1730
        %v1848 = vpack.c.b16 %v1847, %v1847
        %v1850 = vshrl.u32 %v1848, 16
        %v1852 = vshll.u32 %v1848, 16
        %v1854 = vrot.slane %v1852, 1
        %v1855 = vor.u32 %v1850, %v1854
        %1856 = vrot.lane.b32.xlu0 %v1855, 112
        %v1857 = vpop.permute.xlu0 %1856
        %v1859 = vunpack.c.l.b16 %v1731
        %v1860 = vpack.c.b16 %v1859, %v1859
        %v1862 = vshrl.u32 %v1860, 16
        %v1864 = vshll.u32 %v1860, 16
        %v1866 = vrot.slane %v1864, 1
        %v1867 = vor.u32 %v1862, %v1866
        %1868 = vrot.lane.b32.xlu0 %v1867, 120
        %v1869 = vpop.permute.xlu0 %1868
        %v1872 = vsel %vm530, %v1716, %v1737
        %v1874 = vsel %vm534, %v1872, %v1749
        %v1876 = vsel %vm537, %v1874, %v1761
        %v1878 = vsel %vm540, %v1876, %v1767
        %v1880 = vsel %vm543, %v1878, %v1773
        %v1882 = vsel %vm546, %v1880, %v1785
        %v1884 = vsel %vm549, %v1882, %v1797
        %v1886 = vsel %vm552, %v1884, %v1803
        %v1888 = vsel %vm555, %v1886, %v1809
        %v1890 = vsel %vm558, %v1888, %v1821
        %v1892 = vsel %vm561, %v1890, %v1833
        %v1894 = vsel %vm564, %v1892, %v1839
        %v1896 = vsel %vm567, %v1894, %v1845
        %v1898 = vsel %vm570, %v1896, %v1857
        %v1900 = vsel %vm573, %v1898, %v1869
        %1902 = vmatpush.bf16.msra.mxu0 %v619
        %1903 = vmatpush.bf16.msra.mxu0 %v618
        %1904 = vmatpush.bf16.msra.mxu0 %v617
        %1905 = vmatpush.bf16.msra.mxu0 %v616
        %1906 = vmatpush.bf16.msra.mxu0 %v615
        %1907 = vmatpush.bf16.msra.mxu0 %v614
        %1908 = vmatpush.bf16.msra.mxu0 %v613
        %1909 = vmatpush.bf16.msra.mxu0 %v612
        %1910 = vmatmul.bf16.gmra.mxu0 %v1900
        %v1911 = vpop.f32.mrf.mxu0
        %v1912 = vadd.f32 %v578, %v1911
        %v1913 = vpop.f32.mrf.mxu0
        %1914 = vdwg.mxu0
        %v1915 = vmax.f32 %v1912, 0.0
        %s1916 = scalar_lea.vmem [#allocation2], 32
        %1917 = vst.msk [vmem:[%s1916 + $0x1] sm:$0xf] %vm643, %v1915
        %v1918 = vld [vmem:[%s1569] sm:$0x3]
        %v1919 = vld [vmem:[%s1571] sm:$0x3]
        %v1920 = vld [vmem:[%s1573] sm:$0x3]
        %v1921 = vld [vmem:[%s1575] sm:$0x3]
        %v1922 = vld [vmem:[%s1577] sm:$0x3]
        %v1923 = vld [vmem:[%s1579] sm:$0x3]
        %v1924 = vld [vmem:[%s1581] sm:$0x3]
        %v1925 = vld [vmem:[%s1583] sm:$0x3]
        %s1926 = scalar_lea.vmem %s348, 40
        %v1927 = vld [vmem:[%s1926] sm:$0x3]
        %s1928 = scalar_lea.vmem %s353, 40
        %v1929 = vld [vmem:[%s1928] sm:$0x3]
        %s1930 = scalar_lea.vmem %s358, 20
        %v1931 = vld [vmem:[%s1930] sm:$0x3]
        %s1932 = scalar_lea.vmem %s363, 20
        %v1933 = vld [vmem:[%s1932] sm:$0x3]
        %s1934 = scalar_lea.vmem %s348, 44
        %v1935 = vld [vmem:[%s1934] sm:$0x3]
        %s1936 = scalar_lea.vmem %s353, 44
        %v1937 = vld [vmem:[%s1936] sm:$0x3]
        %s1938 = scalar_lea.vmem %s358, 22
        %v1939 = vld [vmem:[%s1938] sm:$0x3]
        %s1940 = scalar_lea.vmem %s363, 22
        %v1941 = vld [vmem:[%s1940] sm:$0x3]
        %v1943 = vunpack.c.l.b16 %v1919
        %v1944 = vpack.c.b16 %v1943, %v1943
        %1945 = vrot.lane.b32.xlu0 %v1944, 8
        %v1946 = vpop.permute.xlu0 %1945
        %1948 = vst [vmem:[#allocation1] ss:$4 sm:$0xff] %v1920
        %v1949 = vld.sshfl [vmem:[#allocation1] sm:$0xff pattern:$0x73625140]
        %1951 = vrot.lane.b32.xlu0 %v1949, 16
        %v1952 = vpop.permute.xlu0 %1951
        %1954 = vst [vmem:[#allocation1] ss:$4 sm:$0xff] %v1921
        %v1955 = vld.sshfl [vmem:[#allocation1] sm:$0xff pattern:$0x73625140]
        %1957 = vrot.lane.b32.xlu0 %v1955, 24
        %v1958 = vpop.permute.xlu0 %1957
        %v1960 = vunpack.c.l.b16 %v1922
        %v1961 = vpack.c.b16 %v1960, %v1960
        %1962 = vrot.lane.b32.xlu0 %v1961, 32
        %v1963 = vpop.permute.xlu0 %1962
        %v1965 = vunpack.c.l.b16 %v1923
        %v1966 = vpack.c.b16 %v1965, %v1965
        %1967 = vrot.lane.b32.xlu0 %v1966, 40
        %v1968 = vpop.permute.xlu0 %1967
        %1970 = vst [vmem:[#allocation1] ss:$4 sm:$0xff] %v1924
        %v1971 = vld.sshfl [vmem:[#allocation1] sm:$0xff pattern:$0x73625140]
        %1973 = vrot.lane.b32.xlu0 %v1971, 48
        %v1974 = vpop.permute.xlu0 %1973
        %1976 = vst [vmem:[#allocation1] ss:$4 sm:$0xff] %v1925
        %v1977 = vld.sshfl [vmem:[#allocation1] sm:$0xff pattern:$0x73625140]
        %1979 = vrot.lane.b32.xlu0 %v1977, 56
        %v1980 = vpop.permute.xlu0 %1979
        %v1982 = vunpack.c.l.b16 %v1927
        %v1983 = vpack.c.b16 %v1982, %v1982
        %1984 = vrot.lane.b32.xlu0 %v1983, 64
        %v1985 = vpop.permute.xlu0 %1984
        %v1987 = vunpack.c.l.b16 %v1929
        %v1988 = vpack.c.b16 %v1987, %v1987
        %1989 = vrot.lane.b32.xlu0 %v1988, 72
        %v1990 = vpop.permute.xlu0 %1989
        %1992 = vst [vmem:[#allocation1] ss:$4 sm:$0xff] %v1931
        %v1993 = vld.sshfl [vmem:[#allocation1] sm:$0xff pattern:$0x73625140]
        %1995 = vrot.lane.b32.xlu0 %v1993, 80
        %v1996 = vpop.permute.xlu0 %1995
        %1998 = vst [vmem:[#allocation1] ss:$4 sm:$0xff] %v1933
        %v1999 = vld.sshfl [vmem:[#allocation1] sm:$0xff pattern:$0x73625140]
        %2001 = vrot.lane.b32.xlu0 %v1999, 88
        %v2002 = vpop.permute.xlu0 %2001
        %v2004 = vunpack.c.l.b16 %v1935
        %v2005 = vpack.c.b16 %v2004, %v2004
        %2006 = vrot.lane.b32.xlu0 %v2005, 96
        %v2007 = vpop.permute.xlu0 %2006
        %v2009 = vunpack.c.l.b16 %v1937
        %v2010 = vpack.c.b16 %v2009, %v2009
        %2011 = vrot.lane.b32.xlu0 %v2010, 104
        %v2012 = vpop.permute.xlu0 %2011
        %2014 = vst [vmem:[#allocation1] ss:$4 sm:$0xff] %v1939
        %v2015 = vld.sshfl [vmem:[#allocation1] sm:$0xff pattern:$0x73625140]
        %2017 = vrot.lane.b32.xlu0 %v2015, 112
        %v2018 = vpop.permute.xlu0 %2017
        %2020 = vst [vmem:[#allocation1] ss:$4 sm:$0xff] %v1941
        %v2021 = vld.sshfl [vmem:[#allocation1] sm:$0xff pattern:$0x73625140]
        %2023 = vrot.lane.b32.xlu0 %v2021, 120
        %v2024 = vpop.permute.xlu0 %2023
        %v2027 = vsel %vm530, %v1918, %v1946
        %v2029 = vsel %vm534, %v2027, %v1952
        %v2031 = vsel %vm537, %v2029, %v1958
        %v2033 = vsel %vm540, %v2031, %v1963
        %v2035 = vsel %vm543, %v2033, %v1968
        %v2037 = vsel %vm546, %v2035, %v1974
        %v2039 = vsel %vm549, %v2037, %v1980
        %v2041 = vsel %vm552, %v2039, %v1985
        %v2043 = vsel %vm555, %v2041, %v1990
        %v2045 = vsel %vm558, %v2043, %v1996
        %v2047 = vsel %vm561, %v2045, %v2002
        %v2049 = vsel %vm564, %v2047, %v2007
        %v2051 = vsel %vm567, %v2049, %v2012
        %v2053 = vsel %vm570, %v2051, %v2018
        %v2055 = vsel %vm573, %v2053, %v2024
        %2057 = vmatpush.bf16.msra.mxu0 %v619
        %2058 = vmatpush.bf16.msra.mxu0 %v618
        %2059 = vmatpush.bf16.msra.mxu0 %v617
        %2060 = vmatpush.bf16.msra.mxu0 %v616
        %2061 = vmatpush.bf16.msra.mxu0 %v615
        %2062 = vmatpush.bf16.msra.mxu0 %v614
        %2063 = vmatpush.bf16.msra.mxu0 %v613
        %2064 = vmatpush.bf16.msra.mxu0 %v612
        %2065 = vmatmul.bf16.gmra.mxu0 %v2055
        %v2066 = vpop.f32.mrf.mxu0
        %v2067 = vadd.f32 %v578, %v2066
        %v2068 = vpop.f32.mrf.mxu0
        %2069 = vdwg.mxu0
        %v2070 = vmax.f32 %v2067, 0.0
        %s2071 = scalar_lea.vmem [#allocation3], 40
        %2072 = vst.msk [vmem:[%s2071] sm:$0xf] %vm643, %v2070
        %v2073 = vld [vmem:[%s1573] sm:$0x3]
        %v2074 = vld [vmem:[%s1575] sm:$0x3]
        %v2075 = vld [vmem:[%s1569] sm:$0x7]
        %v2076 = vld [vmem:[%s1571] sm:$0x7]
        %v2077 = vld [vmem:[%s1581] sm:$0x3]
        %v2078 = vld [vmem:[%s1583] sm:$0x3]
        %v2079 = vld [vmem:[%s1577] sm:$0x7]
        %v2080 = vld [vmem:[%s1579] sm:$0x7]
        %v2081 = vld [vmem:[%s1930] sm:$0x3]
        %v2082 = vld [vmem:[%s1932] sm:$0x3]
        %v2083 = vld [vmem:[%s1926] sm:$0x7]
        %v2084 = vld [vmem:[%s1928] sm:$0x7]
        %v2085 = vld [vmem:[%s1938] sm:$0x3]
        %v2086 = vld [vmem:[%s1940] sm:$0x3]
        %v2087 = vld [vmem:[%s1934] sm:$0x7]
        %v2088 = vld [vmem:[%s1936] sm:$0x7]
        %2090 = vst [vmem:[#allocation1] ss:$4 sm:$0xff] %v2074
        %v2091 = vld.sshfl [vmem:[#allocation1] sm:$0xff pattern:$0x73625140]
        %2093 = vrot.lane.b32.xlu0 %v2091, 8
        %v2094 = vpop.permute.xlu0 %2093
        %v2096 = vunpack.c.l.b16 %v2075
        %v2097 = vpack.c.b16 %v2096, %v2096
        %v2099 = vshrl.u32 %v2097, 16
        %v2101 = vshll.u32 %v2097, 16
        %v2103 = vrot.slane %v2101, 1
        %v2104 = vor.u32 %v2099, %v2103
        %2105 = vrot.lane.b32.xlu0 %v2104, 16
        %v2106 = vpop.permute.xlu0 %2105
        %v2108 = vunpack.c.l.b16 %v2076
        %v2109 = vpack.c.b16 %v2108, %v2108
        %v2111 = vshrl.u32 %v2109, 16
        %v2113 = vshll.u32 %v2109, 16
        %v2115 = vrot.slane %v2113, 1
        %v2116 = vor.u32 %v2111, %v2115
        %2117 = vrot.lane.b32.xlu0 %v2116, 24
        %v2118 = vpop.permute.xlu0 %2117
        %2120 = vst [vmem:[#allocation1] ss:$4 sm:$0xff] %v2077
        %v2121 = vld.sshfl [vmem:[#allocation1] sm:$0xff pattern:$0x73625140]
        %2123 = vrot.lane.b32.xlu0 %v2121, 32
        %v2124 = vpop.permute.xlu0 %2123
        %2126 = vst [vmem:[#allocation1] ss:$4 sm:$0xff] %v2078
        %v2127 = vld.sshfl [vmem:[#allocation1] sm:$0xff pattern:$0x73625140]
        %2129 = vrot.lane.b32.xlu0 %v2127, 40
        %v2130 = vpop.permute.xlu0 %2129
        %v2132 = vunpack.c.l.b16 %v2079
        %v2133 = vpack.c.b16 %v2132, %v2132
        %v2135 = vshrl.u32 %v2133, 16
        %v2137 = vshll.u32 %v2133, 16
        %v2139 = vrot.slane %v2137, 1
        %v2140 = vor.u32 %v2135, %v2139
        %2141 = vrot.lane.b32.xlu0 %v2140, 48
        %v2142 = vpop.permute.xlu0 %2141
        %v2144 = vunpack.c.l.b16 %v2080
        %v2145 = vpack.c.b16 %v2144, %v2144
        %v2147 = vshrl.u32 %v2145, 16
        %v2149 = vshll.u32 %v2145, 16
        %v2151 = vrot.slane %v2149, 1
        %v2152 = vor.u32 %v2147, %v2151
        %2153 = vrot.lane.b32.xlu0 %v2152, 56
        %v2154 = vpop.permute.xlu0 %2153
        %2156 = vst [vmem:[#allocation1] ss:$4 sm:$0xff] %v2081
        %v2157 = vld.sshfl [vmem:[#allocation1] sm:$0xff pattern:$0x73625140]
        %2159 = vrot.lane.b32.xlu0 %v2157, 64
        %v2160 = vpop.permute.xlu0 %2159
        %2162 = vst [vmem:[#allocation1] ss:$4 sm:$0xff] %v2082
        %v2163 = vld.sshfl [vmem:[#allocation1] sm:$0xff pattern:$0x73625140]
        %2165 = vrot.lane.b32.xlu0 %v2163, 72
        %v2166 = vpop.permute.xlu0 %2165
        %v2168 = vunpack.c.l.b16 %v2083
        %v2169 = vpack.c.b16 %v2168, %v2168
        %v2171 = vshrl.u32 %v2169, 16
        %v2173 = vshll.u32 %v2169, 16
        %v2175 = vrot.slane %v2173, 1
        %v2176 = vor.u32 %v2171, %v2175
        %2177 = vrot.lane.b32.xlu0 %v2176, 80
        %v2178 = vpop.permute.xlu0 %2177
        %v2180 = vunpack.c.l.b16 %v2084
        %v2181 = vpack.c.b16 %v2180, %v2180
        %v2183 = vshrl.u32 %v2181, 16
        %v2185 = vshll.u32 %v2181, 16
        %v2187 = vrot.slane %v2185, 1
        %v2188 = vor.u32 %v2183, %v2187
        %2189 = vrot.lane.b32.xlu0 %v2188, 88
        %v2190 = vpop.permute.xlu0 %2189
        %2192 = vst [vmem:[#allocation1] ss:$4 sm:$0xff] %v2085
        %v2193 = vld.sshfl [vmem:[#allocation1] sm:$0xff pattern:$0x73625140]
        %2195 = vrot.lane.b32.xlu0 %v2193, 96
        %v2196 = vpop.permute.xlu0 %2195
        %2198 = vst [vmem:[#allocation1] ss:$4 sm:$0xff] %v2086
        %v2199 = vld.sshfl [vmem:[#allocation1] sm:$0xff pattern:$0x73625140]
        %2201 = vrot.lane.b32.xlu0 %v2199, 104
        %v2202 = vpop.permute.xlu0 %2201
        %v2204 = vunpack.c.l.b16 %v2087
        %v2205 = vpack.c.b16 %v2204, %v2204
        %v2207 = vshrl.u32 %v2205, 16
        %v2209 = vshll.u32 %v2205, 16
        %v2211 = vrot.slane %v2209, 1
        %v2212 = vor.u32 %v2207, %v2211
        %2213 = vrot.lane.b32.xlu0 %v2212, 112
        %v2214 = vpop.permute.xlu0 %2213
        %v2216 = vunpack.c.l.b16 %v2088
        %v2217 = vpack.c.b16 %v2216, %v2216
        %v2219 = vshrl.u32 %v2217, 16
        %v2221 = vshll.u32 %v2217, 16
        %v2223 = vrot.slane %v2221, 1
        %v2224 = vor.u32 %v2219, %v2223
        %2225 = vrot.lane.b32.xlu0 %v2224, 120
        %v2226 = vpop.permute.xlu0 %2225
        %v2229 = vsel %vm530, %v2073, %v2094
        %v2231 = vsel %vm534, %v2229, %v2106
        %v2233 = vsel %vm537, %v2231, %v2118
        %v2235 = vsel %vm540, %v2233, %v2124
        %v2237 = vsel %vm543, %v2235, %v2130
        %v2239 = vsel %vm546, %v2237, %v2142
        %v2241 = vsel %vm549, %v2239, %v2154
        %v2243 = vsel %vm552, %v2241, %v2160
        %v2245 = vsel %vm555, %v2243, %v2166
        %v2247 = vsel %vm558, %v2245, %v2178
        %v2249 = vsel %vm561, %v2247, %v2190
        %v2251 = vsel %vm564, %v2249, %v2196
        %v2253 = vsel %vm567, %v2251, %v2202
        %v2255 = vsel %vm570, %v2253, %v2214
        %v2257 = vsel %vm573, %v2255, %v2226
        %2259 = vmatpush.bf16.msra.mxu0 %v619
        %2260 = vmatpush.bf16.msra.mxu0 %v618
        %2261 = vmatpush.bf16.msra.mxu0 %v617
        %2262 = vmatpush.bf16.msra.mxu0 %v616
        %2263 = vmatpush.bf16.msra.mxu0 %v615
        %2264 = vmatpush.bf16.msra.mxu0 %v614
        %2265 = vmatpush.bf16.msra.mxu0 %v613
        %2266 = vmatpush.bf16.msra.mxu0 %v612
        %2267 = vmatmul.bf16.gmra.mxu0 %v2257
        %v2268 = vpop.f32.mrf.mxu0
        %v2269 = vadd.f32 %v578, %v2268
        %v2270 = vpop.f32.mrf.mxu0
        %2271 = vdwg.mxu0
        %v2272 = vmax.f32 %v2269, 0.0
        %s2273 = scalar_lea.vmem [#allocation2], 40
        %2274 = vst.msk [vmem:[%s2273 + $0x1] sm:$0xf] %vm643, %v2272
        %v2275 = vld [vmem:[%s1926] sm:$0x3]
        %v2276 = vld [vmem:[%s1928] sm:$0x3]
        %v2277 = vld [vmem:[%s1930] sm:$0x3]
        %v2278 = vld [vmem:[%s1932] sm:$0x3]
        %v2279 = vld [vmem:[%s1934] sm:$0x3]
        %v2280 = vld [vmem:[%s1936] sm:$0x3]
        %v2281 = vld [vmem:[%s1938] sm:$0x3]
        %v2282 = vld [vmem:[%s1940] sm:$0x3]
        %s2283 = scalar_lea.vmem %s348, 48
        %v2284 = vld [vmem:[%s2283] sm:$0x3]
        %s2285 = scalar_lea.vmem %s353, 48
        %v2286 = vld [vmem:[%s2285] sm:$0x3]
        %s2287 = scalar_lea.vmem %s358, 24
        %v2288 = vld [vmem:[%s2287] sm:$0x3]
        %s2289 = scalar_lea.vmem %s363, 24
        %v2290 = vld [vmem:[%s2289] sm:$0x3]
        %s2291 = scalar_lea.vmem %s348, 52
        %v2292 = vld [vmem:[%s2291] sm:$0x3]
        %s2293 = scalar_lea.vmem %s353, 52
        %v2294 = vld [vmem:[%s2293] sm:$0x3]
        %s2295 = scalar_lea.vmem %s358, 26
        %v2296 = vld [vmem:[%s2295] sm:$0x3]
        %s2297 = scalar_lea.vmem %s363, 26
        %v2298 = vld [vmem:[%s2297] sm:$0x3]
        %v2300 = vunpack.c.l.b16 %v2276
        %v2301 = vpack.c.b16 %v2300, %v2300
        %2302 = vrot.lane.b32.xlu0 %v2301, 8
        %v2303 = vpop.permute.xlu0 %2302
        %2305 = vst [vmem:[#allocation1] ss:$4 sm:$0xff] %v2277
        %v2306 = vld.sshfl [vmem:[#allocation1] sm:$0xff pattern:$0x73625140]
        %2308 = vrot.lane.b32.xlu0 %v2306, 16
        %v2309 = vpop.permute.xlu0 %2308
        %2311 = vst [vmem:[#allocation1] ss:$4 sm:$0xff] %v2278
        %v2312 = vld.sshfl [vmem:[#allocation1] sm:$0xff pattern:$0x73625140]
        %2314 = vrot.lane.b32.xlu0 %v2312, 24
        %v2315 = vpop.permute.xlu0 %2314
        %v2317 = vunpack.c.l.b16 %v2279
        %v2318 = vpack.c.b16 %v2317, %v2317
        %2319 = vrot.lane.b32.xlu0 %v2318, 32
        %v2320 = vpop.permute.xlu0 %2319
        %v2322 = vunpack.c.l.b16 %v2280
        %v2323 = vpack.c.b16 %v2322, %v2322
        %2324 = vrot.lane.b32.xlu0 %v2323, 40
        %v2325 = vpop.permute.xlu0 %2324
        %2327 = vst [vmem:[#allocation1] ss:$4 sm:$0xff] %v2281
        %v2328 = vld.sshfl [vmem:[#allocation1] sm:$0xff pattern:$0x73625140]
        %2330 = vrot.lane.b32.xlu0 %v2328, 48
        %v2331 = vpop.permute.xlu0 %2330
        %2333 = vst [vmem:[#allocation1] ss:$4 sm:$0xff] %v2282
        %v2334 = vld.sshfl [vmem:[#allocation1] sm:$0xff pattern:$0x73625140]
        %2336 = vrot.lane.b32.xlu0 %v2334, 56
        %v2337 = vpop.permute.xlu0 %2336
        %v2339 = vunpack.c.l.b16 %v2284
        %v2340 = vpack.c.b16 %v2339, %v2339
        %2341 = vrot.lane.b32.xlu0 %v2340, 64
        %v2342 = vpop.permute.xlu0 %2341
        %v2344 = vunpack.c.l.b16 %v2286
        %v2345 = vpack.c.b16 %v2344, %v2344
        %2346 = vrot.lane.b32.xlu0 %v2345, 72
        %v2347 = vpop.permute.xlu0 %2346
        %2349 = vst [vmem:[#allocation1] ss:$4 sm:$0xff] %v2288
        %v2350 = vld.sshfl [vmem:[#allocation1] sm:$0xff pattern:$0x73625140]
        %2352 = vrot.lane.b32.xlu0 %v2350, 80
        %v2353 = vpop.permute.xlu0 %2352
        %2355 = vst [vmem:[#allocation1] ss:$4 sm:$0xff] %v2290
        %v2356 = vld.sshfl [vmem:[#allocation1] sm:$0xff pattern:$0x73625140]
        %2358 = vrot.lane.b32.xlu0 %v2356, 88
        %v2359 = vpop.permute.xlu0 %2358
        %v2361 = vunpack.c.l.b16 %v2292
        %v2362 = vpack.c.b16 %v2361, %v2361
        %2363 = vrot.lane.b32.xlu0 %v2362, 96
        %v2364 = vpop.permute.xlu0 %2363
        %v2366 = vunpack.c.l.b16 %v2294
        %v2367 = vpack.c.b16 %v2366, %v2366
        %2368 = vrot.lane.b32.xlu0 %v2367, 104
        %v2369 = vpop.permute.xlu0 %2368
        %2371 = vst [vmem:[#allocation1] ss:$4 sm:$0xff] %v2296
        %v2372 = vld.sshfl [vmem:[#allocation1] sm:$0xff pattern:$0x73625140]
        %2374 = vrot.lane.b32.xlu0 %v2372, 112
        %v2375 = vpop.permute.xlu0 %2374
        %2377 = vst [vmem:[#allocation1] ss:$4 sm:$0xff] %v2298
        %v2378 = vld.sshfl [vmem:[#allocation1] sm:$0xff pattern:$0x73625140]
        %2380 = vrot.lane.b32.xlu0 %v2378, 120
        %v2381 = vpop.permute.xlu0 %2380
        %v2384 = vsel %vm530, %v2275, %v2303
        %v2386 = vsel %vm534, %v2384, %v2309
        %v2388 = vsel %vm537, %v2386, %v2315
        %v2390 = vsel %vm540, %v2388, %v2320
        %v2392 = vsel %vm543, %v2390, %v2325
        %v2394 = vsel %vm546, %v2392, %v2331
        %v2396 = vsel %vm549, %v2394, %v2337
        %v2398 = vsel %vm552, %v2396, %v2342
        %v2400 = vsel %vm555, %v2398, %v2347
        %v2402 = vsel %vm558, %v2400, %v2353
        %v2404 = vsel %vm561, %v2402, %v2359
        %v2406 = vsel %vm564, %v2404, %v2364
        %v2408 = vsel %vm567, %v2406, %v2369
        %v2410 = vsel %vm570, %v2408, %v2375
        %v2412 = vsel %vm573, %v2410, %v2381
        %2414 = vmatpush.bf16.msra.mxu0 %v619
        %2415 = vmatpush.bf16.msra.mxu0 %v618
        %2416 = vmatpush.bf16.msra.mxu0 %v617
        %2417 = vmatpush.bf16.msra.mxu0 %v616
        %2418 = vmatpush.bf16.msra.mxu0 %v615
        %2419 = vmatpush.bf16.msra.mxu0 %v614
        %2420 = vmatpush.bf16.msra.mxu0 %v613
        %2421 = vmatpush.bf16.msra.mxu0 %v612
        %2422 = vmatmul.bf16.gmra.mxu0 %v2412
        %v2423 = vpop.f32.mrf.mxu0
        %v2424 = vadd.f32 %v578, %v2423
        %v2425 = vpop.f32.mrf.mxu0
        %2426 = vdwg.mxu0
        %v2427 = vmax.f32 %v2424, 0.0
        %s2428 = scalar_lea.vmem [#allocation3], 48
        %2429 = vst.msk [vmem:[%s2428] sm:$0xf] %vm643, %v2427
        %v2430 = vld [vmem:[%s1930] sm:$0x3]
        %v2431 = vld [vmem:[%s1932] sm:$0x3]
        %v2432 = vld [vmem:[%s1926] sm:$0x7]
        %v2433 = vld [vmem:[%s1928] sm:$0x7]
        %v2434 = vld [vmem:[%s1938] sm:$0x3]
        %v2435 = vld [vmem:[%s1940] sm:$0x3]
        %v2436 = vld [vmem:[%s1934] sm:$0x7]
        %v2437 = vld [vmem:[%s1936] sm:$0x7]
        %v2438 = vld [vmem:[%s2287] sm:$0x3]
        %v2439 = vld [vmem:[%s2289] sm:$0x3]
        %v2440 = vld [vmem:[%s2283] sm:$0x7]
        %v2441 = vld [vmem:[%s2285] sm:$0x7]
        %v2442 = vld [vmem:[%s2295] sm:$0x3]
        %v2443 = vld [vmem:[%s2297] sm:$0x3]
        %v2444 = vld [vmem:[%s2291] sm:$0x7]
        %v2445 = vld [vmem:[%s2293] sm:$0x7]
        %2447 = vst [vmem:[#allocation1] ss:$4 sm:$0xff] %v2431
        %v2448 = vld.sshfl [vmem:[#allocation1] sm:$0xff pattern:$0x73625140]
        %2450 = vrot.lane.b32.xlu0 %v2448, 8
        %v2451 = vpop.permute.xlu0 %2450
        %v2453 = vunpack.c.l.b16 %v2432
        %v2454 = vpack.c.b16 %v2453, %v2453
        %v2456 = vshrl.u32 %v2454, 16
        %v2458 = vshll.u32 %v2454, 16
        %v2460 = vrot.slane %v2458, 1
        %v2461 = vor.u32 %v2456, %v2460
        %2462 = vrot.lane.b32.xlu0 %v2461, 16
        %v2463 = vpop.permute.xlu0 %2462
        %v2465 = vunpack.c.l.b16 %v2433
        %v2466 = vpack.c.b16 %v2465, %v2465
        %v2468 = vshrl.u32 %v2466, 16
        %v2470 = vshll.u32 %v2466, 16
        %v2472 = vrot.slane %v2470, 1
        %v2473 = vor.u32 %v2468, %v2472
        %2474 = vrot.lane.b32.xlu0 %v2473, 24
        %v2475 = vpop.permute.xlu0 %2474
        %2477 = vst [vmem:[#allocation1] ss:$4 sm:$0xff] %v2434
        %v2478 = vld.sshfl [vmem:[#allocation1] sm:$0xff pattern:$0x73625140]
        %2480 = vrot.lane.b32.xlu0 %v2478, 32
        %v2481 = vpop.permute.xlu0 %2480
        %2483 = vst [vmem:[#allocation1] ss:$4 sm:$0xff] %v2435
        %v2484 = vld.sshfl [vmem:[#allocation1] sm:$0xff pattern:$0x73625140]
        %2486 = vrot.lane.b32.xlu0 %v2484, 40
        %v2487 = vpop.permute.xlu0 %2486
        %v2489 = vunpack.c.l.b16 %v2436
        %v2490 = vpack.c.b16 %v2489, %v2489
        %v2492 = vshrl.u32 %v2490, 16
        %v2494 = vshll.u32 %v2490, 16
        %v2496 = vrot.slane %v2494, 1
        %v2497 = vor.u32 %v2492, %v2496
        %2498 = vrot.lane.b32.xlu0 %v2497, 48
        %v2499 = vpop.permute.xlu0 %2498
        %v2501 = vunpack.c.l.b16 %v2437
        %v2502 = vpack.c.b16 %v2501, %v2501
        %v2504 = vshrl.u32 %v2502, 16
        %v2506 = vshll.u32 %v2502, 16
        %v2508 = vrot.slane %v2506, 1
        %v2509 = vor.u32 %v2504, %v2508
        %2510 = vrot.lane.b32.xlu0 %v2509, 56
        %v2511 = vpop.permute.xlu0 %2510
        %2513 = vst [vmem:[#allocation1] ss:$4 sm:$0xff] %v2438
        %v2514 = vld.sshfl [vmem:[#allocation1] sm:$0xff pattern:$0x73625140]
        %2516 = vrot.lane.b32.xlu0 %v2514, 64
        %v2517 = vpop.permute.xlu0 %2516
        %2519 = vst [vmem:[#allocation1] ss:$4 sm:$0xff] %v2439
        %v2520 = vld.sshfl [vmem:[#allocation1] sm:$0xff pattern:$0x73625140]
        %2522 = vrot.lane.b32.xlu0 %v2520, 72
        %v2523 = vpop.permute.xlu0 %2522
        %v2525 = vunpack.c.l.b16 %v2440
        %v2526 = vpack.c.b16 %v2525, %v2525
        %v2528 = vshrl.u32 %v2526, 16
        %v2530 = vshll.u32 %v2526, 16
        %v2532 = vrot.slane %v2530, 1
        %v2533 = vor.u32 %v2528, %v2532
        %2534 = vrot.lane.b32.xlu0 %v2533, 80
        %v2535 = vpop.permute.xlu0 %2534
        %v2537 = vunpack.c.l.b16 %v2441
        %v2538 = vpack.c.b16 %v2537, %v2537
        %v2540 = vshrl.u32 %v2538, 16
        %v2542 = vshll.u32 %v2538, 16
        %v2544 = vrot.slane %v2542, 1
        %v2545 = vor.u32 %v2540, %v2544
        %2546 = vrot.lane.b32.xlu0 %v2545, 88
        %v2547 = vpop.permute.xlu0 %2546
        %2549 = vst [vmem:[#allocation1] ss:$4 sm:$0xff] %v2442
        %v2550 = vld.sshfl [vmem:[#allocation1] sm:$0xff pattern:$0x73625140]
        %2552 = vrot.lane.b32.xlu0 %v2550, 96
        %v2553 = vpop.permute.xlu0 %2552
        %2555 = vst [vmem:[#allocation1] ss:$4 sm:$0xff] %v2443
        %v2556 = vld.sshfl [vmem:[#allocation1] sm:$0xff pattern:$0x73625140]
        %2558 = vrot.lane.b32.xlu0 %v2556, 104
        %v2559 = vpop.permute.xlu0 %2558
        %v2561 = vunpack.c.l.b16 %v2444
        %v2562 = vpack.c.b16 %v2561, %v2561
        %v2564 = vshrl.u32 %v2562, 16
        %v2566 = vshll.u32 %v2562, 16
        %v2568 = vrot.slane %v2566, 1
        %v2569 = vor.u32 %v2564, %v2568
        %2570 = vrot.lane.b32.xlu0 %v2569, 112
        %v2571 = vpop.permute.xlu0 %2570
        %v2573 = vunpack.c.l.b16 %v2445
        %v2574 = vpack.c.b16 %v2573, %v2573
        %v2576 = vshrl.u32 %v2574, 16
        %v2578 = vshll.u32 %v2574, 16
        %v2580 = vrot.slane %v2578, 1
        %v2581 = vor.u32 %v2576, %v2580
        %2582 = vrot.lane.b32.xlu0 %v2581, 120
        %v2583 = vpop.permute.xlu0 %2582
        %v2586 = vsel %vm530, %v2430, %v2451
        %v2588 = vsel %vm534, %v2586, %v2463
        %v2590 = vsel %vm537, %v2588, %v2475
        %v2592 = vsel %vm540, %v2590, %v2481
        %v2594 = vsel %vm543, %v2592, %v2487
        %v2596 = vsel %vm546, %v2594, %v2499
        %v2598 = vsel %vm549, %v2596, %v2511
        %v2600 = vsel %vm552, %v2598, %v2517
        %v2602 = vsel %vm555, %v2600, %v2523
        %v2604 = vsel %vm558, %v2602, %v2535
        %v2606 = vsel %vm561, %v2604, %v2547
        %v2608 = vsel %vm564, %v2606, %v2553
        %v2610 = vsel %vm567, %v2608, %v2559
        %v2612 = vsel %vm570, %v2610, %v2571
        %v2614 = vsel %vm573, %v2612, %v2583
        %2616 = vmatpush.bf16.msra.mxu0 %v619
        %2617 = vmatpush.bf16.msra.mxu0 %v618
        %2618 = vmatpush.bf16.msra.mxu0 %v617
        %2619 = vmatpush.bf16.msra.mxu0 %v616
        %2620 = vmatpush.bf16.msra.mxu0 %v615
        %2621 = vmatpush.bf16.msra.mxu0 %v614
        %2622 = vmatpush.bf16.msra.mxu0 %v613
        %2623 = vmatpush.bf16.msra.mxu0 %v612
        %2624 = vmatmul.bf16.gmra.mxu0 %v2614
        %v2625 = vpop.f32.mrf.mxu0
        %v2626 = vadd.f32 %v578, %v2625
        %v2627 = vpop.f32.mrf.mxu0
        %2628 = vdwg.mxu0
        %v2629 = vmax.f32 %v2626, 0.0
        %s2630 = scalar_lea.vmem [#allocation2], 48
        %2631 = vst.msk [vmem:[%s2630 + $0x1] sm:$0xf] %vm643, %v2629
        %v2632 = vld [vmem:[%s2283] sm:$0x3]
        %v2633 = vld [vmem:[%s2285] sm:$0x3]
        %v2634 = vld [vmem:[%s2287] sm:$0x3]
        %v2635 = vld [vmem:[%s2289] sm:$0x3]
        %v2636 = vld [vmem:[%s2291] sm:$0x3]
        %v2637 = vld [vmem:[%s2293] sm:$0x3]
        %v2638 = vld [vmem:[%s2295] sm:$0x3]
        %v2639 = vld [vmem:[%s2297] sm:$0x3]
        %s2640 = scalar_lea.vmem %s348, 56
        %v2641 = vld [vmem:[%s2640] sm:$0x3]
        %s2642 = scalar_lea.vmem %s353, 56
        %v2643 = vld [vmem:[%s2642] sm:$0x3]
        %s2644 = scalar_lea.vmem %s358, 28
        %v2645 = vld [vmem:[%s2644] sm:$0x3]
        %s2646 = scalar_lea.vmem %s363, 28
        %v2647 = vld [vmem:[%s2646] sm:$0x3]
        %s2648 = scalar_lea.vmem %s348, 60
        %v2649 = vld [vmem:[%s2648] sm:$0x3]
        %s2650 = scalar_lea.vmem %s353, 60
        %v2651 = vld [vmem:[%s2650] sm:$0x3]
        %s2652 = scalar_lea.vmem %s358, 30
        %v2653 = vld [vmem:[%s2652] sm:$0x3]
        %s2654 = scalar_lea.vmem %s363, 30
        %v2655 = vld [vmem:[%s2654] sm:$0x3]
        %v2657 = vunpack.c.l.b16 %v2633
        %v2658 = vpack.c.b16 %v2657, %v2657
        %2659 = vrot.lane.b32.xlu0 %v2658, 8
        %v2660 = vpop.permute.xlu0 %2659
        %2662 = vst [vmem:[#allocation1] ss:$4 sm:$0xff] %v2634
        %v2663 = vld.sshfl [vmem:[#allocation1] sm:$0xff pattern:$0x73625140]
        %2665 = vrot.lane.b32.xlu0 %v2663, 16
        %v2666 = vpop.permute.xlu0 %2665
        %2668 = vst [vmem:[#allocation1] ss:$4 sm:$0xff] %v2635
        %v2669 = vld.sshfl [vmem:[#allocation1] sm:$0xff pattern:$0x73625140]
        %2671 = vrot.lane.b32.xlu0 %v2669, 24
        %v2672 = vpop.permute.xlu0 %2671
        %v2674 = vunpack.c.l.b16 %v2636
        %v2675 = vpack.c.b16 %v2674, %v2674
        %2676 = vrot.lane.b32.xlu0 %v2675, 32
        %v2677 = vpop.permute.xlu0 %2676
        %v2679 = vunpack.c.l.b16 %v2637
        %v2680 = vpack.c.b16 %v2679, %v2679
        %2681 = vrot.lane.b32.xlu0 %v2680, 40
        %v2682 = vpop.permute.xlu0 %2681
        %2684 = vst [vmem:[#allocation1] ss:$4 sm:$0xff] %v2638
        %v2685 = vld.sshfl [vmem:[#allocation1] sm:$0xff pattern:$0x73625140]
        %2687 = vrot.lane.b32.xlu0 %v2685, 48
        %v2688 = vpop.permute.xlu0 %2687
        %2690 = vst [vmem:[#allocation1] ss:$4 sm:$0xff] %v2639
        %v2691 = vld.sshfl [vmem:[#allocation1] sm:$0xff pattern:$0x73625140]
        %2693 = vrot.lane.b32.xlu0 %v2691, 56
        %v2694 = vpop.permute.xlu0 %2693
        %v2696 = vunpack.c.l.b16 %v2641
        %v2697 = vpack.c.b16 %v2696, %v2696
        %2698 = vrot.lane.b32.xlu0 %v2697, 64
        %v2699 = vpop.permute.xlu0 %2698
        %v2701 = vunpack.c.l.b16 %v2643
        %v2702 = vpack.c.b16 %v2701, %v2701
        %2703 = vrot.lane.b32.xlu0 %v2702, 72
        %v2704 = vpop.permute.xlu0 %2703
        %2706 = vst [vmem:[#allocation1] ss:$4 sm:$0xff] %v2645
        %v2707 = vld.sshfl [vmem:[#allocation1] sm:$0xff pattern:$0x73625140]
        %2709 = vrot.lane.b32.xlu0 %v2707, 80
        %v2710 = vpop.permute.xlu0 %2709
        %2712 = vst [vmem:[#allocation1] ss:$4 sm:$0xff] %v2647
        %v2713 = vld.sshfl [vmem:[#allocation1] sm:$0xff pattern:$0x73625140]
        %2715 = vrot.lane.b32.xlu0 %v2713, 88
        %v2716 = vpop.permute.xlu0 %2715
        %v2718 = vunpack.c.l.b16 %v2649
        %v2719 = vpack.c.b16 %v2718, %v2718
        %2720 = vrot.lane.b32.xlu0 %v2719, 96
        %v2721 = vpop.permute.xlu0 %2720
        %v2723 = vunpack.c.l.b16 %v2651
        %v2724 = vpack.c.b16 %v2723, %v2723
        %2725 = vrot.lane.b32.xlu0 %v2724, 104
        %v2726 = vpop.permute.xlu0 %2725
        %2728 = vst [vmem:[#allocation1] ss:$4 sm:$0xff] %v2653
        %v2729 = vld.sshfl [vmem:[#allocation1] sm:$0xff pattern:$0x73625140]
        %2731 = vrot.lane.b32.xlu0 %v2729, 112
        %v2732 = vpop.permute.xlu0 %2731
        %2734 = vst [vmem:[#allocation1] ss:$4 sm:$0xff] %v2655
        %v2735 = vld.sshfl [vmem:[#allocation1] sm:$0xff pattern:$0x73625140]
        %2737 = vrot.lane.b32.xlu0 %v2735, 120
        %v2738 = vpop.permute.xlu0 %2737
        %v2741 = vsel %vm530, %v2632, %v2660
        %v2743 = vsel %vm534, %v2741, %v2666
        %v2745 = vsel %vm537, %v2743, %v2672
        %v2747 = vsel %vm540, %v2745, %v2677
        %v2749 = vsel %vm543, %v2747, %v2682
        %v2751 = vsel %vm546, %v2749, %v2688
        %v2753 = vsel %vm549, %v2751, %v2694
        %v2755 = vsel %vm552, %v2753, %v2699
        %v2757 = vsel %vm555, %v2755, %v2704
        %v2759 = vsel %vm558, %v2757, %v2710
        %v2761 = vsel %vm561, %v2759, %v2716
        %v2763 = vsel %vm564, %v2761, %v2721
        %v2765 = vsel %vm567, %v2763, %v2726
        %v2767 = vsel %vm570, %v2765, %v2732
        %v2769 = vsel %vm573, %v2767, %v2738
        %2771 = vmatpush.bf16.msra.mxu0 %v619
        %2772 = vmatpush.bf16.msra.mxu0 %v618
        %2773 = vmatpush.bf16.msra.mxu0 %v617
        %2774 = vmatpush.bf16.msra.mxu0 %v616
        %2775 = vmatpush.bf16.msra.mxu0 %v615
        %2776 = vmatpush.bf16.msra.mxu0 %v614
        %2777 = vmatpush.bf16.msra.mxu0 %v613
        %2778 = vmatpush.bf16.msra.mxu0 %v612
        %2779 = vmatmul.bf16.gmra.mxu0 %v2769
        %v2780 = vpop.f32.mrf.mxu0
        %v2781 = vadd.f32 %v578, %v2780
        %v2782 = vpop.f32.mrf.mxu0
        %2783 = vdwg.mxu0
        %v2784 = vmax.f32 %v2781, 0.0
        %s2785 = scalar_lea.vmem [#allocation3], 56
        %2786 = vst.msk [vmem:[%s2785] sm:$0xf] %vm643, %v2784
        %v2787 = vld [vmem:[%s2287] sm:$0x3]
        %v2788 = vld [vmem:[%s2289] sm:$0x3]
        %v2789 = vld [vmem:[%s2283] sm:$0x7]
        %v2790 = vld [vmem:[%s2285] sm:$0x7]
        %v2791 = vld [vmem:[%s2295] sm:$0x3]
        %v2792 = vld [vmem:[%s2297] sm:$0x3]
        %v2793 = vld [vmem:[%s2291] sm:$0x7]
        %v2794 = vld [vmem:[%s2293] sm:$0x7]
        %v2795 = vld [vmem:[%s2644] sm:$0x3]
        %v2796 = vld [vmem:[%s2646] sm:$0x3]
        %v2797 = vld [vmem:[%s2640] sm:$0x7]
        %v2798 = vld [vmem:[%s2642] sm:$0x7]
        %v2799 = vld [vmem:[%s2652] sm:$0x3]
        %v2800 = vld [vmem:[%s2654] sm:$0x3]
        %v2801 = vld [vmem:[%s2648] sm:$0x7]
        %v2802 = vld [vmem:[%s2650] sm:$0x7]
        %2804 = vst [vmem:[#allocation1] ss:$4 sm:$0xff] %v2788
        %v2805 = vld.sshfl [vmem:[#allocation1] sm:$0xff pattern:$0x73625140]
        %2807 = vrot.lane.b32.xlu0 %v2805, 8
        %v2808 = vpop.permute.xlu0 %2807
        %v2810 = vunpack.c.l.b16 %v2789
        %v2811 = vpack.c.b16 %v2810, %v2810
        %v2813 = vshrl.u32 %v2811, 16
        %v2815 = vshll.u32 %v2811, 16
        %v2817 = vrot.slane %v2815, 1
        %v2818 = vor.u32 %v2813, %v2817
        %2819 = vrot.lane.b32.xlu0 %v2818, 16
        %v2820 = vpop.permute.xlu0 %2819
        %v2822 = vunpack.c.l.b16 %v2790
        %v2823 = vpack.c.b16 %v2822, %v2822
        %v2825 = vshrl.u32 %v2823, 16
        %v2827 = vshll.u32 %v2823, 16
        %v2829 = vrot.slane %v2827, 1
        %v2830 = vor.u32 %v2825, %v2829
        %2831 = vrot.lane.b32.xlu0 %v2830, 24
        %v2832 = vpop.permute.xlu0 %2831
        %2834 = vst [vmem:[#allocation1] ss:$4 sm:$0xff] %v2791
        %v2835 = vld.sshfl [vmem:[#allocation1] sm:$0xff pattern:$0x73625140]
        %2837 = vrot.lane.b32.xlu0 %v2835, 32
        %v2838 = vpop.permute.xlu0 %2837
        %2840 = vst [vmem:[#allocation1] ss:$4 sm:$0xff] %v2792
        %v2841 = vld.sshfl [vmem:[#allocation1] sm:$0xff pattern:$0x73625140]
        %2843 = vrot.lane.b32.xlu0 %v2841, 40
        %v2844 = vpop.permute.xlu0 %2843
        %v2846 = vunpack.c.l.b16 %v2793
        %v2847 = vpack.c.b16 %v2846, %v2846
        %v2849 = vshrl.u32 %v2847, 16
        %v2851 = vshll.u32 %v2847, 16
        %v2853 = vrot.slane %v2851, 1
        %v2854 = vor.u32 %v2849, %v2853
        %2855 = vrot.lane.b32.xlu0 %v2854, 48
        %v2856 = vpop.permute.xlu0 %2855
        %v2858 = vunpack.c.l.b16 %v2794
        %v2859 = vpack.c.b16 %v2858, %v2858
        %v2861 = vshrl.u32 %v2859, 16
        %v2863 = vshll.u32 %v2859, 16
        %v2865 = vrot.slane %v2863, 1
        %v2866 = vor.u32 %v2861, %v2865
        %2867 = vrot.lane.b32.xlu0 %v2866, 56
        %v2868 = vpop.permute.xlu0 %2867
        %2870 = vst [vmem:[#allocation1] ss:$4 sm:$0xff] %v2795
        %v2871 = vld.sshfl [vmem:[#allocation1] sm:$0xff pattern:$0x73625140]
        %2873 = vrot.lane.b32.xlu0 %v2871, 64
        %v2874 = vpop.permute.xlu0 %2873
        %2876 = vst [vmem:[#allocation1] ss:$4 sm:$0xff] %v2796
        %v2877 = vld.sshfl [vmem:[#allocation1] sm:$0xff pattern:$0x73625140]
        %2879 = vrot.lane.b32.xlu0 %v2877, 72
        %v2880 = vpop.permute.xlu0 %2879
        %v2882 = vunpack.c.l.b16 %v2797
        %v2883 = vpack.c.b16 %v2882, %v2882
        %v2885 = vshrl.u32 %v2883, 16
        %v2887 = vshll.u32 %v2883, 16
        %v2889 = vrot.slane %v2887, 1
        %v2890 = vor.u32 %v2885, %v2889
        %2891 = vrot.lane.b32.xlu0 %v2890, 80
        %v2892 = vpop.permute.xlu0 %2891
        %v2894 = vunpack.c.l.b16 %v2798
        %v2895 = vpack.c.b16 %v2894, %v2894
        %v2897 = vshrl.u32 %v2895, 16
        %v2899 = vshll.u32 %v2895, 16
        %v2901 = vrot.slane %v2899, 1
        %v2902 = vor.u32 %v2897, %v2901
        %2903 = vrot.lane.b32.xlu0 %v2902, 88
        %v2904 = vpop.permute.xlu0 %2903
        %2906 = vst [vmem:[#allocation1] ss:$4 sm:$0xff] %v2799
        %v2907 = vld.sshfl [vmem:[#allocation1] sm:$0xff pattern:$0x73625140]
        %2909 = vrot.lane.b32.xlu0 %v2907, 96
        %v2910 = vpop.permute.xlu0 %2909
        %2912 = vst [vmem:[#allocation1] ss:$4 sm:$0xff] %v2800
        %v2913 = vld.sshfl [vmem:[#allocation1] sm:$0xff pattern:$0x73625140]
        %2915 = vrot.lane.b32.xlu0 %v2913, 104
        %v2916 = vpop.permute.xlu0 %2915
        %v2918 = vunpack.c.l.b16 %v2801
        %v2919 = vpack.c.b16 %v2918, %v2918
        %v2921 = vshrl.u32 %v2919, 16
        %v2923 = vshll.u32 %v2919, 16
        %v2925 = vrot.slane %v2923, 1
        %v2926 = vor.u32 %v2921, %v2925
        %2927 = vrot.lane.b32.xlu0 %v2926, 112
        %v2928 = vpop.permute.xlu0 %2927
        %v2930 = vunpack.c.l.b16 %v2802
        %v2931 = vpack.c.b16 %v2930, %v2930
        %v2933 = vshrl.u32 %v2931, 16
        %v2935 = vshll.u32 %v2931, 16
        %v2937 = vrot.slane %v2935, 1
        %v2938 = vor.u32 %v2933, %v2937
        %2939 = vrot.lane.b32.xlu0 %v2938, 120
        %v2940 = vpop.permute.xlu0 %2939
        %v2943 = vsel %vm530, %v2787, %v2808
        %v2945 = vsel %vm534, %v2943, %v2820
        %v2947 = vsel %vm537, %v2945, %v2832
        %v2949 = vsel %vm540, %v2947, %v2838
        %v2951 = vsel %vm543, %v2949, %v2844
        %v2953 = vsel %vm546, %v2951, %v2856
        %v2955 = vsel %vm549, %v2953, %v2868
        %v2957 = vsel %vm552, %v2955, %v2874
        %v2959 = vsel %vm555, %v2957, %v2880
        %v2961 = vsel %vm558, %v2959, %v2892
        %v2963 = vsel %vm561, %v2961, %v2904
        %v2965 = vsel %vm564, %v2963, %v2910
        %v2967 = vsel %vm567, %v2965, %v2916
        %v2969 = vsel %vm570, %v2967, %v2928
        %v2971 = vsel %vm573, %v2969, %v2940
        %2973 = vmatpush.bf16.msra.mxu0 %v619
        %2974 = vmatpush.bf16.msra.mxu0 %v618
        %2975 = vmatpush.bf16.msra.mxu0 %v617
        %2976 = vmatpush.bf16.msra.mxu0 %v616
        %2977 = vmatpush.bf16.msra.mxu0 %v615
        %2978 = vmatpush.bf16.msra.mxu0 %v614
        %2979 = vmatpush.bf16.msra.mxu0 %v613
        %2980 = vmatpush.bf16.msra.mxu0 %v612
        %2981 = vmatmul.bf16.gmra.mxu0 %v2971
        %v2982 = vpop.f32.mrf.mxu0
        %v2983 = vadd.f32 %v578, %v2982
        %v2984 = vpop.f32.mrf.mxu0
        %2985 = vdwg.mxu0
        %v2986 = vmax.f32 %v2983, 0.0
        %s2987 = scalar_lea.vmem [#allocation2], 56
        %2988 = vst.msk [vmem:[%s2987 + $0x1] sm:$0xf] %vm643, %v2986
        %v2989 = vld [vmem:[%s2640] sm:$0x3]
        %v2990 = vld [vmem:[%s2642] sm:$0x3]
        %v2991 = vld [vmem:[%s2644] sm:$0x3]
        %v2992 = vld [vmem:[%s2646] sm:$0x3]
        %v2993 = vld [vmem:[%s2648] sm:$0x3]
        %v2994 = vld [vmem:[%s2650] sm:$0x3]
        %v2995 = vld [vmem:[%s2652] sm:$0x3]
        %v2996 = vld [vmem:[%s2654] sm:$0x3]
        %s2997 = scalar_lea.vmem %s348, 64
        %v2998 = vld [vmem:[%s2997] sm:$0x3]
        %s2999 = scalar_lea.vmem %s353, 64
        %v3000 = vld [vmem:[%s2999] sm:$0x3]
        %s3001 = scalar_lea.vmem %s358, 32
        %v3002 = vld [vmem:[%s3001] sm:$0x3]
        %s3003 = scalar_lea.vmem %s363, 32
        %v3004 = vld [vmem:[%s3003] sm:$0x3]
        %s3005 = scalar_lea.vmem %s348, 68
        %v3006 = vld [vmem:[%s3005] sm:$0x3]
        %s3007 = scalar_lea.vmem %s353, 68
        %v3008 = vld [vmem:[%s3007] sm:$0x3]
        %s3009 = scalar_lea.vmem %s358, 34
        %v3010 = vld [vmem:[%s3009] sm:$0x3]
        %s3011 = scalar_lea.vmem %s363, 34
        %v3012 = vld [vmem:[%s3011] sm:$0x3]
        %v3014 = vunpack.c.l.b16 %v2990
        %v3015 = vpack.c.b16 %v3014, %v3014
        %3016 = vrot.lane.b32.xlu0 %v3015, 8
        %v3017 = vpop.permute.xlu0 %3016
        %3019 = vst [vmem:[#allocation1] ss:$4 sm:$0xff] %v2991
        %v3020 = vld.sshfl [vmem:[#allocation1] sm:$0xff pattern:$0x73625140]
        %3022 = vrot.lane.b32.xlu0 %v3020, 16
        %v3023 = vpop.permute.xlu0 %3022
        %3025 = vst [vmem:[#allocation1] ss:$4 sm:$0xff] %v2992
        %v3026 = vld.sshfl [vmem:[#allocation1] sm:$0xff pattern:$0x73625140]
        %3028 = vrot.lane.b32.xlu0 %v3026, 24
        %v3029 = vpop.permute.xlu0 %3028
        %v3031 = vunpack.c.l.b16 %v2993
        %v3032 = vpack.c.b16 %v3031, %v3031
        %3033 = vrot.lane.b32.xlu0 %v3032, 32
        %v3034 = vpop.permute.xlu0 %3033
        %v3036 = vunpack.c.l.b16 %v2994
        %v3037 = vpack.c.b16 %v3036, %v3036
        %3038 = vrot.lane.b32.xlu0 %v3037, 40
        %v3039 = vpop.permute.xlu0 %3038
        %3041 = vst [vmem:[#allocation1] ss:$4 sm:$0xff] %v2995
        %v3042 = vld.sshfl [vmem:[#allocation1] sm:$0xff pattern:$0x73625140]
        %3044 = vrot.lane.b32.xlu0 %v3042, 48
        %v3045 = vpop.permute.xlu0 %3044
        %3047 = vst [vmem:[#allocation1] ss:$4 sm:$0xff] %v2996
        %v3048 = vld.sshfl [vmem:[#allocation1] sm:$0xff pattern:$0x73625140]
        %3050 = vrot.lane.b32.xlu0 %v3048, 56
        %v3051 = vpop.permute.xlu0 %3050
        %v3053 = vunpack.c.l.b16 %v2998
        %v3054 = vpack.c.b16 %v3053, %v3053
        %3055 = vrot.lane.b32.xlu0 %v3054, 64
        %v3056 = vpop.permute.xlu0 %3055
        %v3058 = vunpack.c.l.b16 %v3000
        %v3059 = vpack.c.b16 %v3058, %v3058
        %3060 = vrot.lane.b32.xlu0 %v3059, 72
        %v3061 = vpop.permute.xlu0 %3060
        %3063 = vst [vmem:[#allocation1] ss:$4 sm:$0xff] %v3002
        %v3064 = vld.sshfl [vmem:[#allocation1] sm:$0xff pattern:$0x73625140]
        %3066 = vrot.lane.b32.xlu0 %v3064, 80
        %v3067 = vpop.permute.xlu0 %3066
        %3069 = vst [vmem:[#allocation1] ss:$4 sm:$0xff] %v3004
        %v3070 = vld.sshfl [vmem:[#allocation1] sm:$0xff pattern:$0x73625140]
        %3072 = vrot.lane.b32.xlu0 %v3070, 88
        %v3073 = vpop.permute.xlu0 %3072
        %v3075 = vunpack.c.l.b16 %v3006
        %v3076 = vpack.c.b16 %v3075, %v3075
        %3077 = vrot.lane.b32.xlu0 %v3076, 96
        %v3078 = vpop.permute.xlu0 %3077
        %v3080 = vunpack.c.l.b16 %v3008
        %v3081 = vpack.c.b16 %v3080, %v3080
        %3082 = vrot.lane.b32.xlu0 %v3081, 104
        %v3083 = vpop.permute.xlu0 %3082
        %3085 = vst [vmem:[#allocation1] ss:$4 sm:$0xff] %v3010
        %v3086 = vld.sshfl [vmem:[#allocation1] sm:$0xff pattern:$0x73625140]
        %3088 = vrot.lane.b32.xlu0 %v3086, 112
        %v3089 = vpop.permute.xlu0 %3088
        %3091 = vst [vmem:[#allocation1] ss:$4 sm:$0xff] %v3012
        %v3092 = vld.sshfl [vmem:[#allocation1] sm:$0xff pattern:$0x73625140]
        %3094 = vrot.lane.b32.xlu0 %v3092, 120
        %v3095 = vpop.permute.xlu0 %3094
        %v3098 = vsel %vm530, %v2989, %v3017
        %v3100 = vsel %vm534, %v3098, %v3023
        %v3102 = vsel %vm537, %v3100, %v3029
        %v3104 = vsel %vm540, %v3102, %v3034
        %v3106 = vsel %vm543, %v3104, %v3039
        %v3108 = vsel %vm546, %v3106, %v3045
        %v3110 = vsel %vm549, %v3108, %v3051
        %v3112 = vsel %vm552, %v3110, %v3056
        %v3114 = vsel %vm555, %v3112, %v3061
        %v3116 = vsel %vm558, %v3114, %v3067
        %v3118 = vsel %vm561, %v3116, %v3073
        %v3120 = vsel %vm564, %v3118, %v3078
        %v3122 = vsel %vm567, %v3120, %v3083
        %v3124 = vsel %vm570, %v3122, %v3089
        %v3126 = vsel %vm573, %v3124, %v3095
        %3128 = vmatpush.bf16.msra.mxu0 %v619
        %3129 = vmatpush.bf16.msra.mxu0 %v618
        %3130 = vmatpush.bf16.msra.mxu0 %v617
        %3131 = vmatpush.bf16.msra.mxu0 %v616
        %3132 = vmatpush.bf16.msra.mxu0 %v615
        %3133 = vmatpush.bf16.msra.mxu0 %v614
        %3134 = vmatpush.bf16.msra.mxu0 %v613
        %3135 = vmatpush.bf16.msra.mxu0 %v612
        %3136 = vmatmul.bf16.gmra.mxu0 %v3126
        %v3137 = vpop.f32.mrf.mxu0
        %v3138 = vadd.f32 %v578, %v3137
        %v3139 = vpop.f32.mrf.mxu0
        %3140 = vdwg.mxu0
        %v3141 = vmax.f32 %v3138, 0.0
        %s3142 = scalar_lea.vmem [#allocation3], 64
        %3143 = vst.msk [vmem:[%s3142] sm:$0xf] %vm643, %v3141
        %v3144 = vld [vmem:[%s2644] sm:$0x3]
        %v3145 = vld [vmem:[%s2646] sm:$0x3]
        %v3146 = vld [vmem:[%s2640] sm:$0x7]
        %v3147 = vld [vmem:[%s2642] sm:$0x7]
        %v3148 = vld [vmem:[%s2652] sm:$0x3]
        %v3149 = vld [vmem:[%s2654] sm:$0x3]
        %v3150 = vld [vmem:[%s2648] sm:$0x7]
        %v3151 = vld [vmem:[%s2650] sm:$0x7]
        %v3152 = vld [vmem:[%s3001] sm:$0x3]
        %v3153 = vld [vmem:[%s3003] sm:$0x3]
        %v3154 = vld [vmem:[%s2997] sm:$0x7]
        %v3155 = vld [vmem:[%s2999] sm:$0x7]
        %v3156 = vld [vmem:[%s3009] sm:$0x3]
        %v3157 = vld [vmem:[%s3011] sm:$0x3]
        %v3158 = vld [vmem:[%s3005] sm:$0x7]
        %v3159 = vld [vmem:[%s3007] sm:$0x7]
        %3161 = vst [vmem:[#allocation1] ss:$4 sm:$0xff] %v3145
        %v3162 = vld.sshfl [vmem:[#allocation1] sm:$0xff pattern:$0x73625140]
        %3164 = vrot.lane.b32.xlu0 %v3162, 8
        %v3165 = vpop.permute.xlu0 %3164
        %v3167 = vunpack.c.l.b16 %v3146
        %v3168 = vpack.c.b16 %v3167, %v3167
        %v3170 = vshrl.u32 %v3168, 16
        %v3172 = vshll.u32 %v3168, 16
        %v3174 = vrot.slane %v3172, 1
        %v3175 = vor.u32 %v3170, %v3174
        %3176 = vrot.lane.b32.xlu0 %v3175, 16
        %v3177 = vpop.permute.xlu0 %3176
        %v3179 = vunpack.c.l.b16 %v3147
        %v3180 = vpack.c.b16 %v3179, %v3179
        %v3182 = vshrl.u32 %v3180, 16
        %v3184 = vshll.u32 %v3180, 16
        %v3186 = vrot.slane %v3184, 1
        %v3187 = vor.u32 %v3182, %v3186
        %3188 = vrot.lane.b32.xlu0 %v3187, 24
        %v3189 = vpop.permute.xlu0 %3188
        %3191 = vst [vmem:[#allocation1] ss:$4 sm:$0xff] %v3148
        %v3192 = vld.sshfl [vmem:[#allocation1] sm:$0xff pattern:$0x73625140]
        %3194 = vrot.lane.b32.xlu0 %v3192, 32
        %v3195 = vpop.permute.xlu0 %3194
        %3197 = vst [vmem:[#allocation1] ss:$4 sm:$0xff] %v3149
        %v3198 = vld.sshfl [vmem:[#allocation1] sm:$0xff pattern:$0x73625140]
        %3200 = vrot.lane.b32.xlu0 %v3198, 40
        %v3201 = vpop.permute.xlu0 %3200
        %v3203 = vunpack.c.l.b16 %v3150
        %v3204 = vpack.c.b16 %v3203, %v3203
        %v3206 = vshrl.u32 %v3204, 16
        %v3208 = vshll.u32 %v3204, 16
        %v3210 = vrot.slane %v3208, 1
        %v3211 = vor.u32 %v3206, %v3210
        %3212 = vrot.lane.b32.xlu0 %v3211, 48
        %v3213 = vpop.permute.xlu0 %3212
        %v3215 = vunpack.c.l.b16 %v3151
        %v3216 = vpack.c.b16 %v3215, %v3215
        %v3218 = vshrl.u32 %v3216, 16
        %v3220 = vshll.u32 %v3216, 16
        %v3222 = vrot.slane %v3220, 1
        %v3223 = vor.u32 %v3218, %v3222
        %3224 = vrot.lane.b32.xlu0 %v3223, 56
        %v3225 = vpop.permute.xlu0 %3224
        %3227 = vst [vmem:[#allocation1] ss:$4 sm:$0xff] %v3152
        %v3228 = vld.sshfl [vmem:[#allocation1] sm:$0xff pattern:$0x73625140]
        %3230 = vrot.lane.b32.xlu0 %v3228, 64
        %v3231 = vpop.permute.xlu0 %3230
        %3233 = vst [vmem:[#allocation1] ss:$4 sm:$0xff] %v3153
        %v3234 = vld.sshfl [vmem:[#allocation1] sm:$0xff pattern:$0x73625140]
        %3236 = vrot.lane.b32.xlu0 %v3234, 72
        %v3237 = vpop.permute.xlu0 %3236
        %v3239 = vunpack.c.l.b16 %v3154
        %v3240 = vpack.c.b16 %v3239, %v3239
        %v3242 = vshrl.u32 %v3240, 16
        %v3244 = vshll.u32 %v3240, 16
        %v3246 = vrot.slane %v3244, 1
        %v3247 = vor.u32 %v3242, %v3246
        %3248 = vrot.lane.b32.xlu0 %v3247, 80
        %v3249 = vpop.permute.xlu0 %3248
        %v3251 = vunpack.c.l.b16 %v3155
        %v3252 = vpack.c.b16 %v3251, %v3251
        %v3254 = vshrl.u32 %v3252, 16
        %v3256 = vshll.u32 %v3252, 16
        %v3258 = vrot.slane %v3256, 1
        %v3259 = vor.u32 %v3254, %v3258
        %3260 = vrot.lane.b32.xlu0 %v3259, 88
        %v3261 = vpop.permute.xlu0 %3260
        %3263 = vst [vmem:[#allocation1] ss:$4 sm:$0xff] %v3156
        %v3264 = vld.sshfl [vmem:[#allocation1] sm:$0xff pattern:$0x73625140]
        %3266 = vrot.lane.b32.xlu0 %v3264, 96
        %v3267 = vpop.permute.xlu0 %3266
        %3269 = vst [vmem:[#allocation1] ss:$4 sm:$0xff] %v3157
        %v3270 = vld.sshfl [vmem:[#allocation1] sm:$0xff pattern:$0x73625140]
        %3272 = vrot.lane.b32.xlu0 %v3270, 104
        %v3273 = vpop.permute.xlu0 %3272
        %v3275 = vunpack.c.l.b16 %v3158
        %v3276 = vpack.c.b16 %v3275, %v3275
        %v3278 = vshrl.u32 %v3276, 16
        %v3280 = vshll.u32 %v3276, 16
        %v3282 = vrot.slane %v3280, 1
        %v3283 = vor.u32 %v3278, %v3282
        %3284 = vrot.lane.b32.xlu0 %v3283, 112
        %v3285 = vpop.permute.xlu0 %3284
        %v3287 = vunpack.c.l.b16 %v3159
        %v3288 = vpack.c.b16 %v3287, %v3287
        %v3290 = vshrl.u32 %v3288, 16
        %v3292 = vshll.u32 %v3288, 16
        %v3294 = vrot.slane %v3292, 1
        %v3295 = vor.u32 %v3290, %v3294
        %3296 = vrot.lane.b32.xlu0 %v3295, 120
        %v3297 = vpop.permute.xlu0 %3296
        %v3300 = vsel %vm530, %v3144, %v3165
        %v3302 = vsel %vm534, %v3300, %v3177
        %v3304 = vsel %vm537, %v3302, %v3189
        %v3306 = vsel %vm540, %v3304, %v3195
        %v3308 = vsel %vm543, %v3306, %v3201
        %v3310 = vsel %vm546, %v3308, %v3213
        %v3312 = vsel %vm549, %v3310, %v3225
        %v3314 = vsel %vm552, %v3312, %v3231
        %v3316 = vsel %vm555, %v3314, %v3237
        %v3318 = vsel %vm558, %v3316, %v3249
        %v3320 = vsel %vm561, %v3318, %v3261
        %v3322 = vsel %vm564, %v3320, %v3267
        %v3324 = vsel %vm567, %v3322, %v3273
        %v3326 = vsel %vm570, %v3324, %v3285
        %v3328 = vsel %vm573, %v3326, %v3297
        %3330 = vmatpush.bf16.msra.mxu0 %v619
        %3331 = vmatpush.bf16.msra.mxu0 %v618
        %3332 = vmatpush.bf16.msra.mxu0 %v617
        %3333 = vmatpush.bf16.msra.mxu0 %v616
        %3334 = vmatpush.bf16.msra.mxu0 %v615
        %3335 = vmatpush.bf16.msra.mxu0 %v614
        %3336 = vmatpush.bf16.msra.mxu0 %v613
        %3337 = vmatpush.bf16.msra.mxu0 %v612
        %3338 = vmatmul.bf16.gmra.mxu0 %v3328
        %v3339 = vpop.f32.mrf.mxu0
        %v3340 = vadd.f32 %v578, %v3339
        %v3341 = vpop.f32.mrf.mxu0
        %3342 = vdwg.mxu0
        %v3343 = vmax.f32 %v3340, 0.0
        %s3344 = scalar_lea.vmem [#allocation2], 64
        %3345 = vst.msk [vmem:[%s3344 + $0x1] sm:$0xf] %vm643, %v3343
        %v3346 = vld [vmem:[#allocation2] sm:$0xf]
        %v3347 = vld [vmem:[#allocation3] sm:$0xf]
        %v3348 = vld [vmem:[#allocation2 + $0x1] sm:$0xf]
        %v3349 = vld [vmem:[#allocation3 + $0x1] sm:$0xf]
        %v3350 = vld [vmem:[%s845] sm:$0xf]
        %v3351 = vld [vmem:[%s642] sm:$0xf]
        %v3352 = vld [vmem:[%s845 + $0x1] sm:$0xf]
        %v3353 = vld [vmem:[%s642 + $0x1] sm:$0xf]
        %v3354 = vld [vmem:[%s1202] sm:$0xf]
        %v3355 = vld [vmem:[%s1000] sm:$0xf]
        %v3356 = vld [vmem:[%s1202 + $0x1] sm:$0xf]
        %v3357 = vld [vmem:[%s1000 + $0x1] sm:$0xf]
        %v3358 = vld [vmem:[%s1559] sm:$0xf]
        %v3359 = vld [vmem:[%s1357] sm:$0xf]
        %v3360 = vld [vmem:[%s1559 + $0x1] sm:$0xf]
        %v3361 = vld [vmem:[%s1357 + $0x1] sm:$0xf]
        %3363 = vrot.lane.b32.xlu0 %v3347, 8
        %v3364 = vpop.permute.xlu0 %3363
        %3367 = vrot.lane.b32.xlu0 %v3348, 16
        %v3368 = vpop.permute.xlu0 %3367
        %3371 = vrot.lane.b32.xlu0 %v3349, 24
        %v3372 = vpop.permute.xlu0 %3371
        %3375 = vrot.lane.b32.xlu0 %v3350, 32
        %v3376 = vpop.permute.xlu0 %3375
        %3379 = vrot.lane.b32.xlu0 %v3351, 40
        %v3380 = vpop.permute.xlu0 %3379
        %3383 = vrot.lane.b32.xlu0 %v3352, 48
        %v3384 = vpop.permute.xlu0 %3383
        %3387 = vrot.lane.b32.xlu0 %v3353, 56
        %v3388 = vpop.permute.xlu0 %3387
        %3391 = vrot.lane.b32.xlu0 %v3354, 64
        %v3392 = vpop.permute.xlu0 %3391
        %3395 = vrot.lane.b32.xlu0 %v3355, 72
        %v3396 = vpop.permute.xlu0 %3395
        %3399 = vrot.lane.b32.xlu0 %v3356, 80
        %v3400 = vpop.permute.xlu0 %3399
        %3403 = vrot.lane.b32.xlu0 %v3357, 88
        %v3404 = vpop.permute.xlu0 %3403
        %3407 = vrot.lane.b32.xlu0 %v3358, 96
        %v3408 = vpop.permute.xlu0 %3407
        %3411 = vrot.lane.b32.xlu0 %v3359, 104
        %v3412 = vpop.permute.xlu0 %3411
        %3415 = vrot.lane.b32.xlu0 %v3360, 112
        %v3416 = vpop.permute.xlu0 %3415
        %3419 = vrot.lane.b32.xlu0 %v3361, 120
        %v3420 = vpop.permute.xlu0 %3419
        %v3422 = vsel %vm530, %v3346, %v3364
        %v3423 = vsel %vm534, %v3422, %v3368
        %v3424 = vsel %vm537, %v3423, %v3372
        %v3425 = vsel %vm540, %v3424, %v3376
        %v3426 = vsel %vm543, %v3425, %v3380
        %v3427 = vsel %vm546, %v3426, %v3384
        %v3428 = vsel %vm549, %v3427, %v3388
        %v3429 = vsel %vm552, %v3428, %v3392
        %v3430 = vsel %vm555, %v3429, %v3396
        %v3431 = vsel %vm558, %v3430, %v3400
        %v3432 = vsel %vm561, %v3431, %v3404
        %v3433 = vsel %vm564, %v3432, %v3408
        %v3434 = vsel %vm567, %v3433, %v3412
        %v3435 = vsel %vm570, %v3434, %v3416
        %v3436 = vsel %vm573, %v3435, %v3420
        %v3437 = vpack.c.bf16 %v3436, %v3436
        %v3439 = vperm.slane %v397, 0
        %v3457 = vunpack.c.l.b16 %v381
        %v3458 = vunpack.c.l.b16 %v382
        %v3459 = vunpack.c.l.b16 %v383
        %v3460 = vunpack.c.l.b16 %v384
        %v3461 = vunpack.c.l.b16 %v385
        %v3462 = vunpack.c.l.b16 %v386
        %v3463 = vunpack.c.l.b16 %v387
        %v3464 = vunpack.c.l.b16 %v388
        %v3465 = vunpack.c.l.b16 %v389
        %v3466 = vunpack.c.l.b16 %v390
        %v3467 = vunpack.c.l.b16 %v391
        %v3468 = vunpack.c.l.b16 %v392
        %v3469 = vunpack.c.l.b16 %v393
        %v3470 = vunpack.c.l.b16 %v394
        %v3471 = vunpack.c.l.b16 %v395
        %v3472 = vunpack.c.l.b16 %v396
        %v3473 = vpack.c.b16 %v3458, %v3457
        %v3474 = vpack.c.b16 %v3460, %v3459
        %v3475 = vpack.c.b16 %v3462, %v3461
        %v3476 = vpack.c.b16 %v3464, %v3463
        %v3477 = vpack.c.b16 %v3466, %v3465
        %v3478 = vpack.c.b16 %v3468, %v3467
        %v3479 = vpack.c.b16 %v3470, %v3469
        %v3480 = vpack.c.b16 %v3472, %v3471
        %3489 = vmatpush.bf16.msra.mxu0 %v3480
        %3490 = vmatpush.bf16.msra.mxu0 %v3479
        %3491 = vmatpush.bf16.msra.mxu0 %v3478
        %3492 = vmatpush.bf16.msra.mxu0 %v3477
        %3493 = vmatpush.bf16.msra.mxu0 %v3476
        %3494 = vmatpush.bf16.msra.mxu0 %v3475
        %3495 = vmatpush.bf16.msra.mxu0 %v3474
        %3496 = vmatpush.bf16.msra.mxu0 %v3473
        %3497 = vmatmul.bf16.gmra.mxu0 %v3437
        %v3498 = vpop.f32.mrf.mxu0
        %v3499 = vadd.f32 %v3439, %v3498
        %v3500 = vpop.f32.mrf.mxu0
        %3501 = vdwg.mxu0
        %v3502 = vmax.f32 %v3499, 0.0
        %vm3503 = vcmask 125952
        %3504 = vst.msk [vmem:[%s343] sm:$0xf] %vm3503, %v3502
        %v3505 = vld [vmem:[%s1202] sm:$0xf]
        %v3506 = vld [vmem:[%s1000] sm:$0xf]
        %v3507 = vld [vmem:[%s1202 + $0x1] sm:$0xf]
        %v3508 = vld [vmem:[%s1000 + $0x1] sm:$0xf]
        %v3509 = vld [vmem:[%s1559] sm:$0xf]
        %v3510 = vld [vmem:[%s1357] sm:$0xf]
        %v3511 = vld [vmem:[%s1559 + $0x1] sm:$0xf]
        %v3512 = vld [vmem:[%s1357 + $0x1] sm:$0xf]
        %v3513 = vld [vmem:[%s1916] sm:$0xf]
        %v3514 = vld [vmem:[%s1714] sm:$0xf]
        %v3515 = vld [vmem:[%s1916 + $0x1] sm:$0xf]
        %v3516 = vld [vmem:[%s1714 + $0x1] sm:$0xf]
        %v3517 = vld [vmem:[%s2273] sm:$0xf]
        %v3518 = vld [vmem:[%s2071] sm:$0xf]
        %v3519 = vld [vmem:[%s2273 + $0x1] sm:$0xf]
        %v3520 = vld [vmem:[%s2071 + $0x1] sm:$0xf]
        %3522 = vrot.lane.b32.xlu0 %v3506, 8
        %v3523 = vpop.permute.xlu0 %3522
        %3526 = vrot.lane.b32.xlu0 %v3507, 16
        %v3527 = vpop.permute.xlu0 %3526
        %3530 = vrot.lane.b32.xlu0 %v3508, 24
        %v3531 = vpop.permute.xlu0 %3530
        %3534 = vrot.lane.b32.xlu0 %v3509, 32
        %v3535 = vpop.permute.xlu0 %3534
        %3538 = vrot.lane.b32.xlu0 %v3510, 40
        %v3539 = vpop.permute.xlu0 %3538
        %3542 = vrot.lane.b32.xlu0 %v3511, 48
        %v3543 = vpop.permute.xlu0 %3542
        %3546 = vrot.lane.b32.xlu0 %v3512, 56
        %v3547 = vpop.permute.xlu0 %3546
        %3550 = vrot.lane.b32.xlu0 %v3513, 64
        %v3551 = vpop.permute.xlu0 %3550
        %3554 = vrot.lane.b32.xlu0 %v3514, 72
        %v3555 = vpop.permute.xlu0 %3554
        %3558 = vrot.lane.b32.xlu0 %v3515, 80
        %v3559 = vpop.permute.xlu0 %3558
        %3562 = vrot.lane.b32.xlu0 %v3516, 88
        %v3563 = vpop.permute.xlu0 %3562
        %3566 = vrot.lane.b32.xlu0 %v3517, 96
        %v3567 = vpop.permute.xlu0 %3566
        %3570 = vrot.lane.b32.xlu0 %v3518, 104
        %v3571 = vpop.permute.xlu0 %3570
        %3574 = vrot.lane.b32.xlu0 %v3519, 112
        %v3575 = vpop.permute.xlu0 %3574
        %3578 = vrot.lane.b32.xlu0 %v3520, 120
        %v3579 = vpop.permute.xlu0 %3578
        %v3581 = vsel %vm530, %v3505, %v3523
        %v3582 = vsel %vm534, %v3581, %v3527
        %v3583 = vsel %vm537, %v3582, %v3531
        %v3584 = vsel %vm540, %v3583, %v3535
        %v3585 = vsel %vm543, %v3584, %v3539
        %v3586 = vsel %vm546, %v3585, %v3543
        %v3587 = vsel %vm549, %v3586, %v3547
        %v3588 = vsel %vm552, %v3587, %v3551
        %v3589 = vsel %vm555, %v3588, %v3555
        %v3590 = vsel %vm558, %v3589, %v3559
        %v3591 = vsel %vm561, %v3590, %v3563
        %v3592 = vsel %vm564, %v3591, %v3567
        %v3593 = vsel %vm567, %v3592, %v3571
        %v3594 = vsel %vm570, %v3593, %v3575
        %v3595 = vsel %vm573, %v3594, %v3579
        %v3596 = vpack.c.bf16 %v3595, %v3595
        %3597 = vmatpush.bf16.msra.mxu0 %v3480
        %3598 = vmatpush.bf16.msra.mxu0 %v3479
        %3599 = vmatpush.bf16.msra.mxu0 %v3478
        %3600 = vmatpush.bf16.msra.mxu0 %v3477
        %3601 = vmatpush.bf16.msra.mxu0 %v3476
        %3602 = vmatpush.bf16.msra.mxu0 %v3475
        %3603 = vmatpush.bf16.msra.mxu0 %v3474
        %3604 = vmatpush.bf16.msra.mxu0 %v3473
        %3605 = vmatmul.bf16.gmra.mxu0 %v3596
        %v3606 = vpop.f32.mrf.mxu0
        %v3607 = vadd.f32 %v3439, %v3606
        %v3608 = vpop.f32.mrf.mxu0
        %3609 = vdwg.mxu0
        %v3610 = vmax.f32 %v3607, 0.0
        %s3611 = scalar_lea.vmem %s343, 4 [#allocation4]
        %3612 = vst.msk [vmem:[%s3611] sm:$0xf] %vm3503, %v3610
        %v3613 = vld [vmem:[%s1916] sm:$0xf]
        %v3614 = vld [vmem:[%s1714] sm:$0xf]
        %v3615 = vld [vmem:[%s1916 + $0x1] sm:$0xf]
        %v3616 = vld [vmem:[%s1714 + $0x1] sm:$0xf]
        %v3617 = vld [vmem:[%s2273] sm:$0xf]
        %v3618 = vld [vmem:[%s2071] sm:$0xf]
        %v3619 = vld [vmem:[%s2273 + $0x1] sm:$0xf]
        %v3620 = vld [vmem:[%s2071 + $0x1] sm:$0xf]
        %v3621 = vld [vmem:[%s2630] sm:$0xf]
        %v3622 = vld [vmem:[%s2428] sm:$0xf]
        %v3623 = vld [vmem:[%s2630 + $0x1] sm:$0xf]
        %v3624 = vld [vmem:[%s2428 + $0x1] sm:$0xf]
        %v3625 = vld [vmem:[%s2987] sm:$0xf]
        %v3626 = vld [vmem:[%s2785] sm:$0xf]
        %v3627 = vld [vmem:[%s2987 + $0x1] sm:$0xf]
        %v3628 = vld [vmem:[%s2785 + $0x1] sm:$0xf]
        %3630 = vrot.lane.b32.xlu0 %v3614, 8
        %v3631 = vpop.permute.xlu0 %3630
        %3634 = vrot.lane.b32.xlu0 %v3615, 16
        %v3635 = vpop.permute.xlu0 %3634
        %3638 = vrot.lane.b32.xlu0 %v3616, 24
        %v3639 = vpop.permute.xlu0 %3638
        %3642 = vrot.lane.b32.xlu0 %v3617, 32
        %v3643 = vpop.permute.xlu0 %3642
        %3646 = vrot.lane.b32.xlu0 %v3618, 40
        %v3647 = vpop.permute.xlu0 %3646
        %3650 = vrot.lane.b32.xlu0 %v3619, 48
        %v3651 = vpop.permute.xlu0 %3650
        %3654 = vrot.lane.b32.xlu0 %v3620, 56
        %v3655 = vpop.permute.xlu0 %3654
        %3658 = vrot.lane.b32.xlu0 %v3621, 64
        %v3659 = vpop.permute.xlu0 %3658
        %3662 = vrot.lane.b32.xlu0 %v3622, 72
        %v3663 = vpop.permute.xlu0 %3662
        %3666 = vrot.lane.b32.xlu0 %v3623, 80
        %v3667 = vpop.permute.xlu0 %3666
        %3670 = vrot.lane.b32.xlu0 %v3624, 88
        %v3671 = vpop.permute.xlu0 %3670
        %3674 = vrot.lane.b32.xlu0 %v3625, 96
        %v3675 = vpop.permute.xlu0 %3674
        %3678 = vrot.lane.b32.xlu0 %v3626, 104
        %v3679 = vpop.permute.xlu0 %3678
        %3682 = vrot.lane.b32.xlu0 %v3627, 112
        %v3683 = vpop.permute.xlu0 %3682
        %3686 = vrot.lane.b32.xlu0 %v3628, 120
        %v3687 = vpop.permute.xlu0 %3686
        %v3689 = vsel %vm530, %v3613, %v3631
        %v3690 = vsel %vm534, %v3689, %v3635
        %v3691 = vsel %vm537, %v3690, %v3639
        %v3692 = vsel %vm540, %v3691, %v3643
        %v3693 = vsel %vm543, %v3692, %v3647
        %v3694 = vsel %vm546, %v3693, %v3651
        %v3695 = vsel %vm549, %v3694, %v3655
        %v3696 = vsel %vm552, %v3695, %v3659
        %v3697 = vsel %vm555, %v3696, %v3663
        %v3698 = vsel %vm558, %v3697, %v3667
        %v3699 = vsel %vm561, %v3698, %v3671
        %v3700 = vsel %vm564, %v3699, %v3675
        %v3701 = vsel %vm567, %v3700, %v3679
        %v3702 = vsel %vm570, %v3701, %v3683
        %v3703 = vsel %vm573, %v3702, %v3687
        %v3704 = vpack.c.bf16 %v3703, %v3703
        %3705 = vmatpush.bf16.msra.mxu0 %v3480
        %3706 = vmatpush.bf16.msra.mxu0 %v3479
        %3707 = vmatpush.bf16.msra.mxu0 %v3478
        %3708 = vmatpush.bf16.msra.mxu0 %v3477
        %3709 = vmatpush.bf16.msra.mxu0 %v3476
        %3710 = vmatpush.bf16.msra.mxu0 %v3475
        %3711 = vmatpush.bf16.msra.mxu0 %v3474
        %3712 = vmatpush.bf16.msra.mxu0 %v3473
        %3713 = vmatmul.bf16.gmra.mxu0 %v3704
        %v3714 = vpop.f32.mrf.mxu0
        %v3715 = vadd.f32 %v3439, %v3714
        %v3716 = vpop.f32.mrf.mxu0
        %3717 = vdwg.mxu0
        %v3718 = vmax.f32 %v3715, 0.0
        %s3719 = scalar_lea.vmem %s343, 8 [#allocation4]
        %3720 = vst.msk [vmem:[%s3719] sm:$0xf] %vm3503, %v3718
        %v3721 = vld [vmem:[%s2630] sm:$0xf]
        %v3722 = vld [vmem:[%s2428] sm:$0xf]
        %v3723 = vld [vmem:[%s2630 + $0x1] sm:$0xf]
        %v3724 = vld [vmem:[%s2428 + $0x1] sm:$0xf]
        %v3725 = vld [vmem:[%s2987] sm:$0xf]
        %v3726 = vld [vmem:[%s2785] sm:$0xf]
        %v3727 = vld [vmem:[%s2987 + $0x1] sm:$0xf]
        %v3728 = vld [vmem:[%s2785 + $0x1] sm:$0xf]
        %v3729 = vld [vmem:[%s3344] sm:$0xf]
        %v3730 = vld [vmem:[%s3142] sm:$0xf]
        %v3731 = vld [vmem:[%s3344 + $0x1] sm:$0xf]
        %v3732 = vld [vmem:[%s3142 + $0x1] sm:$0xf]
        %s3733 = scalar_lea.vmem [#allocation2], 72
        %v3734 = vld [vmem:[%s3733] sm:$0xf]
        %s3735 = scalar_lea.vmem [#allocation3], 72
        %v3736 = vld [vmem:[%s3735] sm:$0xf]
        %v3737 = vld [vmem:[%s3733 + $0x1] sm:$0xf]
        %v3738 = vld [vmem:[%s3735 + $0x1] sm:$0xf]
        %3740 = vrot.lane.b32.xlu0 %v3722, 8
        %v3741 = vpop.permute.xlu0 %3740
        %3744 = vrot.lane.b32.xlu0 %v3723, 16
        %v3745 = vpop.permute.xlu0 %3744
        %3748 = vrot.lane.b32.xlu0 %v3724, 24
        %v3749 = vpop.permute.xlu0 %3748
        %3752 = vrot.lane.b32.xlu0 %v3725, 32
        %v3753 = vpop.permute.xlu0 %3752
        %3756 = vrot.lane.b32.xlu0 %v3726, 40
        %v3757 = vpop.permute.xlu0 %3756
        %3760 = vrot.lane.b32.xlu0 %v3727, 48
        %v3761 = vpop.permute.xlu0 %3760
        %3764 = vrot.lane.b32.xlu0 %v3728, 56
        %v3765 = vpop.permute.xlu0 %3764
        %3768 = vrot.lane.b32.xlu0 %v3729, 64
        %v3769 = vpop.permute.xlu0 %3768
        %3772 = vrot.lane.b32.xlu0 %v3730, 72
        %v3773 = vpop.permute.xlu0 %3772
        %3776 = vrot.lane.b32.xlu0 %v3731, 80
        %v3777 = vpop.permute.xlu0 %3776
        %3780 = vrot.lane.b32.xlu0 %v3732, 88
        %v3781 = vpop.permute.xlu0 %3780
        %3784 = vrot.lane.b32.xlu0 %v3734, 96
        %v3785 = vpop.permute.xlu0 %3784
        %3788 = vrot.lane.b32.xlu0 %v3736, 104
        %v3789 = vpop.permute.xlu0 %3788
        %3792 = vrot.lane.b32.xlu0 %v3737, 112
        %v3793 = vpop.permute.xlu0 %3792
        %3796 = vrot.lane.b32.xlu0 %v3738, 120
        %v3797 = vpop.permute.xlu0 %3796
        %v3799 = vsel %vm530, %v3721, %v3741
        %v3800 = vsel %vm534, %v3799, %v3745
        %v3801 = vsel %vm537, %v3800, %v3749
        %v3802 = vsel %vm540, %v3801, %v3753
        %v3803 = vsel %vm543, %v3802, %v3757
        %v3804 = vsel %vm546, %v3803, %v3761
        %v3805 = vsel %vm549, %v3804, %v3765
        %v3806 = vsel %vm552, %v3805, %v3769
        %v3807 = vsel %vm555, %v3806, %v3773
        %v3808 = vsel %vm558, %v3807, %v3777
        %v3809 = vsel %vm561, %v3808, %v3781
        %v3810 = vsel %vm564, %v3809, %v3785
        %v3811 = vsel %vm567, %v3810, %v3789
        %v3812 = vsel %vm570, %v3811, %v3793
        %v3813 = vsel %vm573, %v3812, %v3797
        %v3814 = vpack.c.bf16 %v3813, %v3813
        %3815 = vmatpush.bf16.msra.mxu0 %v3480
        %3816 = vmatpush.bf16.msra.mxu0 %v3479
        %3817 = vmatpush.bf16.msra.mxu0 %v3478
        %3818 = vmatpush.bf16.msra.mxu0 %v3477
        %3819 = vmatpush.bf16.msra.mxu0 %v3476
        %3820 = vmatpush.bf16.msra.mxu0 %v3475
        %3821 = vmatpush.bf16.msra.mxu0 %v3474
        %3822 = vmatpush.bf16.msra.mxu0 %v3473
        %3823 = vmatmul.bf16.gmra.mxu0 %v3814
        %v3824 = vpop.f32.mrf.mxu0
        %v3825 = vadd.f32 %v3439, %v3824
        %v3826 = vpop.f32.mrf.mxu0
        %3827 = vdwg.mxu0
        %v3828 = vmax.f32 %v3825, 0.0
        %s3829 = scalar_lea.vmem %s343, 12 [#allocation4]
        %3830 = vst.msk [vmem:[%s3829] sm:$0xf] %vm3503, %v3828
        %s3831 = sand.u32 %s218, 1
        %s3832 = scalar_lea.sflag [#allocation5], %s3831
        %s3833 = sand.u32 %s218, 1
        %s3834 = smul.addr %s3833, 16
        %s3835 = scalar_lea.vmem [#allocation4], %s3834
        // Predicated region
        $region53: #{_lambda_.1} parent=51 // pred_check
          %p3836 = pneg %p228
        $region54: #{_lambda_.1} parent=51 // pred_check_branch
          %3838 = sbr.rel (%p3836) target = $region56
        $region55: #{_lambda_.1} parent=51 // pred_region
          %3840 = vsyncadd %s3832, 0
          %s3841 = smul.addr %s22, 4
          %s3842 = smul.addr %s3841, 4
          %s3843 = scalar_lea.hbm %s8, %s3842
          %s3844 = sshll.u32 %s3835, 4
          %s3845 = int_to_ptr.vmem [resolvable:$true] %s3844
          %s3846 = sshll.u32 %s3843, 4
          %s3847 = int_to_ptr.hbm [resolvable:$true] %s3846
          %3852 = dma.vmem_to_hbm [thread:$0]  %s3845, 256, %s3847, %s3832, 64, 64, 4
        $region56: #{_lambda_.1} parent=51 // pred_fallthru
          _
      $region52: #{_lambda_.1} parent=5 // pred_fallthru
        _
      %p3853 = scmp.le.s32.totalorder 2, %s17
      // Predicated region
      $region57: #{_lambda_.1} parent=5 // pred_check
        %p3854 = pneg %p3853
      $region58: #{_lambda_.1} parent=5 // pred_check_branch
        %3856 = sbr.rel (%p3854) target = $region60
      $region59: #{_lambda_.1} parent=5 // pred_region
        %s3857 = ssub.s32 %s17, 2
        // Predicated region
        $region61: #{_lambda_.1} parent=59 // pred_check
          %p3858 = pneg %p234
        $region62: #{_lambda_.1} parent=59 // pred_check_branch
          %3860 = sbr.rel (%p3858) target = $region64
        $region63: #{_lambda_.1} parent=59 // pred_region
          %s3861 = sand.u32 %s219, 1
          %s3862 = scalar_lea.sflag [#allocation5], %s3861
          %s3863 = sand.u32 %s219, 1
          %s3864 = smul.addr %s3863, 16
          %s3865 = scalar_lea.vmem [#allocation4], %s3864
          %3867 = dma.done %s3862, 256
        $region64: #{_lambda_.1} parent=59 // pred_fallthru
          _
      $region60: #{_lambda_.1} parent=5 // pred_fallthru
        _
    $region6: #{_lambda_.1} parent=1 // loop_footer
      %s21 = sadd.s32 1, %s17
    $region7: #{_lambda_.1} parent=1 // loop_footer_branch
      %16 = sbr.rel target = $region3
    $region8: #{_lambda_.1} parent=1 // loop_exit
      _
    %3868 = vsyncpa [#allocation5], 1
    %s3869 = scalar_lea.sflag [#allocation5], 1
    %3870 = vsyncpa %s3869, 1

</llo_original>
